<compile_context>
chip_gen: v7x
topology: tpu7x:2x2x1
jax: 0.10.0
libtpu: 0.0.40
codegen_flags: <defaults>
</compile_context>

<pallas_src>
import math
import functools

import jax
import jax.numpy as jnp
from jax import lax
from jax.experimental import pallas as pl
from jax.experimental.pallas import tpu as pltpu

# pltpu.CompilerParams on current JAX; fall back for older releases.
_CompilerParams = getattr(pltpu, "CompilerParams", None)
if _CompilerParams is None:  # pragma: no cover
    _CompilerParams = getattr(pltpu, "TPUCompilerParams")


# ----------------------------------------------------------------------------
# The fused kernel: single invocation (no grid), everything resident in VMEM.
# ----------------------------------------------------------------------------
def _fused_transformer_kernel(
        src_ref, tgt_ref, pe_src_ref, pe_tgt_ref,
        # encoder weights (stacked with leading layer dim L)
        e_qkv_w, e_qkv_b, e_out_w, e_out_b,
        e_ff1_w, e_ff1_b, e_ff2_w, e_ff2_b,
        e_ln1_g, e_ln1_b, e_ln2_g, e_ln2_b,
        # decoder weights
        d_sqkv_w, d_sqkv_b, d_sout_w, d_sout_b,
        d_cqkv_w, d_cqkv_b, d_cout_w, d_cout_b,
        d_ff1_w, d_ff1_b, d_ff2_w, d_ff2_b,
        d_ln1_g, d_ln1_b, d_ln2_g, d_ln2_b, d_ln3_g, d_ln3_b,
        out_ref,
        *, nlayers, nhead):
    f32 = jnp.float32
    bf16 = jnp.bfloat16

    B, s_src, d = src_ref.shape
    s_tgt = tgt_ref.shape[1]
    H = nhead
    dh = d // H

    # ---------------- helpers ----------------
    def layernorm(x, g, b, eps=1e-5):
        # residual is already folded into x by the caller; stats in f32
        mu = jnp.mean(x, axis=-1, keepdims=True)
        xc = x - mu
        var = jnp.mean(xc * xc, axis=-1, keepdims=True)
        return xc * lax.rsqrt(var + eps) * g + b

    def mm(x, w, b):
        # bf16 x bf16 matmul, f32 accumulation, f32 bias add
        return jnp.dot(x.astype(bf16), w, preferred_element_type=f32) + b

    def split_heads(rows, bsz, seq):
        # rows: [bsz*seq, d] f32 -> [H*bsz, seq, dh] bf16 (head-major batch)
        x3 = rows.astype(bf16).reshape(bsz, seq, d)
        parts = [x3[:, :, hh * dh:(hh + 1) * dh] for hh in range(H)]   # static lane slices
        return jnp.stack(parts, axis=0).reshape(H * bsz, seq, dh)

    def softmax_lastdim(s):
        m = jnp.max(s, axis=-1, keepdims=True)
        p = jnp.exp(s - m)
        denom = jnp.sum(p, axis=-1, keepdims=True)
        # approx reciprocal runs on the EUP slot (minor numeric deviation vs exact divide)
        return p * pl.reciprocal(denom, approx=True)

    def mha(q_rows, k_rows, v_rows, out_w, out_b, sq, sk):
        # q_rows: [B*sq, d] f32; k_rows/v_rows: [B*sk, d] f32
        # out_w: [H, dh, d] bf16; out_b: [1, d] f32
        # 1/sqrt(dh) is already folded into the Q projection weights.
        qh = split_heads(q_rows, B, sq)                       # [H*B, sq, dh]
        kh = split_heads(k_rows, B, sk)                       # [H*B, sk, dh]
        vh = split_heads(v_rows, B, sk)
        s = lax.dot_general(qh, kh, (((2,), (2,)), ((0,), (0,))),
                            preferred_element_type=f32)       # [H*B, sq, sk]
        p = softmax_lastdim(s)                                 # batched over all heads
        o = lax.dot_general(p.astype(bf16), vh, (((2,), (1,)), ((0,), (0,))),
                            preferred_element_type=f32)       # [H*B, sq, dh]
        # output projection: one head-batched dot + reduce over heads
        # (== concat(heads) @ W_out, without a lane-merging reshape)
        o2 = o.reshape(H, B * sq, dh).astype(bf16)             # [H, B*sq, dh]
        contrib = lax.dot_general(o2, out_w, (((2,), (1,)), ((0,), (0,))),
                                  preferred_element_type=f32)  # [H, B*sq, d]
        return jnp.sum(contrib, axis=0) + out_b                # [B*sq, d]

    # ---------------- encoder (self-attention stack) ----------------
    x = (src_ref[...] + pe_src_ref[...][None]).reshape(B * s_src, d)   # [B*S, d] f32

    def enc_layer(l, x):
        qkv = mm(x, e_qkv_w[l], e_qkv_b[l])                    # [B*S, 3d] fused in_proj
        a = mha(qkv[:, :d], qkv[:, d:2 * d], qkv[:, 2 * d:],
                e_out_w[l], e_out_b[l], s_src, s_src)
        x = layernorm(x + a, e_ln1_g[l], e_ln1_b[l])
        h1 = jnp.maximum(mm(x, e_ff1_w[l], e_ff1_b[l]), 0.0)
        x = layernorm(x + mm(h1, e_ff2_w[l], e_ff2_b[l]), e_ln2_g[l], e_ln2_b[l])
        return x

    x = lax.fori_loop(0, nlayers, enc_layer, x)
    mem_bf = x.astype(bf16)                                    # [B*S, d] shared K/V source

    # ---------------- decoder (self + cross attention stack) --------
    y = (tgt_ref[...] + pe_tgt_ref[...][None]).reshape(B * s_tgt, d)   # [B*Q, d] f32

    def dec_layer(l, y):
        # self-attention
        qkv = mm(y, d_sqkv_w[l], d_sqkv_b[l])
        a = mha(qkv[:, :d], qkv[:, d:2 * d], qkv[:, 2 * d:],
                d_sout_w[l], d_sout_b[l], s_tgt, s_tgt)
        y = layernorm(y + a, d_ln1_g[l], d_ln1_b[l])

        # cross-attention: q from decoder state, k/v from encoder memory
        cw = d_cqkv_w[l]                                       # [d, 3d] bf16
        cb = d_cqkv_b[l]                                       # [1, 3d] f32
        q = jnp.dot(y.astype(bf16), cw[:, :d], preferred_element_type=f32) + cb[:, :d]
        kv = jnp.dot(mem_bf, cw[:, d:], preferred_element_type=f32) + cb[:, d:]
        a = mha(q, kv[:, :d], kv[:, d:], d_cout_w[l], d_cout_b[l], s_tgt, s_src)
        y = layernorm(y + a, d_ln2_g[l], d_ln2_b[l])

        # feed-forward
        h1 = jnp.maximum(mm(y, d_ff1_w[l], d_ff1_b[l]), 0.0)
        y = layernorm(y + mm(h1, d_ff2_w[l], d_ff2_b[l]), d_ln3_g[l], d_ln3_b[l])
        return y

    y = lax.fori_loop(0, nlayers, dec_layer, y)

    out_ref[...] = y.reshape(B, s_tgt, d).astype(out_ref.dtype)   # only HBM write


# ----------------------------------------------------------------------------
# Forward wrapper: single pallas_call, no grid, whole arrays in VMEM.
# ----------------------------------------------------------------------------
def transformer_model_forward(src, tgt, params, *, d_model, nhead, nlayers, h, w):
    """Mirrors TransformerModel.forward.
    src: [B, d_model, h, w]   tgt: [num_queries, B, d_model]
    returns [num_queries, B, d_model]
    """
    B = src.shape[0]
    s_src = h * w
    s_tgt = tgt.shape[0]

    # Boundary layout plumbing only (equivalent to PyTorch's view + permute).
    src_b = src.reshape(B, d_model, s_src).transpose(0, 2, 1)   # [B, S_src, d]
    tgt_b = tgt.transpose(1, 0, 2)                              # [B, Q, d]

    enc, dec = params['enc'], params['dec']
    weight_args = (
        enc['qkv_w'], enc['qkv_b'], enc['out_w'], enc['out_b'],
        enc['ff1_w'], enc['ff1_b'], enc['ff2_w'], enc['ff2_b'],
        enc['ln1_g'], enc['ln1_b'], enc['ln2_g'], enc['ln2_b'],
        dec['sqkv_w'], dec['sqkv_b'], dec['sout_w'], dec['sout_b'],
        dec['cqkv_w'], dec['cqkv_b'], dec['cout_w'], dec['cout_b'],
        dec['ff1_w'], dec['ff1_b'], dec['ff2_w'], dec['ff2_b'],
        dec['ln1_g'], dec['ln1_b'], dec['ln2_g'], dec['ln2_b'],
        dec['ln3_g'], dec['ln3_b'],
    )

    kernel = functools.partial(_fused_transformer_kernel,
                               nlayers=nlayers, nhead=nhead)
    out_b = pl.pallas_call(
        kernel,
        out_shape=jax.ShapeDtypeStruct((B, s_tgt, d_model), jnp.float32),
        compiler_params=_CompilerParams(vmem_limit_bytes=32 * 1024 * 1024),
    )(src_b, tgt_b, params['pe_src'], params['pe_tgt'], *weight_args)

    return out_b.transpose(1, 0, 2)                             # [Q, B, d]


# ----------------------------------------------------------------------------
# Deterministic parameter init.  Matmul weights are stored in [in, out] layout,
# stacked with a leading layer axis, cast to bf16; 1/sqrt(dh) is folded into
# the Q columns of the in-proj weights.  Out-proj weights are head-major
# [L, H, dh, d].  Biases / LayerNorm params / PE stay f32.
# ----------------------------------------------------------------------------
def positional_encoding_table(d_model, max_len):
    position = jnp.arange(max_len, dtype=jnp.float32)[:, None]
    div_term = jnp.exp(jnp.arange(0, d_model, 2, dtype=jnp.float32)
                       * (-math.log(10000.0) / d_model))
    pe = jnp.zeros((max_len, d_model), dtype=jnp.float32)
    pe = pe.at[:, 0::2].set(jnp.sin(position * div_term))
    pe = pe.at[:, 1::2].set(jnp.cos(position * div_term))
    return pe


def init_params(key, d, d_hid, nlayers, nhead, s_src, s_tgt):
    L, H = nlayers, nhead
    dh = d // H
    scale = 1.0 / math.sqrt(dh)
    keys = iter(jax.random.split(key, 12 * L + 4))
    bf16 = jnp.bfloat16

    def w(shape):
        return 0.05 * jax.random.normal(next(keys), shape, jnp.float32)

    def stack_w(shape):          # random weight per layer, [L, *shape]
        return jnp.stack([w(shape) for _ in range(L)])

    def zeros(shape):
        return jnp.zeros((L,) + shape, jnp.float32)

    def ones(shape):
        return jnp.ones((L,) + shape, jnp.float32)

    def fold_q_scale(qkv_w):     # fold 1/sqrt(dh) into the Q column block
        return qkv_w.at[:, :, :d].multiply(scale)
        # (biases are zero, so no q-bias scaling is needed here)

    enc = dict(
        qkv_w=fold_q_scale(stack_w((d, 3 * d))).astype(bf16), qkv_b=zeros((1, 3 * d)),
        out_w=stack_w((H, dh, d)).astype(bf16),               out_b=zeros((1, d)),
        ff1_w=stack_w((d, d_hid)).astype(bf16),               ff1_b=zeros((1, d_hid)),
        ff2_w=stack_w((d_hid, d)).astype(bf16),               ff2_b=zeros((1, d)),
        ln1_g=ones((1, d)), ln1_b=zeros((1, d)),
        ln2_g=ones((1, d)), ln2_b=zeros((1, d)),
    )
    dec = dict(
        sqkv_w=fold_q_scale(stack_w((d, 3 * d))).astype(bf16), sqkv_b=zeros((1, 3 * d)),
        sout_w=stack_w((H, dh, d)).astype(bf16),               sout_b=zeros((1, d)),
        cqkv_w=fold_q_scale(stack_w((d, 3 * d))).astype(bf16), cqkv_b=zeros((1, 3 * d)),
        cout_w=stack_w((H, dh, d)).astype(bf16),               cout_b=zeros((1, d)),
        ff1_w=stack_w((d, d_hid)).astype(bf16),                ff1_b=zeros((1, d_hid)),
        ff2_w=stack_w((d_hid, d)).astype(bf16),                ff2_b=zeros((1, d)),
        ln1_g=ones((1, d)), ln1_b=zeros((1, d)),
        ln2_g=ones((1, d)), ln2_b=zeros((1, d)),
        ln3_g=ones((1, d)), ln3_b=zeros((1, d)),
    )
    pe = positional_encoding_table(d, max_len=max(s_src, s_tgt))
    return dict(pe_src=pe[:s_src], pe_tgt=pe[:s_tgt], enc=enc, dec=dec)


# ----------------------------------------------------------------------------
if __name__ == "__main__":
    # small shapes consistent with the module structure
    d_model, nhead, d_hid, nlayers = 32, 4, 64, 2
    h, w = 4, 4                     # spatial size of the fused visual feature
    batch, num_queries = 2, 8

    root = jax.random.PRNGKey(0)
    k_src, k_tgt, k_par = jax.random.split(root, 3)

    src = jax.random.normal(k_src, (batch, d_model, h, w), jnp.float32)
    tgt = jax.random.normal(k_tgt, (num_queries, batch, d_model), jnp.float32)
    params = init_params(k_par, d_model, d_hid, nlayers, nhead, h * w, num_queries)

    fwd = jax.jit(functools.partial(transformer_model_forward,
                                    d_model=d_model, nhead=nhead,
                                    nlayers=nlayers, h=h, w=w))
    out = jax.block_until_ready(fwd(src, tgt, params))

    assert out.shape == (num_queries, batch, d_model)
    assert bool(jnp.all(jnp.isfinite(out)))
    print("KERNEL_OK")
</pallas_src>

<mosaic_0001>
module attributes {stable_mosaic.version = 11 : i64} {
  func.func @_fused_transformer_kernel(%arg0: memref<2x16x32xf32, #tpu.memory_space<vmem>>, %arg1: memref<2x8x32xf32, #tpu.memory_space<vmem>>, %arg2: memref<16x32xf32, #tpu.memory_space<vmem>>, %arg3: memref<8x32xf32, #tpu.memory_space<vmem>>, %arg4: memref<2x32x96xbf16, #tpu.memory_space<vmem>>, %arg5: memref<2x1x96xf32, #tpu.memory_space<vmem>>, %arg6: memref<2x4x8x32xbf16, #tpu.memory_space<vmem>>, %arg7: memref<2x1x32xf32, #tpu.memory_space<vmem>>, %arg8: memref<2x32x64xbf16, #tpu.memory_space<vmem>>, %arg9: memref<2x1x64xf32, #tpu.memory_space<vmem>>, %arg10: memref<2x64x32xbf16, #tpu.memory_space<vmem>>, %arg11: memref<2x1x32xf32, #tpu.memory_space<vmem>>, %arg12: memref<2x1x32xf32, #tpu.memory_space<vmem>>, %arg13: memref<2x1x32xf32, #tpu.memory_space<vmem>>, %arg14: memref<2x1x32xf32, #tpu.memory_space<vmem>>, %arg15: memref<2x1x32xf32, #tpu.memory_space<vmem>>, %arg16: memref<2x32x96xbf16, #tpu.memory_space<vmem>>, %arg17: memref<2x1x96xf32, #tpu.memory_space<vmem>>, %arg18: memref<2x4x8x32xbf16, #tpu.memory_space<vmem>>, %arg19: memref<2x1x32xf32, #tpu.memory_space<vmem>>, %arg20: memref<2x32x96xbf16, #tpu.memory_space<vmem>>, %arg21: memref<2x1x96xf32, #tpu.memory_space<vmem>>, %arg22: memref<2x4x8x32xbf16, #tpu.memory_space<vmem>>, %arg23: memref<2x1x32xf32, #tpu.memory_space<vmem>>, %arg24: memref<2x32x64xbf16, #tpu.memory_space<vmem>>, %arg25: memref<2x1x64xf32, #tpu.memory_space<vmem>>, %arg26: memref<2x64x32xbf16, #tpu.memory_space<vmem>>, %arg27: memref<2x1x32xf32, #tpu.memory_space<vmem>>, %arg28: memref<2x1x32xf32, #tpu.memory_space<vmem>>, %arg29: memref<2x1x32xf32, #tpu.memory_space<vmem>>, %arg30: memref<2x1x32xf32, #tpu.memory_space<vmem>>, %arg31: memref<2x1x32xf32, #tpu.memory_space<vmem>>, %arg32: memref<2x1x32xf32, #tpu.memory_space<vmem>>, %arg33: memref<2x1x32xf32, #tpu.memory_space<vmem>>, %arg34: memref<2x8x32xf32, #tpu.memory_space<vmem>>) attributes {dimension_semantics = [], scalar_prefetch = 0 : i64, scratch_operands = 0 : i64, tpu.core_type = #tpu.core_type<tc>} {
    %c0 = arith.constant 0 : index
    %c0_0 = arith.constant 0 : index
    %c0_1 = arith.constant 0 : index
    %0 = vector.load %arg0[%c0, %c0_0, %c0_1] : memref<2x16x32xf32, #tpu.memory_space<vmem>>, vector<2x16x32xf32>
    %c0_2 = arith.constant 0 : index
    %c0_3 = arith.constant 0 : index
    %1 = vector.load %arg2[%c0_2, %c0_3] : memref<16x32xf32, #tpu.memory_space<vmem>>, vector<16x32xf32>
    %2 = vector.shape_cast %1 : vector<16x32xf32> to vector<1x16x32xf32>
    %3 = vector.broadcast %2 : vector<1x16x32xf32> to vector<2x16x32xf32>
    %4 = arith.addf %0, %3 : vector<2x16x32xf32>
    %5 = vector.shape_cast %4 : vector<2x16x32xf32> to vector<32x32xf32>
    %c0_i32 = arith.constant 0 : i32
    %c2_i32 = arith.constant 2 : i32
    %6 = arith.addi %c0_i32, %c2_i32 : i32
    %c1_i32 = arith.constant 1 : i32
    %7 = scf.for %arg35 = %c0_i32 to %6 step %c1_i32 iter_args(%arg36 = %5) -> (vector<32x32xf32>)  : i32 {
      %19 = arith.index_cast %arg35 : i32 to index
      %c0_17 = arith.constant 0 : index
      %c0_18 = arith.constant 0 : index
      %20 = vector.load %arg4[%19, %c0_17, %c0_18] : memref<2x32x96xbf16, #tpu.memory_space<vmem>>, vector<1x32x96xbf16>
      %21 = vector.shape_cast %20 : vector<1x32x96xbf16> to vector<32x96xbf16>
      %22 = arith.index_cast %arg35 : i32 to index
      %c0_19 = arith.constant 0 : index
      %c0_20 = arith.constant 0 : index
      %23 = vector.load %arg5[%22, %c0_19, %c0_20] : memref<2x1x96xf32, #tpu.memory_space<vmem>>, vector<1x1x96xf32>
      %24 = vector.shape_cast %23 : vector<1x1x96xf32> to vector<1x96xf32>
      %25 = arith.truncf %arg36 : vector<32x32xf32> to vector<32x32xbf16>
      %cst = arith.constant dense<0.000000e+00> : vector<32x96xf32>
      %26 = tpu.matmul %25, %21, %cst {dimension_numbers = #tpu.dot_dimension_numbers<[1], [0], [0], [1], [0, 0, 1, 1], [], []>} : vector<32x32xbf16>, vector<32x96xbf16>, vector<32x96xf32> -> vector<32x96xf32>
      %27 = vector.broadcast %24 : vector<1x96xf32> to vector<32x96xf32>
      %28 = arith.addf %26, %27 : vector<32x96xf32>
      %29 = vector.extract_strided_slice %28 {offsets = [0, 0], sizes = [32, 32], strides = [1, 1]} : vector<32x96xf32> to vector<32x32xf32>
      %30 = vector.extract_strided_slice %28 {offsets = [0, 32], sizes = [32, 32], strides = [1, 1]} : vector<32x96xf32> to vector<32x32xf32>
      %31 = vector.extract_strided_slice %28 {offsets = [0, 64], sizes = [32, 32], strides = [1, 1]} : vector<32x96xf32> to vector<32x32xf32>
      %32 = arith.index_cast %arg35 : i32 to index
      %c0_21 = arith.constant 0 : index
      %c0_22 = arith.constant 0 : index
      %c0_23 = arith.constant 0 : index
      %33 = vector.load %arg6[%32, %c0_21, %c0_22, %c0_23] : memref<2x4x8x32xbf16, #tpu.memory_space<vmem>>, vector<1x4x8x32xbf16>
      %34 = vector.shape_cast %33 : vector<1x4x8x32xbf16> to vector<4x8x32xbf16>
      %35 = arith.index_cast %arg35 : i32 to index
      %c0_24 = arith.constant 0 : index
      %c0_25 = arith.constant 0 : index
      %36 = vector.load %arg7[%35, %c0_24, %c0_25] : memref<2x1x32xf32, #tpu.memory_space<vmem>>, vector<1x1x32xf32>
      %37 = vector.shape_cast %36 : vector<1x1x32xf32> to vector<1x32xf32>
      %38 = arith.truncf %29 : vector<32x32xf32> to vector<32x32xbf16>
      %39 = vector.shape_cast %38 : vector<32x32xbf16> to vector<2x16x32xbf16>
      %40 = vector.extract_strided_slice %39 {offsets = [0, 0, 0], sizes = [2, 16, 8], strides = [1, 1, 1]} : vector<2x16x32xbf16> to vector<2x16x8xbf16>
      %41 = vector.extract_strided_slice %39 {offsets = [0, 0, 8], sizes = [2, 16, 8], strides = [1, 1, 1]} : vector<2x16x32xbf16> to vector<2x16x8xbf16>
      %42 = vector.extract_strided_slice %39 {offsets = [0, 0, 16], sizes = [2, 16, 8], strides = [1, 1, 1]} : vector<2x16x32xbf16> to vector<2x16x8xbf16>
      %43 = vector.extract_strided_slice %39 {offsets = [0, 0, 24], sizes = [2, 16, 8], strides = [1, 1, 1]} : vector<2x16x32xbf16> to vector<2x16x8xbf16>
      %44 = vector.shape_cast %40 : vector<2x16x8xbf16> to vector<1x2x16x8xbf16>
      %45 = vector.shape_cast %41 : vector<2x16x8xbf16> to vector<1x2x16x8xbf16>
      %46 = vector.shape_cast %42 : vector<2x16x8xbf16> to vector<1x2x16x8xbf16>
      %47 = vector.shape_cast %43 : vector<2x16x8xbf16> to vector<1x2x16x8xbf16>
      %48 = tpu.concatenate %44, %45, %46, %47 in 0 : vector<1x2x16x8xbf16>, vector<1x2x16x8xbf16>, vector<1x2x16x8xbf16>, vector<1x2x16x8xbf16> -> vector<4x2x16x8xbf16>
      %49 = vector.shape_cast %48 : vector<4x2x16x8xbf16> to vector<8x16x8xbf16>
      %50 = arith.truncf %30 : vector<32x32xf32> to vector<32x32xbf16>
      %51 = vector.shape_cast %50 : vector<32x32xbf16> to vector<2x16x32xbf16>
      %52 = vector.extract_strided_slice %51 {offsets = [0, 0, 0], sizes = [2, 16, 8], strides = [1, 1, 1]} : vector<2x16x32xbf16> to vector<2x16x8xbf16>
      %53 = vector.extract_strided_slice %51 {offsets = [0, 0, 8], sizes = [2, 16, 8], strides = [1, 1, 1]} : vector<2x16x32xbf16> to vector<2x16x8xbf16>
      %54 = vector.extract_strided_slice %51 {offsets = [0, 0, 16], sizes = [2, 16, 8], strides = [1, 1, 1]} : vector<2x16x32xbf16> to vector<2x16x8xbf16>
      %55 = vector.extract_strided_slice %51 {offsets = [0, 0, 24], sizes = [2, 16, 8], strides = [1, 1, 1]} : vector<2x16x32xbf16> to vector<2x16x8xbf16>
      %56 = vector.shape_cast %52 : vector<2x16x8xbf16> to vector<1x2x16x8xbf16>
      %57 = vector.shape_cast %53 : vector<2x16x8xbf16> to vector<1x2x16x8xbf16>
      %58 = vector.shape_cast %54 : vector<2x16x8xbf16> to vector<1x2x16x8xbf16>
      %59 = vector.shape_cast %55 : vector<2x16x8xbf16> to vector<1x2x16x8xbf16>
      %60 = tpu.concatenate %56, %57, %58, %59 in 0 : vector<1x2x16x8xbf16>, vector<1x2x16x8xbf16>, vector<1x2x16x8xbf16>, vector<1x2x16x8xbf16> -> vector<4x2x16x8xbf16>
      %61 = vector.shape_cast %60 : vector<4x2x16x8xbf16> to vector<8x16x8xbf16>
      %62 = arith.truncf %31 : vector<32x32xf32> to vector<32x32xbf16>
      %63 = vector.shape_cast %62 : vector<32x32xbf16> to vector<2x16x32xbf16>
      %64 = vector.extract_strided_slice %63 {offsets = [0, 0, 0], sizes = [2, 16, 8], strides = [1, 1, 1]} : vector<2x16x32xbf16> to vector<2x16x8xbf16>
      %65 = vector.extract_strided_slice %63 {offsets = [0, 0, 8], sizes = [2, 16, 8], strides = [1, 1, 1]} : vector<2x16x32xbf16> to vector<2x16x8xbf16>
      %66 = vector.extract_strided_slice %63 {offsets = [0, 0, 16], sizes = [2, 16, 8], strides = [1, 1, 1]} : vector<2x16x32xbf16> to vector<2x16x8xbf16>
      %67 = vector.extract_strided_slice %63 {offsets = [0, 0, 24], sizes = [2, 16, 8], strides = [1, 1, 1]} : vector<2x16x32xbf16> to vector<2x16x8xbf16>
      %68 = vector.shape_cast %64 : vector<2x16x8xbf16> to vector<1x2x16x8xbf16>
      %69 = vector.shape_cast %65 : vector<2x16x8xbf16> to vector<1x2x16x8xbf16>
      %70 = vector.shape_cast %66 : vector<2x16x8xbf16> to vector<1x2x16x8xbf16>
      %71 = vector.shape_cast %67 : vector<2x16x8xbf16> to vector<1x2x16x8xbf16>
      %72 = tpu.concatenate %68, %69, %70, %71 in 0 : vector<1x2x16x8xbf16>, vector<1x2x16x8xbf16>, vector<1x2x16x8xbf16>, vector<1x2x16x8xbf16> -> vector<4x2x16x8xbf16>
      %73 = vector.shape_cast %72 : vector<4x2x16x8xbf16> to vector<8x16x8xbf16>
      %cst_26 = arith.constant dense<0.000000e+00> : vector<8x16x16xf32>
      %74 = tpu.matmul %49, %61, %cst_26 {dimension_numbers = #tpu.dot_dimension_numbers<[2], [2], [1], [1], [0, 0, 0, 1, 1, 1], [0], [0]>} : vector<8x16x8xbf16>, vector<8x16x8xbf16>, vector<8x16x16xf32> -> vector<8x16x16xf32>
      %cst_27 = arith.constant dense<0xFF800000> : vector<8x16xf32>
      %75 = vector.multi_reduction <maximumf>, %74, %cst_27 [2] : vector<8x16x16xf32> to vector<8x16xf32>
      %76 = vector.shape_cast %75 : vector<8x16xf32> to vector<8x16x1xf32>
      %77 = vector.broadcast %76 : vector<8x16x1xf32> to vector<8x16x16xf32>
      %78 = arith.subf %74, %77 : vector<8x16x16xf32>
      %79 = math.exp %78 : vector<8x16x16xf32>
      %cst_28 = arith.constant dense<0.000000e+00> : vector<8x16xf32>
      %80 = vector.multi_reduction <add>, %79, %cst_28 [2] : vector<8x16x16xf32> to vector<8x16xf32>
      %81 = vector.shape_cast %80 : vector<8x16xf32> to vector<8x16x1xf32>
      %82 = tpu.reciprocal %81 {approx = true} : vector<8x16x1xf32> -> vector<8x16x1xf32>
      %83 = vector.broadcast %82 : vector<8x16x1xf32> to vector<8x16x16xf32>
      %84 = arith.mulf %79, %83 : vector<8x16x16xf32>
      %85 = arith.truncf %84 : vector<8x16x16xf32> to vector<8x16x16xbf16>
      %cst_29 = arith.constant dense<0.000000e+00> : vector<8x16x8xf32>
      %86 = tpu.matmul %85, %73, %cst_29 {dimension_numbers = #tpu.dot_dimension_numbers<[2], [1], [1], [2], [0, 0, 0, 1, 1, 2], [0], [0]>} : vector<8x16x16xbf16>, vector<8x16x8xbf16>, vector<8x16x8xf32> -> vector<8x16x8xf32>
      %87 = vector.shape_cast %86 : vector<8x16x8xf32> to vector<4x32x8xf32>
      %88 = arith.truncf %87 : vector<4x32x8xf32> to vector<4x32x8xbf16>
      %cst_30 = arith.constant dense<0.000000e+00> : vector<4x32x32xf32>
      %89 = tpu.matmul %88, %34, %cst_30 {dimension_numbers = #tpu.dot_dimension_numbers<[2], [1], [1], [2], [0, 0, 0, 1, 1, 2], [0], [0]>} : vector<4x32x8xbf16>, vector<4x8x32xbf16>, vector<4x32x32xf32> -> vector<4x32x32xf32>
      %cst_31 = arith.constant dense<0.000000e+00> : vector<32x32xf32>
      %90 = vector.multi_reduction <add>, %89, %cst_31 [0] : vector<4x32x32xf32> to vector<32x32xf32>
      %91 = vector.broadcast %37 : vector<1x32xf32> to vector<32x32xf32>
      %92 = arith.addf %90, %91 : vector<32x32xf32>
      %93 = arith.addf %arg36, %92 : vector<32x32xf32>
      %94 = arith.index_cast %arg35 : i32 to index
      %c0_32 = arith.constant 0 : index
      %c0_33 = arith.constant 0 : index
      %95 = vector.load %arg12[%94, %c0_32, %c0_33] : memref<2x1x32xf32, #tpu.memory_space<vmem>>, vector<1x1x32xf32>
      %96 = vector.shape_cast %95 : vector<1x1x32xf32> to vector<1x32xf32>
      %97 = arith.index_cast %arg35 : i32 to index
      %c0_34 = arith.constant 0 : index
      %c0_35 = arith.constant 0 : index
      %98 = vector.load %arg13[%97, %c0_34, %c0_35] : memref<2x1x32xf32, #tpu.memory_space<vmem>>, vector<1x1x32xf32>
      %99 = vector.shape_cast %98 : vector<1x1x32xf32> to vector<1x32xf32>
      %cst_36 = arith.constant dense<0.000000e+00> : vector<32xf32>
      %100 = vector.multi_reduction <add>, %93, %cst_36 [1] : vector<32x32xf32> to vector<32xf32>
      %101 = vector.shape_cast %100 : vector<32xf32> to vector<32x1xf32>
      %cst_37 = arith.constant 3.200000e+01 : f32
      %102 = vector.broadcast %cst_37 : f32 to vector<32x1xf32>
      %103 = arith.divf %101, %102 : vector<32x1xf32>
      %104 = vector.broadcast %103 : vector<32x1xf32> to vector<32x32xf32>
      %105 = arith.subf %93, %104 : vector<32x32xf32>
      %106 = arith.mulf %105, %105 : vector<32x32xf32>
      %cst_38 = arith.constant dense<0.000000e+00> : vector<32xf32>
      %107 = vector.multi_reduction <add>, %106, %cst_38 [1] : vector<32x32xf32> to vector<32xf32>
      %108 = vector.shape_cast %107 : vector<32xf32> to vector<32x1xf32>
      %cst_39 = arith.constant 3.200000e+01 : f32
      %109 = vector.broadcast %cst_39 : f32 to vector<32x1xf32>
      %110 = arith.divf %108, %109 : vector<32x1xf32>
      %cst_40 = arith.constant 9.99999974E-6 : f32
      %111 = vector.broadcast %cst_40 : f32 to vector<32x1xf32>
      %112 = arith.addf %110, %111 : vector<32x1xf32>
      %113 = math.rsqrt %112 : vector<32x1xf32>
      %114 = vector.broadcast %113 : vector<32x1xf32> to vector<32x32xf32>
      %115 = arith.mulf %105, %114 : vector<32x32xf32>
      %116 = vector.broadcast %96 : vector<1x32xf32> to vector<32x32xf32>
      %117 = arith.mulf %115, %116 : vector<32x32xf32>
      %118 = vector.broadcast %99 : vector<1x32xf32> to vector<32x32xf32>
      %119 = arith.addf %117, %118 : vector<32x32xf32>
      %120 = arith.index_cast %arg35 : i32 to index
      %c0_41 = arith.constant 0 : index
      %c0_42 = arith.constant 0 : index
      %121 = vector.load %arg8[%120, %c0_41, %c0_42] : memref<2x32x64xbf16, #tpu.memory_space<vmem>>, vector<1x32x64xbf16>
      %122 = vector.shape_cast %121 : vector<1x32x64xbf16> to vector<32x64xbf16>
      %123 = arith.index_cast %arg35 : i32 to index
      %c0_43 = arith.constant 0 : index
      %c0_44 = arith.constant 0 : index
      %124 = vector.load %arg9[%123, %c0_43, %c0_44] : memref<2x1x64xf32, #tpu.memory_space<vmem>>, vector<1x1x64xf32>
      %125 = vector.shape_cast %124 : vector<1x1x64xf32> to vector<1x64xf32>
      %126 = arith.truncf %119 : vector<32x32xf32> to vector<32x32xbf16>
      %cst_45 = arith.constant dense<0.000000e+00> : vector<32x64xf32>
      %127 = tpu.matmul %126, %122, %cst_45 {dimension_numbers = #tpu.dot_dimension_numbers<[1], [0], [0], [1], [0, 0, 1, 1], [], []>} : vector<32x32xbf16>, vector<32x64xbf16>, vector<32x64xf32> -> vector<32x64xf32>
      %128 = vector.broadcast %125 : vector<1x64xf32> to vector<32x64xf32>
      %129 = arith.addf %127, %128 : vector<32x64xf32>
      %cst_46 = arith.constant 0.000000e+00 : f32
      %130 = vector.broadcast %cst_46 : f32 to vector<32x64xf32>
      %131 = arith.maximumf %129, %130 : vector<32x64xf32>
      %132 = arith.index_cast %arg35 : i32 to index
      %c0_47 = arith.constant 0 : index
      %c0_48 = arith.constant 0 : index
      %133 = vector.load %arg10[%132, %c0_47, %c0_48] : memref<2x64x32xbf16, #tpu.memory_space<vmem>>, vector<1x64x32xbf16>
      %134 = vector.shape_cast %133 : vector<1x64x32xbf16> to vector<64x32xbf16>
      %135 = arith.index_cast %arg35 : i32 to index
      %c0_49 = arith.constant 0 : index
      %c0_50 = arith.constant 0 : index
      %136 = vector.load %arg11[%135, %c0_49, %c0_50] : memref<2x1x32xf32, #tpu.memory_space<vmem>>, vector<1x1x32xf32>
      %137 = vector.shape_cast %136 : vector<1x1x32xf32> to vector<1x32xf32>
      %138 = arith.truncf %131 : vector<32x64xf32> to vector<32x64xbf16>
      %cst_51 = arith.constant dense<0.000000e+00> : vector<32x32xf32>
      %139 = tpu.matmul %138, %134, %cst_51 {dimension_numbers = #tpu.dot_dimension_numbers<[1], [0], [0], [1], [0, 0, 1, 1], [], []>} : vector<32x64xbf16>, vector<64x32xbf16>, vector<32x32xf32> -> vector<32x32xf32>
      %140 = vector.broadcast %137 : vector<1x32xf32> to vector<32x32xf32>
      %141 = arith.addf %139, %140 : vector<32x32xf32>
      %142 = arith.addf %119, %141 : vector<32x32xf32>
      %143 = arith.index_cast %arg35 : i32 to index
      %c0_52 = arith.constant 0 : index
      %c0_53 = arith.constant 0 : index
      %144 = vector.load %arg14[%143, %c0_52, %c0_53] : memref<2x1x32xf32, #tpu.memory_space<vmem>>, vector<1x1x32xf32>
      %145 = vector.shape_cast %144 : vector<1x1x32xf32> to vector<1x32xf32>
      %146 = arith.index_cast %arg35 : i32 to index
      %c0_54 = arith.constant 0 : index
      %c0_55 = arith.constant 0 : index
      %147 = vector.load %arg15[%146, %c0_54, %c0_55] : memref<2x1x32xf32, #tpu.memory_space<vmem>>, vector<1x1x32xf32>
      %148 = vector.shape_cast %147 : vector<1x1x32xf32> to vector<1x32xf32>
      %cst_56 = arith.constant dense<0.000000e+00> : vector<32xf32>
      %149 = vector.multi_reduction <add>, %142, %cst_56 [1] : vector<32x32xf32> to vector<32xf32>
      %150 = vector.shape_cast %149 : vector<32xf32> to vector<32x1xf32>
      %cst_57 = arith.constant 3.200000e+01 : f32
      %151 = vector.broadcast %cst_57 : f32 to vector<32x1xf32>
      %152 = arith.divf %150, %151 : vector<32x1xf32>
      %153 = vector.broadcast %152 : vector<32x1xf32> to vector<32x32xf32>
      %154 = arith.subf %142, %153 : vector<32x32xf32>
      %155 = arith.mulf %154, %154 : vector<32x32xf32>
      %cst_58 = arith.constant dense<0.000000e+00> : vector<32xf32>
      %156 = vector.multi_reduction <add>, %155, %cst_58 [1] : vector<32x32xf32> to vector<32xf32>
      %157 = vector.shape_cast %156 : vector<32xf32> to vector<32x1xf32>
      %cst_59 = arith.constant 3.200000e+01 : f32
      %158 = vector.broadcast %cst_59 : f32 to vector<32x1xf32>
      %159 = arith.divf %157, %158 : vector<32x1xf32>
      %cst_60 = arith.constant 9.99999974E-6 : f32
      %160 = vector.broadcast %cst_60 : f32 to vector<32x1xf32>
      %161 = arith.addf %159, %160 : vector<32x1xf32>
      %162 = math.rsqrt %161 : vector<32x1xf32>
      %163 = vector.broadcast %162 : vector<32x1xf32> to vector<32x32xf32>
      %164 = arith.mulf %154, %163 : vector<32x32xf32>
      %165 = vector.broadcast %145 : vector<1x32xf32> to vector<32x32xf32>
      %166 = arith.mulf %164, %165 : vector<32x32xf32>
      %167 = vector.broadcast %148 : vector<1x32xf32> to vector<32x32xf32>
      %168 = arith.addf %166, %167 : vector<32x32xf32>
      scf.yield %168 : vector<32x32xf32>
    }
    %c2_i32_4 = arith.constant 2 : i32
    %8 = arith.truncf %7 : vector<32x32xf32> to vector<32x32xbf16>
    %c0_5 = arith.constant 0 : index
    %c0_6 = arith.constant 0 : index
    %c0_7 = arith.constant 0 : index
    %9 = vector.load %arg1[%c0_5, %c0_6, %c0_7] : memref<2x8x32xf32, #tpu.memory_space<vmem>>, vector<2x8x32xf32>
    %c0_8 = arith.constant 0 : index
    %c0_9 = arith.constant 0 : index
    %10 = vector.load %arg3[%c0_8, %c0_9] : memref<8x32xf32, #tpu.memory_space<vmem>>, vector<8x32xf32>
    %11 = vector.shape_cast %10 : vector<8x32xf32> to vector<1x8x32xf32>
    %12 = vector.broadcast %11 : vector<1x8x32xf32> to vector<2x8x32xf32>
    %13 = arith.addf %9, %12 : vector<2x8x32xf32>
    %14 = vector.shape_cast %13 : vector<2x8x32xf32> to vector<16x32xf32>
    %c0_i32_10 = arith.constant 0 : i32
    %c2_i32_11 = arith.constant 2 : i32
    %15 = arith.addi %c0_i32_10, %c2_i32_11 : i32
    %c1_i32_12 = arith.constant 1 : i32
    %16 = scf.for %arg35 = %c0_i32_10 to %15 step %c1_i32_12 iter_args(%arg36 = %14) -> (vector<16x32xf32>)  : i32 {
      %19 = arith.index_cast %arg35 : i32 to index
      %c0_17 = arith.constant 0 : index
      %c0_18 = arith.constant 0 : index
      %20 = vector.load %arg16[%19, %c0_17, %c0_18] : memref<2x32x96xbf16, #tpu.memory_space<vmem>>, vector<1x32x96xbf16>
      %21 = vector.shape_cast %20 : vector<1x32x96xbf16> to vector<32x96xbf16>
      %22 = arith.index_cast %arg35 : i32 to index
      %c0_19 = arith.constant 0 : index
      %c0_20 = arith.constant 0 : index
      %23 = vector.load %arg17[%22, %c0_19, %c0_20] : memref<2x1x96xf32, #tpu.memory_space<vmem>>, vector<1x1x96xf32>
      %24 = vector.shape_cast %23 : vector<1x1x96xf32> to vector<1x96xf32>
      %25 = arith.truncf %arg36 : vector<16x32xf32> to vector<16x32xbf16>
      %cst = arith.constant dense<0.000000e+00> : vector<16x96xf32>
      %26 = tpu.matmul %25, %21, %cst {dimension_numbers = #tpu.dot_dimension_numbers<[1], [0], [0], [1], [0, 0, 1, 1], [], []>} : vector<16x32xbf16>, vector<32x96xbf16>, vector<16x96xf32> -> vector<16x96xf32>
      %27 = vector.broadcast %24 : vector<1x96xf32> to vector<16x96xf32>
      %28 = arith.addf %26, %27 : vector<16x96xf32>
      %29 = vector.extract_strided_slice %28 {offsets = [0, 0], sizes = [16, 32], strides = [1, 1]} : vector<16x96xf32> to vector<16x32xf32>
      %30 = vector.extract_strided_slice %28 {offsets = [0, 32], sizes = [16, 32], strides = [1, 1]} : vector<16x96xf32> to vector<16x32xf32>
      %31 = vector.extract_strided_slice %28 {offsets = [0, 64], sizes = [16, 32], strides = [1, 1]} : vector<16x96xf32> to vector<16x32xf32>
      %32 = arith.index_cast %arg35 : i32 to index
      %c0_21 = arith.constant 0 : index
      %c0_22 = arith.constant 0 : index
      %c0_23 = arith.constant 0 : index
      %33 = vector.load %arg18[%32, %c0_21, %c0_22, %c0_23] : memref<2x4x8x32xbf16, #tpu.memory_space<vmem>>, vector<1x4x8x32xbf16>
      %34 = vector.shape_cast %33 : vector<1x4x8x32xbf16> to vector<4x8x32xbf16>
      %35 = arith.index_cast %arg35 : i32 to index
      %c0_24 = arith.constant 0 : index
      %c0_25 = arith.constant 0 : index
      %36 = vector.load %arg19[%35, %c0_24, %c0_25] : memref<2x1x32xf32, #tpu.memory_space<vmem>>, vector<1x1x32xf32>
      %37 = vector.shape_cast %36 : vector<1x1x32xf32> to vector<1x32xf32>
      %38 = arith.truncf %29 : vector<16x32xf32> to vector<16x32xbf16>
      %39 = vector.shape_cast %38 : vector<16x32xbf16> to vector<2x8x32xbf16>
      %40 = vector.extract_strided_slice %39 {offsets = [0, 0, 0], sizes = [2, 8, 8], strides = [1, 1, 1]} : vector<2x8x32xbf16> to vector<2x8x8xbf16>
      %41 = vector.extract_strided_slice %39 {offsets = [0, 0, 8], sizes = [2, 8, 8], strides = [1, 1, 1]} : vector<2x8x32xbf16> to vector<2x8x8xbf16>
      %42 = vector.extract_strided_slice %39 {offsets = [0, 0, 16], sizes = [2, 8, 8], strides = [1, 1, 1]} : vector<2x8x32xbf16> to vector<2x8x8xbf16>
      %43 = vector.extract_strided_slice %39 {offsets = [0, 0, 24], sizes = [2, 8, 8], strides = [1, 1, 1]} : vector<2x8x32xbf16> to vector<2x8x8xbf16>
      %44 = vector.shape_cast %40 : vector<2x8x8xbf16> to vector<1x2x8x8xbf16>
      %45 = vector.shape_cast %41 : vector<2x8x8xbf16> to vector<1x2x8x8xbf16>
      %46 = vector.shape_cast %42 : vector<2x8x8xbf16> to vector<1x2x8x8xbf16>
      %47 = vector.shape_cast %43 : vector<2x8x8xbf16> to vector<1x2x8x8xbf16>
      %48 = tpu.concatenate %44, %45, %46, %47 in 0 : vector<1x2x8x8xbf16>, vector<1x2x8x8xbf16>, vector<1x2x8x8xbf16>, vector<1x2x8x8xbf16> -> vector<4x2x8x8xbf16>
      %49 = vector.shape_cast %48 : vector<4x2x8x8xbf16> to vector<8x8x8xbf16>
      %50 = arith.truncf %30 : vector<16x32xf32> to vector<16x32xbf16>
      %51 = vector.shape_cast %50 : vector<16x32xbf16> to vector<2x8x32xbf16>
      %52 = vector.extract_strided_slice %51 {offsets = [0, 0, 0], sizes = [2, 8, 8], strides = [1, 1, 1]} : vector<2x8x32xbf16> to vector<2x8x8xbf16>
      %53 = vector.extract_strided_slice %51 {offsets = [0, 0, 8], sizes = [2, 8, 8], strides = [1, 1, 1]} : vector<2x8x32xbf16> to vector<2x8x8xbf16>
      %54 = vector.extract_strided_slice %51 {offsets = [0, 0, 16], sizes = [2, 8, 8], strides = [1, 1, 1]} : vector<2x8x32xbf16> to vector<2x8x8xbf16>
      %55 = vector.extract_strided_slice %51 {offsets = [0, 0, 24], sizes = [2, 8, 8], strides = [1, 1, 1]} : vector<2x8x32xbf16> to vector<2x8x8xbf16>
      %56 = vector.shape_cast %52 : vector<2x8x8xbf16> to vector<1x2x8x8xbf16>
      %57 = vector.shape_cast %53 : vector<2x8x8xbf16> to vector<1x2x8x8xbf16>
      %58 = vector.shape_cast %54 : vector<2x8x8xbf16> to vector<1x2x8x8xbf16>
      %59 = vector.shape_cast %55 : vector<2x8x8xbf16> to vector<1x2x8x8xbf16>
      %60 = tpu.concatenate %56, %57, %58, %59 in 0 : vector<1x2x8x8xbf16>, vector<1x2x8x8xbf16>, vector<1x2x8x8xbf16>, vector<1x2x8x8xbf16> -> vector<4x2x8x8xbf16>
      %61 = vector.shape_cast %60 : vector<4x2x8x8xbf16> to vector<8x8x8xbf16>
      %62 = arith.truncf %31 : vector<16x32xf32> to vector<16x32xbf16>
      %63 = vector.shape_cast %62 : vector<16x32xbf16> to vector<2x8x32xbf16>
      %64 = vector.extract_strided_slice %63 {offsets = [0, 0, 0], sizes = [2, 8, 8], strides = [1, 1, 1]} : vector<2x8x32xbf16> to vector<2x8x8xbf16>
      %65 = vector.extract_strided_slice %63 {offsets = [0, 0, 8], sizes = [2, 8, 8], strides = [1, 1, 1]} : vector<2x8x32xbf16> to vector<2x8x8xbf16>
      %66 = vector.extract_strided_slice %63 {offsets = [0, 0, 16], sizes = [2, 8, 8], strides = [1, 1, 1]} : vector<2x8x32xbf16> to vector<2x8x8xbf16>
      %67 = vector.extract_strided_slice %63 {offsets = [0, 0, 24], sizes = [2, 8, 8], strides = [1, 1, 1]} : vector<2x8x32xbf16> to vector<2x8x8xbf16>
      %68 = vector.shape_cast %64 : vector<2x8x8xbf16> to vector<1x2x8x8xbf16>
      %69 = vector.shape_cast %65 : vector<2x8x8xbf16> to vector<1x2x8x8xbf16>
      %70 = vector.shape_cast %66 : vector<2x8x8xbf16> to vector<1x2x8x8xbf16>
      %71 = vector.shape_cast %67 : vector<2x8x8xbf16> to vector<1x2x8x8xbf16>
      %72 = tpu.concatenate %68, %69, %70, %71 in 0 : vector<1x2x8x8xbf16>, vector<1x2x8x8xbf16>, vector<1x2x8x8xbf16>, vector<1x2x8x8xbf16> -> vector<4x2x8x8xbf16>
      %73 = vector.shape_cast %72 : vector<4x2x8x8xbf16> to vector<8x8x8xbf16>
      %cst_26 = arith.constant dense<0.000000e+00> : vector<8x8x8xf32>
      %74 = tpu.matmul %49, %61, %cst_26 {dimension_numbers = #tpu.dot_dimension_numbers<[2], [2], [1], [1], [0, 0, 0, 1, 1, 1], [0], [0]>} : vector<8x8x8xbf16>, vector<8x8x8xbf16>, vector<8x8x8xf32> -> vector<8x8x8xf32>
      %cst_27 = arith.constant dense<0xFF800000> : vector<8x8xf32>
      %75 = vector.multi_reduction <maximumf>, %74, %cst_27 [2] : vector<8x8x8xf32> to vector<8x8xf32>
      %76 = vector.shape_cast %75 : vector<8x8xf32> to vector<8x8x1xf32>
      %77 = vector.broadcast %76 : vector<8x8x1xf32> to vector<8x8x8xf32>
      %78 = arith.subf %74, %77 : vector<8x8x8xf32>
      %79 = math.exp %78 : vector<8x8x8xf32>
      %cst_28 = arith.constant dense<0.000000e+00> : vector<8x8xf32>
      %80 = vector.multi_reduction <add>, %79, %cst_28 [2] : vector<8x8x8xf32> to vector<8x8xf32>
      %81 = vector.shape_cast %80 : vector<8x8xf32> to vector<8x8x1xf32>
      %82 = tpu.reciprocal %81 {approx = true} : vector<8x8x1xf32> -> vector<8x8x1xf32>
      %83 = vector.broadcast %82 : vector<8x8x1xf32> to vector<8x8x8xf32>
      %84 = arith.mulf %79, %83 : vector<8x8x8xf32>
      %85 = arith.truncf %84 : vector<8x8x8xf32> to vector<8x8x8xbf16>
      %cst_29 = arith.constant dense<0.000000e+00> : vector<8x8x8xf32>
      %86 = tpu.matmul %85, %73, %cst_29 {dimension_numbers = #tpu.dot_dimension_numbers<[2], [1], [1], [2], [0, 0, 0, 1, 1, 2], [0], [0]>} : vector<8x8x8xbf16>, vector<8x8x8xbf16>, vector<8x8x8xf32> -> vector<8x8x8xf32>
      %87 = vector.shape_cast %86 : vector<8x8x8xf32> to vector<4x16x8xf32>
      %88 = arith.truncf %87 : vector<4x16x8xf32> to vector<4x16x8xbf16>
      %cst_30 = arith.constant dense<0.000000e+00> : vector<4x16x32xf32>
      %89 = tpu.matmul %88, %34, %cst_30 {dimension_numbers = #tpu.dot_dimension_numbers<[2], [1], [1], [2], [0, 0, 0, 1, 1, 2], [0], [0]>} : vector<4x16x8xbf16>, vector<4x8x32xbf16>, vector<4x16x32xf32> -> vector<4x16x32xf32>
      %cst_31 = arith.constant dense<0.000000e+00> : vector<16x32xf32>
      %90 = vector.multi_reduction <add>, %89, %cst_31 [0] : vector<4x16x32xf32> to vector<16x32xf32>
      %91 = vector.broadcast %37 : vector<1x32xf32> to vector<16x32xf32>
      %92 = arith.addf %90, %91 : vector<16x32xf32>
      %93 = arith.addf %arg36, %92 : vector<16x32xf32>
      %94 = arith.index_cast %arg35 : i32 to index
      %c0_32 = arith.constant 0 : index
      %c0_33 = arith.constant 0 : index
      %95 = vector.load %arg28[%94, %c0_32, %c0_33] : memref<2x1x32xf32, #tpu.memory_space<vmem>>, vector<1x1x32xf32>
      %96 = vector.shape_cast %95 : vector<1x1x32xf32> to vector<1x32xf32>
      %97 = arith.index_cast %arg35 : i32 to index
      %c0_34 = arith.constant 0 : index
      %c0_35 = arith.constant 0 : index
      %98 = vector.load %arg29[%97, %c0_34, %c0_35] : memref<2x1x32xf32, #tpu.memory_space<vmem>>, vector<1x1x32xf32>
      %99 = vector.shape_cast %98 : vector<1x1x32xf32> to vector<1x32xf32>
      %cst_36 = arith.constant dense<0.000000e+00> : vector<16xf32>
      %100 = vector.multi_reduction <add>, %93, %cst_36 [1] : vector<16x32xf32> to vector<16xf32>
      %101 = vector.shape_cast %100 : vector<16xf32> to vector<16x1xf32>
      %cst_37 = arith.constant 3.200000e+01 : f32
      %102 = vector.broadcast %cst_37 : f32 to vector<16x1xf32>
      %103 = arith.divf %101, %102 : vector<16x1xf32>
      %104 = vector.broadcast %103 : vector<16x1xf32> to vector<16x32xf32>
      %105 = arith.subf %93, %104 : vector<16x32xf32>
      %106 = arith.mulf %105, %105 : vector<16x32xf32>
      %cst_38 = arith.constant dense<0.000000e+00> : vector<16xf32>
      %107 = vector.multi_reduction <add>, %106, %cst_38 [1] : vector<16x32xf32> to vector<16xf32>
      %108 = vector.shape_cast %107 : vector<16xf32> to vector<16x1xf32>
      %cst_39 = arith.constant 3.200000e+01 : f32
      %109 = vector.broadcast %cst_39 : f32 to vector<16x1xf32>
      %110 = arith.divf %108, %109 : vector<16x1xf32>
      %cst_40 = arith.constant 9.99999974E-6 : f32
      %111 = vector.broadcast %cst_40 : f32 to vector<16x1xf32>
      %112 = arith.addf %110, %111 : vector<16x1xf32>
      %113 = math.rsqrt %112 : vector<16x1xf32>
      %114 = vector.broadcast %113 : vector<16x1xf32> to vector<16x32xf32>
      %115 = arith.mulf %105, %114 : vector<16x32xf32>
      %116 = vector.broadcast %96 : vector<1x32xf32> to vector<16x32xf32>
      %117 = arith.mulf %115, %116 : vector<16x32xf32>
      %118 = vector.broadcast %99 : vector<1x32xf32> to vector<16x32xf32>
      %119 = arith.addf %117, %118 : vector<16x32xf32>
      %120 = arith.index_cast %arg35 : i32 to index
      %c0_41 = arith.constant 0 : index
      %c0_42 = arith.constant 0 : index
      %121 = vector.load %arg20[%120, %c0_41, %c0_42] : memref<2x32x96xbf16, #tpu.memory_space<vmem>>, vector<1x32x96xbf16>
      %122 = vector.shape_cast %121 : vector<1x32x96xbf16> to vector<32x96xbf16>
      %123 = arith.index_cast %arg35 : i32 to index
      %c0_43 = arith.constant 0 : index
      %c0_44 = arith.constant 0 : index
      %124 = vector.load %arg21[%123, %c0_43, %c0_44] : memref<2x1x96xf32, #tpu.memory_space<vmem>>, vector<1x1x96xf32>
      %125 = vector.shape_cast %124 : vector<1x1x96xf32> to vector<1x96xf32>
      %126 = arith.truncf %119 : vector<16x32xf32> to vector<16x32xbf16>
      %127 = vector.extract_strided_slice %122 {offsets = [0, 0], sizes = [32, 32], strides = [1, 1]} : vector<32x96xbf16> to vector<32x32xbf16>
      %cst_45 = arith.constant dense<0.000000e+00> : vector<16x32xf32>
      %128 = tpu.matmul %126, %127, %cst_45 {dimension_numbers = #tpu.dot_dimension_numbers<[1], [0], [0], [1], [0, 0, 1, 1], [], []>} : vector<16x32xbf16>, vector<32x32xbf16>, vector<16x32xf32> -> vector<16x32xf32>
      %129 = vector.extract_strided_slice %125 {offsets = [0, 0], sizes = [1, 32], strides = [1, 1]} : vector<1x96xf32> to vector<1x32xf32>
      %130 = vector.broadcast %129 : vector<1x32xf32> to vector<16x32xf32>
      %131 = arith.addf %128, %130 : vector<16x32xf32>
      %132 = vector.extract_strided_slice %122 {offsets = [0, 32], sizes = [32, 64], strides = [1, 1]} : vector<32x96xbf16> to vector<32x64xbf16>
      %cst_46 = arith.constant dense<0.000000e+00> : vector<32x64xf32>
      %133 = tpu.matmul %8, %132, %cst_46 {dimension_numbers = #tpu.dot_dimension_numbers<[1], [0], [0], [1], [0, 0, 1, 1], [], []>} : vector<32x32xbf16>, vector<32x64xbf16>, vector<32x64xf32> -> vector<32x64xf32>
      %134 = vector.extract_strided_slice %125 {offsets = [0, 32], sizes = [1, 64], strides = [1, 1]} : vector<1x96xf32> to vector<1x64xf32>
      %135 = vector.broadcast %134 : vector<1x64xf32> to vector<32x64xf32>
      %136 = arith.addf %133, %135 : vector<32x64xf32>
      %137 = vector.extract_strided_slice %136 {offsets = [0, 0], sizes = [32, 32], strides = [1, 1]} : vector<32x64xf32> to vector<32x32xf32>
      %138 = vector.extract_strided_slice %136 {offsets = [0, 32], sizes = [32, 32], strides = [1, 1]} : vector<32x64xf32> to vector<32x32xf32>
      %139 = arith.index_cast %arg35 : i32 to index
      %c0_47 = arith.constant 0 : index
      %c0_48 = arith.constant 0 : index
      %c0_49 = arith.constant 0 : index
      %140 = vector.load %arg22[%139, %c0_47, %c0_48, %c0_49] : memref<2x4x8x32xbf16, #tpu.memory_space<vmem>>, vector<1x4x8x32xbf16>
      %141 = vector.shape_cast %140 : vector<1x4x8x32xbf16> to vector<4x8x32xbf16>
      %142 = arith.index_cast %arg35 : i32 to index
      %c0_50 = arith.constant 0 : index
      %c0_51 = arith.constant 0 : index
      %143 = vector.load %arg23[%142, %c0_50, %c0_51] : memref<2x1x32xf32, #tpu.memory_space<vmem>>, vector<1x1x32xf32>
      %144 = vector.shape_cast %143 : vector<1x1x32xf32> to vector<1x32xf32>
      %145 = arith.truncf %131 : vector<16x32xf32> to vector<16x32xbf16>
      %146 = vector.shape_cast %145 : vector<16x32xbf16> to vector<2x8x32xbf16>
      %147 = vector.extract_strided_slice %146 {offsets = [0, 0, 0], sizes = [2, 8, 8], strides = [1, 1, 1]} : vector<2x8x32xbf16> to vector<2x8x8xbf16>
      %148 = vector.extract_strided_slice %146 {offsets = [0, 0, 8], sizes = [2, 8, 8], strides = [1, 1, 1]} : vector<2x8x32xbf16> to vector<2x8x8xbf16>
      %149 = vector.extract_strided_slice %146 {offsets = [0, 0, 16], sizes = [2, 8, 8], strides = [1, 1, 1]} : vector<2x8x32xbf16> to vector<2x8x8xbf16>
      %150 = vector.extract_strided_slice %146 {offsets = [0, 0, 24], sizes = [2, 8, 8], strides = [1, 1, 1]} : vector<2x8x32xbf16> to vector<2x8x8xbf16>
      %151 = vector.shape_cast %147 : vector<2x8x8xbf16> to vector<1x2x8x8xbf16>
      %152 = vector.shape_cast %148 : vector<2x8x8xbf16> to vector<1x2x8x8xbf16>
      %153 = vector.shape_cast %149 : vector<2x8x8xbf16> to vector<1x2x8x8xbf16>
      %154 = vector.shape_cast %150 : vector<2x8x8xbf16> to vector<1x2x8x8xbf16>
      %155 = tpu.concatenate %151, %152, %153, %154 in 0 : vector<1x2x8x8xbf16>, vector<1x2x8x8xbf16>, vector<1x2x8x8xbf16>, vector<1x2x8x8xbf16> -> vector<4x2x8x8xbf16>
      %156 = vector.shape_cast %155 : vector<4x2x8x8xbf16> to vector<8x8x8xbf16>
      %157 = arith.truncf %137 : vector<32x32xf32> to vector<32x32xbf16>
      %158 = vector.shape_cast %157 : vector<32x32xbf16> to vector<2x16x32xbf16>
      %159 = vector.extract_strided_slice %158 {offsets = [0, 0, 0], sizes = [2, 16, 8], strides = [1, 1, 1]} : vector<2x16x32xbf16> to vector<2x16x8xbf16>
      %160 = vector.extract_strided_slice %158 {offsets = [0, 0, 8], sizes = [2, 16, 8], strides = [1, 1, 1]} : vector<2x16x32xbf16> to vector<2x16x8xbf16>
      %161 = vector.extract_strided_slice %158 {offsets = [0, 0, 16], sizes = [2, 16, 8], strides = [1, 1, 1]} : vector<2x16x32xbf16> to vector<2x16x8xbf16>
      %162 = vector.extract_strided_slice %158 {offsets = [0, 0, 24], sizes = [2, 16, 8], strides = [1, 1, 1]} : vector<2x16x32xbf16> to vector<2x16x8xbf16>
      %163 = vector.shape_cast %159 : vector<2x16x8xbf16> to vector<1x2x16x8xbf16>
      %164 = vector.shape_cast %160 : vector<2x16x8xbf16> to vector<1x2x16x8xbf16>
      %165 = vector.shape_cast %161 : vector<2x16x8xbf16> to vector<1x2x16x8xbf16>
      %166 = vector.shape_cast %162 : vector<2x16x8xbf16> to vector<1x2x16x8xbf16>
      %167 = tpu.concatenate %163, %164, %165, %166 in 0 : vector<1x2x16x8xbf16>, vector<1x2x16x8xbf16>, vector<1x2x16x8xbf16>, vector<1x2x16x8xbf16> -> vector<4x2x16x8xbf16>
      %168 = vector.shape_cast %167 : vector<4x2x16x8xbf16> to vector<8x16x8xbf16>
      %169 = arith.truncf %138 : vector<32x32xf32> to vector<32x32xbf16>
      %170 = vector.shape_cast %169 : vector<32x32xbf16> to vector<2x16x32xbf16>
      %171 = vector.extract_strided_slice %170 {offsets = [0, 0, 0], sizes = [2, 16, 8], strides = [1, 1, 1]} : vector<2x16x32xbf16> to vector<2x16x8xbf16>
      %172 = vector.extract_strided_slice %170 {offsets = [0, 0, 8], sizes = [2, 16, 8], strides = [1, 1, 1]} : vector<2x16x32xbf16> to vector<2x16x8xbf16>
      %173 = vector.extract_strided_slice %170 {offsets = [0, 0, 16], sizes = [2, 16, 8], strides = [1, 1, 1]} : vector<2x16x32xbf16> to vector<2x16x8xbf16>
      %174 = vector.extract_strided_slice %170 {offsets = [0, 0, 24], sizes = [2, 16, 8], strides = [1, 1, 1]} : vector<2x16x32xbf16> to vector<2x16x8xbf16>
      %175 = vector.shape_cast %171 : vector<2x16x8xbf16> to vector<1x2x16x8xbf16>
      %176 = vector.shape_cast %172 : vector<2x16x8xbf16> to vector<1x2x16x8xbf16>
      %177 = vector.shape_cast %173 : vector<2x16x8xbf16> to vector<1x2x16x8xbf16>
      %178 = vector.shape_cast %174 : vector<2x16x8xbf16> to vector<1x2x16x8xbf16>
      %179 = tpu.concatenate %175, %176, %177, %178 in 0 : vector<1x2x16x8xbf16>, vector<1x2x16x8xbf16>, vector<1x2x16x8xbf16>, vector<1x2x16x8xbf16> -> vector<4x2x16x8xbf16>
      %180 = vector.shape_cast %179 : vector<4x2x16x8xbf16> to vector<8x16x8xbf16>
      %cst_52 = arith.constant dense<0.000000e+00> : vector<8x8x16xf32>
      %181 = tpu.matmul %156, %168, %cst_52 {dimension_numbers = #tpu.dot_dimension_numbers<[2], [2], [1], [1], [0, 0, 0, 1, 1, 1], [0], [0]>} : vector<8x8x8xbf16>, vector<8x16x8xbf16>, vector<8x8x16xf32> -> vector<8x8x16xf32>
      %cst_53 = arith.constant dense<0xFF800000> : vector<8x8xf32>
      %182 = vector.multi_reduction <maximumf>, %181, %cst_53 [2] : vector<8x8x16xf32> to vector<8x8xf32>
      %183 = vector.shape_cast %182 : vector<8x8xf32> to vector<8x8x1xf32>
      %184 = vector.broadcast %183 : vector<8x8x1xf32> to vector<8x8x16xf32>
      %185 = arith.subf %181, %184 : vector<8x8x16xf32>
      %186 = math.exp %185 : vector<8x8x16xf32>
      %cst_54 = arith.constant dense<0.000000e+00> : vector<8x8xf32>
      %187 = vector.multi_reduction <add>, %186, %cst_54 [2] : vector<8x8x16xf32> to vector<8x8xf32>
      %188 = vector.shape_cast %187 : vector<8x8xf32> to vector<8x8x1xf32>
      %189 = tpu.reciprocal %188 {approx = true} : vector<8x8x1xf32> -> vector<8x8x1xf32>
      %190 = vector.broadcast %189 : vector<8x8x1xf32> to vector<8x8x16xf32>
      %191 = arith.mulf %186, %190 : vector<8x8x16xf32>
      %192 = arith.truncf %191 : vector<8x8x16xf32> to vector<8x8x16xbf16>
      %cst_55 = arith.constant dense<0.000000e+00> : vector<8x8x8xf32>
      %193 = tpu.matmul %192, %180, %cst_55 {dimension_numbers = #tpu.dot_dimension_numbers<[2], [1], [1], [2], [0, 0, 0, 1, 1, 2], [0], [0]>} : vector<8x8x16xbf16>, vector<8x16x8xbf16>, vector<8x8x8xf32> -> vector<8x8x8xf32>
      %194 = vector.shape_cast %193 : vector<8x8x8xf32> to vector<4x16x8xf32>
      %195 = arith.truncf %194 : vector<4x16x8xf32> to vector<4x16x8xbf16>
      %cst_56 = arith.constant dense<0.000000e+00> : vector<4x16x32xf32>
      %196 = tpu.matmul %195, %141, %cst_56 {dimension_numbers = #tpu.dot_dimension_numbers<[2], [1], [1], [2], [0, 0, 0, 1, 1, 2], [0], [0]>} : vector<4x16x8xbf16>, vector<4x8x32xbf16>, vector<4x16x32xf32> -> vector<4x16x32xf32>
      %cst_57 = arith.constant dense<0.000000e+00> : vector<16x32xf32>
      %197 = vector.multi_reduction <add>, %196, %cst_57 [0] : vector<4x16x32xf32> to vector<16x32xf32>
      %198 = vector.broadcast %144 : vector<1x32xf32> to vector<16x32xf32>
      %199 = arith.addf %197, %198 : vector<16x32xf32>
      %200 = arith.addf %119, %199 : vector<16x32xf32>
      %201 = arith.index_cast %arg35 : i32 to index
      %c0_58 = arith.constant 0 : index
      %c0_59 = arith.constant 0 : index
      %202 = vector.load %arg30[%201, %c0_58, %c0_59] : memref<2x1x32xf32, #tpu.memory_space<vmem>>, vector<1x1x32xf32>
      %203 = vector.shape_cast %202 : vector<1x1x32xf32> to vector<1x32xf32>
      %204 = arith.index_cast %arg35 : i32 to index
      %c0_60 = arith.constant 0 : index
      %c0_61 = arith.constant 0 : index
      %205 = vector.load %arg31[%204, %c0_60, %c0_61] : memref<2x1x32xf32, #tpu.memory_space<vmem>>, vector<1x1x32xf32>
      %206 = vector.shape_cast %205 : vector<1x1x32xf32> to vector<1x32xf32>
      %cst_62 = arith.constant dense<0.000000e+00> : vector<16xf32>
      %207 = vector.multi_reduction <add>, %200, %cst_62 [1] : vector<16x32xf32> to vector<16xf32>
      %208 = vector.shape_cast %207 : vector<16xf32> to vector<16x1xf32>
      %cst_63 = arith.constant 3.200000e+01 : f32
      %209 = vector.broadcast %cst_63 : f32 to vector<16x1xf32>
      %210 = arith.divf %208, %209 : vector<16x1xf32>
      %211 = vector.broadcast %210 : vector<16x1xf32> to vector<16x32xf32>
      %212 = arith.subf %200, %211 : vector<16x32xf32>
      %213 = arith.mulf %212, %212 : vector<16x32xf32>
      %cst_64 = arith.constant dense<0.000000e+00> : vector<16xf32>
      %214 = vector.multi_reduction <add>, %213, %cst_64 [1] : vector<16x32xf32> to vector<16xf32>
      %215 = vector.shape_cast %214 : vector<16xf32> to vector<16x1xf32>
      %cst_65 = arith.constant 3.200000e+01 : f32
      %216 = vector.broadcast %cst_65 : f32 to vector<16x1xf32>
      %217 = arith.divf %215, %216 : vector<16x1xf32>
      %cst_66 = arith.constant 9.99999974E-6 : f32
      %218 = vector.broadcast %cst_66 : f32 to vector<16x1xf32>
      %219 = arith.addf %217, %218 : vector<16x1xf32>
      %220 = math.rsqrt %219 : vector<16x1xf32>
      %221 = vector.broadcast %220 : vector<16x1xf32> to vector<16x32xf32>
      %222 = arith.mulf %212, %221 : vector<16x32xf32>
      %223 = vector.broadcast %203 : vector<1x32xf32> to vector<16x32xf32>
      %224 = arith.mulf %222, %223 : vector<16x32xf32>
      %225 = vector.broadcast %206 : vector<1x32xf32> to vector<16x32xf32>
      %226 = arith.addf %224, %225 : vector<16x32xf32>
      %227 = arith.index_cast %arg35 : i32 to index
      %c0_67 = arith.constant 0 : index
      %c0_68 = arith.constant 0 : index
      %228 = vector.load %arg24[%227, %c0_67, %c0_68] : memref<2x32x64xbf16, #tpu.memory_space<vmem>>, vector<1x32x64xbf16>
      %229 = vector.shape_cast %228 : vector<1x32x64xbf16> to vector<32x64xbf16>
      %230 = arith.index_cast %arg35 : i32 to index
      %c0_69 = arith.constant 0 : index
      %c0_70 = arith.constant 0 : index
      %231 = vector.load %arg25[%230, %c0_69, %c0_70] : memref<2x1x64xf32, #tpu.memory_space<vmem>>, vector<1x1x64xf32>
      %232 = vector.shape_cast %231 : vector<1x1x64xf32> to vector<1x64xf32>
      %233 = arith.truncf %226 : vector<16x32xf32> to vector<16x32xbf16>
      %cst_71 = arith.constant dense<0.000000e+00> : vector<16x64xf32>
      %234 = tpu.matmul %233, %229, %cst_71 {dimension_numbers = #tpu.dot_dimension_numbers<[1], [0], [0], [1], [0, 0, 1, 1], [], []>} : vector<16x32xbf16>, vector<32x64xbf16>, vector<16x64xf32> -> vector<16x64xf32>
      %235 = vector.broadcast %232 : vector<1x64xf32> to vector<16x64xf32>
      %236 = arith.addf %234, %235 : vector<16x64xf32>
      %cst_72 = arith.constant 0.000000e+00 : f32
      %237 = vector.broadcast %cst_72 : f32 to vector<16x64xf32>
      %238 = arith.maximumf %236, %237 : vector<16x64xf32>
      %239 = arith.index_cast %arg35 : i32 to index
      %c0_73 = arith.constant 0 : index
      %c0_74 = arith.constant 0 : index
      %240 = vector.load %arg26[%239, %c0_73, %c0_74] : memref<2x64x32xbf16, #tpu.memory_space<vmem>>, vector<1x64x32xbf16>
      %241 = vector.shape_cast %240 : vector<1x64x32xbf16> to vector<64x32xbf16>
      %242 = arith.index_cast %arg35 : i32 to index
      %c0_75 = arith.constant 0 : index
      %c0_76 = arith.constant 0 : index
      %243 = vector.load %arg27[%242, %c0_75, %c0_76] : memref<2x1x32xf32, #tpu.memory_space<vmem>>, vector<1x1x32xf32>
      %244 = vector.shape_cast %243 : vector<1x1x32xf32> to vector<1x32xf32>
      %245 = arith.truncf %238 : vector<16x64xf32> to vector<16x64xbf16>
      %cst_77 = arith.constant dense<0.000000e+00> : vector<16x32xf32>
      %246 = tpu.matmul %245, %241, %cst_77 {dimension_numbers = #tpu.dot_dimension_numbers<[1], [0], [0], [1], [0, 0, 1, 1], [], []>} : vector<16x64xbf16>, vector<64x32xbf16>, vector<16x32xf32> -> vector<16x32xf32>
      %247 = vector.broadcast %244 : vector<1x32xf32> to vector<16x32xf32>
      %248 = arith.addf %246, %247 : vector<16x32xf32>
      %249 = arith.addf %226, %248 : vector<16x32xf32>
      %250 = arith.index_cast %arg35 : i32 to index
      %c0_78 = arith.constant 0 : index
      %c0_79 = arith.constant 0 : index
      %251 = vector.load %arg32[%250, %c0_78, %c0_79] : memref<2x1x32xf32, #tpu.memory_space<vmem>>, vector<1x1x32xf32>
      %252 = vector.shape_cast %251 : vector<1x1x32xf32> to vector<1x32xf32>
      %253 = arith.index_cast %arg35 : i32 to index
      %c0_80 = arith.constant 0 : index
      %c0_81 = arith.constant 0 : index
      %254 = vector.load %arg33[%253, %c0_80, %c0_81] : memref<2x1x32xf32, #tpu.memory_space<vmem>>, vector<1x1x32xf32>
      %255 = vector.shape_cast %254 : vector<1x1x32xf32> to vector<1x32xf32>
      %cst_82 = arith.constant dense<0.000000e+00> : vector<16xf32>
      %256 = vector.multi_reduction <add>, %249, %cst_82 [1] : vector<16x32xf32> to vector<16xf32>
      %257 = vector.shape_cast %256 : vector<16xf32> to vector<16x1xf32>
      %cst_83 = arith.constant 3.200000e+01 : f32
      %258 = vector.broadcast %cst_83 : f32 to vector<16x1xf32>
      %259 = arith.divf %257, %258 : vector<16x1xf32>
      %260 = vector.broadcast %259 : vector<16x1xf32> to vector<16x32xf32>
      %261 = arith.subf %249, %260 : vector<16x32xf32>
      %262 = arith.mulf %261, %261 : vector<16x32xf32>
      %cst_84 = arith.constant dense<0.000000e+00> : vector<16xf32>
      %263 = vector.multi_reduction <add>, %262, %cst_84 [1] : vector<16x32xf32> to vector<16xf32>
      %264 = vector.shape_cast %263 : vector<16xf32> to vector<16x1xf32>
      %cst_85 = arith.constant 3.200000e+01 : f32
      %265 = vector.broadcast %cst_85 : f32 to vector<16x1xf32>
      %266 = arith.divf %264, %265 : vector<16x1xf32>
      %cst_86 = arith.constant 9.99999974E-6 : f32
      %267 = vector.broadcast %cst_86 : f32 to vector<16x1xf32>
      %268 = arith.addf %266, %267 : vector<16x1xf32>
      %269 = math.rsqrt %268 : vector<16x1xf32>
      %270 = vector.broadcast %269 : vector<16x1xf32> to vector<16x32xf32>
      %271 = arith.mulf %261, %270 : vector<16x32xf32>
      %272 = vector.broadcast %252 : vector<1x32xf32> to vector<16x32xf32>
      %273 = arith.mulf %271, %272 : vector<16x32xf32>
      %274 = vector.broadcast %255 : vector<1x32xf32> to vector<16x32xf32>
      %275 = arith.addf %273, %274 : vector<16x32xf32>
      scf.yield %275 : vector<16x32xf32>
    }
    %c2_i32_13 = arith.constant 2 : i32
    %17 = vector.shape_cast %16 : vector<16x32xf32> to vector<2x8x32xf32>
    %c0_14 = arith.constant 0 : index
    %c0_15 = arith.constant 0 : index
    %c0_16 = arith.constant 0 : index
    %18 = vector.load %arg34[%c0_14, %c0_15, %c0_16] : memref<2x8x32xf32, #tpu.memory_space<vmem>>, vector<2x8x32xf32>
    tpu.vector_store %arg34[%c0_14, %c0_15, %c0_16], %17 {strides = array<i32>} : memref<2x8x32xf32, #tpu.memory_space<vmem>>, vector<2x8x32xf32>,
    return
  }
}

</mosaic_0001>

<llo_original>
// kernel: transformer_model_forward.1
$region0: #{transformer_model_forward.1}
  #allocation0 [shape = 'u32[]', space=smem, size = 0x4, offset = 0x4, fixed_abs, tag = 'smem constant byte address 0x4 - core index']
  #allocation1 [shape = 'u32[144,128]{1,0:T(1,128)}', space=vmem, size = 0x12000, scoped, tag = 'internal scratch']
  %s0 = inlined_call_operand.smem [shape: u32[35], index: -1, kind: input, shape index: {}]
  %s1 = sld [smem:[%s0]]
  %s2 = scalar_lea.smem %s0, 1
  %s3 = sld [smem:[%s2]]
  %s4 = scalar_lea.smem %s0, 2
  %s5 = sld [smem:[%s4]]
  %s6 = scalar_lea.smem %s0, 3
  %s7 = sld [smem:[%s6]]
  %s8 = scalar_lea.smem %s0, 4
  %s9 = sld [smem:[%s8]]
  %s10 = scalar_lea.smem %s0, 5
  %s11 = sld [smem:[%s10]]
  %s12 = scalar_lea.smem %s0, 6
  %s13 = sld [smem:[%s12]]
  %s14 = scalar_lea.smem %s0, 7
  %s15 = sld [smem:[%s14]]
  %s16 = scalar_lea.smem %s0, 8
  %s17 = sld [smem:[%s16]]
  %s18 = scalar_lea.smem %s0, 9
  %s19 = sld [smem:[%s18]]
  %s20 = scalar_lea.smem %s0, 10
  %s21 = sld [smem:[%s20]]
  %s22 = scalar_lea.smem %s0, 11
  %s23 = sld [smem:[%s22]]
  %s24 = scalar_lea.smem %s0, 12
  %s25 = sld [smem:[%s24]]
  %s26 = scalar_lea.smem %s0, 13
  %s27 = sld [smem:[%s26]]
  %s28 = scalar_lea.smem %s0, 14
  %s29 = sld [smem:[%s28]]
  %s30 = scalar_lea.smem %s0, 15
  %s31 = sld [smem:[%s30]]
  %s32 = scalar_lea.smem %s0, 16
  %s33 = sld [smem:[%s32]]
  %s34 = scalar_lea.smem %s0, 17
  %s35 = sld [smem:[%s34]]
  %s36 = scalar_lea.smem %s0, 18
  %s37 = sld [smem:[%s36]]
  %s38 = scalar_lea.smem %s0, 19
  %s39 = sld [smem:[%s38]]
  %s40 = scalar_lea.smem %s0, 20
  %s41 = sld [smem:[%s40]]
  %s42 = scalar_lea.smem %s0, 21
  %s43 = sld [smem:[%s42]]
  %s44 = scalar_lea.smem %s0, 22
  %s45 = sld [smem:[%s44]]
  %s46 = scalar_lea.smem %s0, 23
  %s47 = sld [smem:[%s46]]
  %s48 = scalar_lea.smem %s0, 24
  %s49 = sld [smem:[%s48]]
  %s50 = scalar_lea.smem %s0, 25
  %s51 = sld [smem:[%s50]]
  %s52 = scalar_lea.smem %s0, 26
  %s53 = sld [smem:[%s52]]
  %s54 = scalar_lea.smem %s0, 27
  %s55 = sld [smem:[%s54]]
  %s56 = scalar_lea.smem %s0, 28
  %s57 = sld [smem:[%s56]]
  %s58 = scalar_lea.smem %s0, 29
  %s59 = sld [smem:[%s58]]
  %s60 = scalar_lea.smem %s0, 30
  %s61 = sld [smem:[%s60]]
  %s62 = scalar_lea.smem %s0, 31
  %s63 = sld [smem:[%s62]]
  %s64 = scalar_lea.smem %s0, 32
  %s65 = sld [smem:[%s64]]
  %s66 = scalar_lea.smem %s0, 33
  %s67 = sld [smem:[%s66]]
  %s68 = scalar_lea.smem %s0, 34
  %s69 = sld [smem:[%s68]]
  %s70 = sld [smem:[#allocation0]]
  $region220: #{transformer_model_forward.1} parent=0
    _
  %s72 = ssub.s32 1, %s70
  %s73 = scalar_select 0, %s72, %s70
  $region1: #{transformer_model_forward.1} parent=0
    #allocation2 [shape = 'u8[1024]{0}', space=vmem, size = 0x400, scoped, tag = 'input window, operand 17, single buffered']
    #allocation3 [shape = 's32[1]{0}', space=sflag, size = 0x4, scoped, tag = 'scoped memory for transformer_model_forward.1']
    #allocation4 [shape = 'u8[1024]{0}', space=vmem, size = 0x400, scoped, tag = 'input window, operand 19, single buffered']
    #allocation5 [shape = 's32[1]{0}', space=sflag, size = 0x4, scoped, tag = 'scoped memory for transformer_model_forward.1']
    #allocation6 [shape = 'u8[16384]{0}', space=vmem, size = 0x4000, scoped, tag = 'input window, operand 20, single buffered']
    #allocation7 [shape = 'u8[1024]{0}', space=vmem, size = 0x400, scoped, tag = 'input window, operand 21, single buffered']
    #allocation8 [shape = 's32[1]{0}', space=sflag, size = 0x4, scoped, tag = 'scoped memory for transformer_model_forward.1']
    #allocation9 [shape = 'u8[16384]{0}', space=vmem, size = 0x4000, scoped, tag = 'input window, operand 22, single buffered']
    #allocation10 [shape = 'u8[1024]{0}', space=vmem, size = 0x400, scoped, tag = 'input window, operand 23, single buffered']
    #allocation11 [shape = 's32[1]{0}', space=sflag, size = 0x4, scoped, tag = 'scoped memory for transformer_model_forward.1']
    #allocation12 [shape = 'u8[16384]{0}', space=vmem, size = 0x4000, scoped, tag = 'input window, operand 24, single buffered']
    #allocation13 [shape = 'u8[1024]{0}', space=vmem, size = 0x400, scoped, tag = 'input window, operand 25, single buffered']
    #allocation14 [shape = 's32[1]{0}', space=sflag, size = 0x4, scoped, tag = 'scoped memory for transformer_model_forward.1']
    #allocation15 [shape = 'u8[1024]{0}', space=vmem, size = 0x400, scoped, tag = 'input window, operand 27, single buffered']
    #allocation16 [shape = 'u8[1024]{0}', space=vmem, size = 0x400, scoped, tag = 'input window, operand 28, single buffered']
    #allocation17 [shape = 's32[1]{0}', space=sflag, size = 0x4, scoped, tag = 'scoped memory for transformer_model_forward.1']
    #allocation18 [shape = 'u8[1024]{0}', space=vmem, size = 0x400, scoped, tag = 'input window, operand 29, single buffered']
    #allocation19 [shape = 'u8[1024]{0}', space=vmem, size = 0x400, scoped, tag = 'input window, operand 30, single buffered']
    #allocation20 [shape = 's32[1]{0}', space=sflag, size = 0x4, scoped, tag = 'scoped memory for transformer_model_forward.1']
    #allocation21 [shape = 'u8[1024]{0}', space=vmem, size = 0x400, scoped, tag = 'input window, operand 31, single buffered']
    #allocation22 [shape = 'u8[1024]{0}', space=vmem, size = 0x400, scoped, tag = 'input window, operand 32, single buffered']
    #allocation23 [shape = 's32[1]{0}', space=sflag, size = 0x4, scoped, tag = 'scoped memory for transformer_model_forward.1']
    #allocation24 [shape = 'u8[1024]{0}', space=vmem, size = 0x400, scoped, tag = 'input window, operand 33, single buffered']
    %74 = vsyncpa [#allocation3], 0
    %75 = vsyncpa [#allocation5], 0
    %76 = vsyncpa [#allocation8], 0
    %77 = vsyncpa [#allocation11], 0
    %78 = vsyncpa [#allocation14], 0
    %79 = vsyncpa [#allocation17], 0
    %80 = vsyncpa [#allocation20], 0
    %81 = vsyncpa [#allocation23], 0
    // Predicated region
    $region2: #{transformer_model_forward.1} parent=1 // pred_check
      _
    $region3: #{transformer_model_forward.1} parent=1 // pred_check_branch
      %83 = sbr.rel (0) target = $region5
    $region4: #{transformer_model_forward.1} parent=1 // pred_region
      _
    $region5: #{transformer_model_forward.1} parent=1 // pred_fallthru
      _
    // Predicated region
    $region6: #{transformer_model_forward.1} parent=1 // pred_check
      _
    $region7: #{transformer_model_forward.1} parent=1 // pred_check_branch
      %85 = sbr.rel (0) target = $region9
    $region8: #{transformer_model_forward.1} parent=1 // pred_region
      _
    $region9: #{transformer_model_forward.1} parent=1 // pred_fallthru
      _
    // Predicated region
    $region10: #{transformer_model_forward.1} parent=1 // pred_check
      _
    $region11: #{transformer_model_forward.1} parent=1 // pred_check_branch
      %87 = sbr.rel (0) target = $region13
    $region12: #{transformer_model_forward.1} parent=1 // pred_region
      _
    $region13: #{transformer_model_forward.1} parent=1 // pred_fallthru
      _
    // Predicated region
    $region14: #{transformer_model_forward.1} parent=1 // pred_check
      _
    $region15: #{transformer_model_forward.1} parent=1 // pred_check_branch
      %89 = sbr.rel (0) target = $region17
    $region16: #{transformer_model_forward.1} parent=1 // pred_region
      _
    $region17: #{transformer_model_forward.1} parent=1 // pred_fallthru
      _
    // Predicated region
    $region18: #{transformer_model_forward.1} parent=1 // pred_check
      _
    $region19: #{transformer_model_forward.1} parent=1 // pred_check_branch
      %91 = sbr.rel (0) target = $region21
    $region20: #{transformer_model_forward.1} parent=1 // pred_region
      _
    $region21: #{transformer_model_forward.1} parent=1 // pred_fallthru
      _
    // Predicated region
    $region22: #{transformer_model_forward.1} parent=1 // pred_check
      _
    $region23: #{transformer_model_forward.1} parent=1 // pred_check_branch
      %93 = sbr.rel (0) target = $region25
    $region24: #{transformer_model_forward.1} parent=1 // pred_region
      _
    $region25: #{transformer_model_forward.1} parent=1 // pred_fallthru
      _
    // Predicated region
    $region26: #{transformer_model_forward.1} parent=1 // pred_check
      _
    $region27: #{transformer_model_forward.1} parent=1 // pred_check_branch
      %95 = sbr.rel (0) target = $region29
    $region28: #{transformer_model_forward.1} parent=1 // pred_region
      _
    $region29: #{transformer_model_forward.1} parent=1 // pred_fallthru
      _
    // Predicated region
    $region30: #{transformer_model_forward.1} parent=1 // pred_check
      _
    $region31: #{transformer_model_forward.1} parent=1 // pred_check_branch
      %97 = sbr.rel (0) target = $region33
    $region32: #{transformer_model_forward.1} parent=1 // pred_region
      _
    $region33: #{transformer_model_forward.1} parent=1 // pred_fallthru
      _
    // Predicated region
    $region34: #{transformer_model_forward.1} parent=1 // pred_check
      _
    $region35: #{transformer_model_forward.1} parent=1 // pred_check_branch
      %99 = sbr.rel (0) target = $region37
    $region36: #{transformer_model_forward.1} parent=1 // pred_region
      _
    $region37: #{transformer_model_forward.1} parent=1 // pred_fallthru
      _
    // Predicated region
    $region38: #{transformer_model_forward.1} parent=1 // pred_check
      _
    $region39: #{transformer_model_forward.1} parent=1 // pred_check_branch
      %101 = sbr.rel (0) target = $region41
    $region40: #{transformer_model_forward.1} parent=1 // pred_region
      _
    $region41: #{transformer_model_forward.1} parent=1 // pred_fallthru
      _
    // Predicated region
    $region42: #{transformer_model_forward.1} parent=1 // pred_check
      _
    $region43: #{transformer_model_forward.1} parent=1 // pred_check_branch
      %103 = sbr.rel (0) target = $region45
    $region44: #{transformer_model_forward.1} parent=1 // pred_region
      _
    $region45: #{transformer_model_forward.1} parent=1 // pred_fallthru
      _
    // Predicated region
    $region46: #{transformer_model_forward.1} parent=1 // pred_check
      _
    $region47: #{transformer_model_forward.1} parent=1 // pred_check_branch
      %105 = sbr.rel (0) target = $region49
    $region48: #{transformer_model_forward.1} parent=1 // pred_region
      _
    $region49: #{transformer_model_forward.1} parent=1 // pred_fallthru
      _
    // Predicated region
    $region50: #{transformer_model_forward.1} parent=1 // pred_check
      _
    $region51: #{transformer_model_forward.1} parent=1 // pred_check_branch
      %107 = sbr.rel (0) target = $region53
    $region52: #{transformer_model_forward.1} parent=1 // pred_region
      _
    $region53: #{transformer_model_forward.1} parent=1 // pred_fallthru
      _
    // Predicated region
    $region54: #{transformer_model_forward.1} parent=1 // pred_check
      _
    $region55: #{transformer_model_forward.1} parent=1 // pred_check_branch
      %109 = sbr.rel (0) target = $region57
    $region56: #{transformer_model_forward.1} parent=1 // pred_region
      _
    $region57: #{transformer_model_forward.1} parent=1 // pred_fallthru
      _
    // Predicated region
    $region58: #{transformer_model_forward.1} parent=1 // pred_check
      _
    $region59: #{transformer_model_forward.1} parent=1 // pred_check_branch
      %111 = sbr.rel (0) target = $region61
    $region60: #{transformer_model_forward.1} parent=1 // pred_region
      _
    $region61: #{transformer_model_forward.1} parent=1 // pred_fallthru
      _
    // Predicated region
    $region62: #{transformer_model_forward.1} parent=1 // pred_check
      _
    $region63: #{transformer_model_forward.1} parent=1 // pred_check_branch
      %113 = sbr.rel (0) target = $region65
    $region64: #{transformer_model_forward.1} parent=1 // pred_region
      _
    $region65: #{transformer_model_forward.1} parent=1 // pred_fallthru
      _
    // Predicated region
    $region66: #{transformer_model_forward.1} parent=1 // pred_check
      _
    $region67: #{transformer_model_forward.1} parent=1 // pred_check_branch
      %115 = sbr.rel (0) target = $region69
    $region68: #{transformer_model_forward.1} parent=1 // pred_region
      _
    $region69: #{transformer_model_forward.1} parent=1 // pred_fallthru
      _
    // Predicated region
    $region70: #{transformer_model_forward.1} parent=1 // pred_check
      _
    $region71: #{transformer_model_forward.1} parent=1 // pred_check_branch
      %117 = sbr.rel (0) target = $region73
    $region72: #{transformer_model_forward.1} parent=1 // pred_region
      %s119 = ssub.s32 32, 32
      %120 = vsyncadd [#allocation3], %s119
      %s121 = sshll.u32 [#allocation2], 4
      %s122 = int_to_ptr.vmem [resolvable:$true] %s121
      %127 = dma.hbm_to_vmem [thread:$0]  %s35, 32, %s122, [#allocation3], 16, 16, 1
    $region73: #{transformer_model_forward.1} parent=1 // pred_fallthru
      _
    // Predicated region
    $region74: #{transformer_model_forward.1} parent=1 // pred_check
      _
    $region75: #{transformer_model_forward.1} parent=1 // pred_check_branch
      %129 = sbr.rel (0) target = $region77
    $region76: #{transformer_model_forward.1} parent=1 // pred_region
      _
    $region77: #{transformer_model_forward.1} parent=1 // pred_fallthru
      _
    // Predicated region
    $region78: #{transformer_model_forward.1} parent=1 // pred_check
      _
    $region79: #{transformer_model_forward.1} parent=1 // pred_check_branch
      %131 = sbr.rel (0) target = $region81
    $region80: #{transformer_model_forward.1} parent=1 // pred_region
      %s133 = ssub.s32 32, 32
      %134 = vsyncadd [#allocation5], %s133
      %s135 = sshll.u32 [#allocation4], 4
      %s136 = int_to_ptr.vmem [resolvable:$true] %s135
      %141 = dma.hbm_to_vmem [thread:$0]  %s39, 32, %s136, [#allocation5], 16, 16, 1
    $region81: #{transformer_model_forward.1} parent=1 // pred_fallthru
      _
    // Predicated region
    $region82: #{transformer_model_forward.1} parent=1 // pred_check
      _
    $region83: #{transformer_model_forward.1} parent=1 // pred_check_branch
      %143 = sbr.rel (0) target = $region85
    $region84: #{transformer_model_forward.1} parent=1 // pred_region
      %s145 = ssub.s32 512, 512
      %146 = vsyncadd [#allocation5], %s145
      %s147 = sshll.u32 [#allocation6], 4
      %s148 = int_to_ptr.vmem [resolvable:$true] %s147
      %153 = dma.hbm_to_vmem [thread:$0]  %s41, 512, %s148, [#allocation5], 64, 64, 4
    $region85: #{transformer_model_forward.1} parent=1 // pred_fallthru
      _
    // Predicated region
    $region86: #{transformer_model_forward.1} parent=1 // pred_check
      _
    $region87: #{transformer_model_forward.1} parent=1 // pred_check_branch
      %155 = sbr.rel (0) target = $region89
    $region88: #{transformer_model_forward.1} parent=1 // pred_region
      %s157 = ssub.s32 32, 32
      %158 = vsyncadd [#allocation8], %s157
      %s159 = sshll.u32 [#allocation7], 4
      %s160 = int_to_ptr.vmem [resolvable:$true] %s159
      %165 = dma.hbm_to_vmem [thread:$0]  %s43, 32, %s160, [#allocation8], 16, 16, 1
    $region89: #{transformer_model_forward.1} parent=1 // pred_fallthru
      _
    // Predicated region
    $region90: #{transformer_model_forward.1} parent=1 // pred_check
      _
    $region91: #{transformer_model_forward.1} parent=1 // pred_check_branch
      %167 = sbr.rel (0) target = $region93
    $region92: #{transformer_model_forward.1} parent=1 // pred_region
      %s169 = ssub.s32 512, 512
      %170 = vsyncadd [#allocation8], %s169
      %s171 = sshll.u32 [#allocation9], 4
      %s172 = int_to_ptr.vmem [resolvable:$true] %s171
      %177 = dma.hbm_to_vmem [thread:$0]  %s45, 512, %s172, [#allocation8], 64, 64, 4
    $region93: #{transformer_model_forward.1} parent=1 // pred_fallthru
      _
    // Predicated region
    $region94: #{transformer_model_forward.1} parent=1 // pred_check
      _
    $region95: #{transformer_model_forward.1} parent=1 // pred_check_branch
      %179 = sbr.rel (0) target = $region97
    $region96: #{transformer_model_forward.1} parent=1 // pred_region
      %s181 = ssub.s32 32, 32
      %182 = vsyncadd [#allocation11], %s181
      %s183 = sshll.u32 [#allocation10], 4
      %s184 = int_to_ptr.vmem [resolvable:$true] %s183
      %189 = dma.hbm_to_vmem [thread:$0]  %s47, 32, %s184, [#allocation11], 16, 16, 1
    $region97: #{transformer_model_forward.1} parent=1 // pred_fallthru
      _
    // Predicated region
    $region98: #{transformer_model_forward.1} parent=1 // pred_check
      _
    $region99: #{transformer_model_forward.1} parent=1 // pred_check_branch
      %191 = sbr.rel (0) target = $region101
    $region100: #{transformer_model_forward.1} parent=1 // pred_region
      %s193 = ssub.s32 512, 512
      %194 = vsyncadd [#allocation11], %s193
      %s195 = sshll.u32 [#allocation12], 4
      %s196 = int_to_ptr.vmem [resolvable:$true] %s195
      %201 = dma.hbm_to_vmem [thread:$0]  %s49, 512, %s196, [#allocation11], 64, 64, 4
    $region101: #{transformer_model_forward.1} parent=1 // pred_fallthru
      _
    // Predicated region
    $region102: #{transformer_model_forward.1} parent=1 // pred_check
      _
    $region103: #{transformer_model_forward.1} parent=1 // pred_check_branch
      %203 = sbr.rel (0) target = $region105
    $region104: #{transformer_model_forward.1} parent=1 // pred_region
      %s205 = ssub.s32 32, 32
      %206 = vsyncadd [#allocation14], %s205
      %s207 = sshll.u32 [#allocation13], 4
      %s208 = int_to_ptr.vmem [resolvable:$true] %s207
      %213 = dma.hbm_to_vmem [thread:$0]  %s51, 32, %s208, [#allocation14], 16, 16, 1
    $region105: #{transformer_model_forward.1} parent=1 // pred_fallthru
      _
    // Predicated region
    $region106: #{transformer_model_forward.1} parent=1 // pred_check
      _
    $region107: #{transformer_model_forward.1} parent=1 // pred_check_branch
      %215 = sbr.rel (0) target = $region109
    $region108: #{transformer_model_forward.1} parent=1 // pred_region
      _
    $region109: #{transformer_model_forward.1} parent=1 // pred_fallthru
      _
    // Predicated region
    $region110: #{transformer_model_forward.1} parent=1 // pred_check
      _
    $region111: #{transformer_model_forward.1} parent=1 // pred_check_branch
      %217 = sbr.rel (0) target = $region113
    $region112: #{transformer_model_forward.1} parent=1 // pred_region
      %s219 = ssub.s32 32, 32
      %220 = vsyncadd [#allocation14], %s219
      %s221 = sshll.u32 [#allocation15], 4
      %s222 = int_to_ptr.vmem [resolvable:$true] %s221
      %227 = dma.hbm_to_vmem [thread:$0]  %s55, 32, %s222, [#allocation14], 16, 16, 1
    $region113: #{transformer_model_forward.1} parent=1 // pred_fallthru
      _
    // Predicated region
    $region114: #{transformer_model_forward.1} parent=1 // pred_check
      _
    $region115: #{transformer_model_forward.1} parent=1 // pred_check_branch
      %229 = sbr.rel (0) target = $region117
    $region116: #{transformer_model_forward.1} parent=1 // pred_region
      %s231 = ssub.s32 32, 32
      %232 = vsyncadd [#allocation17], %s231
      %s233 = sshll.u32 [#allocation16], 4
      %s234 = int_to_ptr.vmem [resolvable:$true] %s233
      %239 = dma.hbm_to_vmem [thread:$0]  %s57, 32, %s234, [#allocation17], 16, 16, 1
    $region117: #{transformer_model_forward.1} parent=1 // pred_fallthru
      _
    // Predicated region
    $region118: #{transformer_model_forward.1} parent=1 // pred_check
      _
    $region119: #{transformer_model_forward.1} parent=1 // pred_check_branch
      %241 = sbr.rel (0) target = $region121
    $region120: #{transformer_model_forward.1} parent=1 // pred_region
      %s243 = ssub.s32 32, 32
      %244 = vsyncadd [#allocation17], %s243
      %s245 = sshll.u32 [#allocation18], 4
      %s246 = int_to_ptr.vmem [resolvable:$true] %s245
      %251 = dma.hbm_to_vmem [thread:$0]  %s59, 32, %s246, [#allocation17], 16, 16, 1
    $region121: #{transformer_model_forward.1} parent=1 // pred_fallthru
      _
    // Predicated region
    $region122: #{transformer_model_forward.1} parent=1 // pred_check
      _
    $region123: #{transformer_model_forward.1} parent=1 // pred_check_branch
      %253 = sbr.rel (0) target = $region125
    $region124: #{transformer_model_forward.1} parent=1 // pred_region
      %s255 = ssub.s32 32, 32
      %256 = vsyncadd [#allocation20], %s255
      %s257 = sshll.u32 [#allocation19], 4
      %s258 = int_to_ptr.vmem [resolvable:$true] %s257
      %263 = dma.hbm_to_vmem [thread:$0]  %s61, 32, %s258, [#allocation20], 16, 16, 1
    $region125: #{transformer_model_forward.1} parent=1 // pred_fallthru
      _
    // Predicated region
    $region126: #{transformer_model_forward.1} parent=1 // pred_check
      _
    $region127: #{transformer_model_forward.1} parent=1 // pred_check_branch
      %265 = sbr.rel (0) target = $region129
    $region128: #{transformer_model_forward.1} parent=1 // pred_region
      %s267 = ssub.s32 32, 32
      %268 = vsyncadd [#allocation20], %s267
      %s269 = sshll.u32 [#allocation21], 4
      %s270 = int_to_ptr.vmem [resolvable:$true] %s269
      %275 = dma.hbm_to_vmem [thread:$0]  %s63, 32, %s270, [#allocation20], 16, 16, 1
    $region129: #{transformer_model_forward.1} parent=1 // pred_fallthru
      _
    // Predicated region
    $region130: #{transformer_model_forward.1} parent=1 // pred_check
      _
    $region131: #{transformer_model_forward.1} parent=1 // pred_check_branch
      %277 = sbr.rel (0) target = $region133
    $region132: #{transformer_model_forward.1} parent=1 // pred_region
      %s279 = ssub.s32 32, 32
      %280 = vsyncadd [#allocation23], %s279
      %s281 = sshll.u32 [#allocation22], 4
      %s282 = int_to_ptr.vmem [resolvable:$true] %s281
      %287 = dma.hbm_to_vmem [thread:$0]  %s65, 32, %s282, [#allocation23], 16, 16, 1
    $region133: #{transformer_model_forward.1} parent=1 // pred_fallthru
      _
    // Predicated region
    $region134: #{transformer_model_forward.1} parent=1 // pred_check
      _
    $region135: #{transformer_model_forward.1} parent=1 // pred_check_branch
      %289 = sbr.rel (0) target = $region137
    $region136: #{transformer_model_forward.1} parent=1 // pred_region
      %s291 = ssub.s32 32, 32
      %292 = vsyncadd [#allocation23], %s291
      %s293 = sshll.u32 [#allocation24], 4
      %s294 = int_to_ptr.vmem [resolvable:$true] %s293
      %299 = dma.hbm_to_vmem [thread:$0]  %s67, 32, %s294, [#allocation23], 16, 16, 1
    $region137: #{transformer_model_forward.1} parent=1 // pred_fallthru
      _
    // Predicated region
    $region138: #{transformer_model_forward.1} parent=1 // pred_check
      _
    $region139: #{transformer_model_forward.1} parent=1 // pred_check_branch
      %301 = sbr.rel (0) target = $region141
    $region140: #{transformer_model_forward.1} parent=1 // pred_region
      %302 = dma.done [#allocation3], 32
    $region141: #{transformer_model_forward.1} parent=1 // pred_fallthru
      _
    // Predicated region
    $region142: #{transformer_model_forward.1} parent=1 // pred_check
      _
    $region143: #{transformer_model_forward.1} parent=1 // pred_check_branch
      %304 = sbr.rel (0) target = $region145
    $region144: #{transformer_model_forward.1} parent=1 // pred_region
      %305 = dma.done [#allocation5], 32
    $region145: #{transformer_model_forward.1} parent=1 // pred_fallthru
      _
    // Predicated region
    $region146: #{transformer_model_forward.1} parent=1 // pred_check
      _
    $region147: #{transformer_model_forward.1} parent=1 // pred_check_branch
      %307 = sbr.rel (0) target = $region149
    $region148: #{transformer_model_forward.1} parent=1 // pred_region
      %308 = dma.done [#allocation5], 512
    $region149: #{transformer_model_forward.1} parent=1 // pred_fallthru
      _
    // Predicated region
    $region150: #{transformer_model_forward.1} parent=1 // pred_check
      _
    $region151: #{transformer_model_forward.1} parent=1 // pred_check_branch
      %310 = sbr.rel (0) target = $region153
    $region152: #{transformer_model_forward.1} parent=1 // pred_region
      %311 = dma.done [#allocation8], 32
    $region153: #{transformer_model_forward.1} parent=1 // pred_fallthru
      _
    // Predicated region
    $region154: #{transformer_model_forward.1} parent=1 // pred_check
      _
    $region155: #{transformer_model_forward.1} parent=1 // pred_check_branch
      %313 = sbr.rel (0) target = $region157
    $region156: #{transformer_model_forward.1} parent=1 // pred_region
      %314 = dma.done [#allocation8], 512
    $region157: #{transformer_model_forward.1} parent=1 // pred_fallthru
      _
    // Predicated region
    $region158: #{transformer_model_forward.1} parent=1 // pred_check
      _
    $region159: #{transformer_model_forward.1} parent=1 // pred_check_branch
      %316 = sbr.rel (0) target = $region161
    $region160: #{transformer_model_forward.1} parent=1 // pred_region
      %317 = dma.done [#allocation11], 32
    $region161: #{transformer_model_forward.1} parent=1 // pred_fallthru
      _
    // Predicated region
    $region162: #{transformer_model_forward.1} parent=1 // pred_check
      _
    $region163: #{transformer_model_forward.1} parent=1 // pred_check_branch
      %319 = sbr.rel (0) target = $region165
    $region164: #{transformer_model_forward.1} parent=1 // pred_region
      %320 = dma.done [#allocation11], 512
    $region165: #{transformer_model_forward.1} parent=1 // pred_fallthru
      _
    // Predicated region
    $region166: #{transformer_model_forward.1} parent=1 // pred_check
      _
    $region167: #{transformer_model_forward.1} parent=1 // pred_check_branch
      %322 = sbr.rel (0) target = $region169
    $region168: #{transformer_model_forward.1} parent=1 // pred_region
      %323 = dma.done [#allocation14], 32
    $region169: #{transformer_model_forward.1} parent=1 // pred_fallthru
      _
    // Predicated region
    $region170: #{transformer_model_forward.1} parent=1 // pred_check
      _
    $region171: #{transformer_model_forward.1} parent=1 // pred_check_branch
      %325 = sbr.rel (0) target = $region173
    $region172: #{transformer_model_forward.1} parent=1 // pred_region
      %326 = dma.done [#allocation14], 32
    $region173: #{transformer_model_forward.1} parent=1 // pred_fallthru
      _
    // Predicated region
    $region174: #{transformer_model_forward.1} parent=1 // pred_check
      _
    $region175: #{transformer_model_forward.1} parent=1 // pred_check_branch
      %328 = sbr.rel (0) target = $region177
    $region176: #{transformer_model_forward.1} parent=1 // pred_region
      %329 = dma.done [#allocation17], 32
    $region177: #{transformer_model_forward.1} parent=1 // pred_fallthru
      _
    // Predicated region
    $region178: #{transformer_model_forward.1} parent=1 // pred_check
      _
    $region179: #{transformer_model_forward.1} parent=1 // pred_check_branch
      %331 = sbr.rel (0) target = $region181
    $region180: #{transformer_model_forward.1} parent=1 // pred_region
      %332 = dma.done [#allocation17], 32
    $region181: #{transformer_model_forward.1} parent=1 // pred_fallthru
      _
    // Predicated region
    $region182: #{transformer_model_forward.1} parent=1 // pred_check
      _
    $region183: #{transformer_model_forward.1} parent=1 // pred_check_branch
      %334 = sbr.rel (0) target = $region185
    $region184: #{transformer_model_forward.1} parent=1 // pred_region
      %335 = dma.done [#allocation20], 32
    $region185: #{transformer_model_forward.1} parent=1 // pred_fallthru
      _
    // Predicated region
    $region186: #{transformer_model_forward.1} parent=1 // pred_check
      _
    $region187: #{transformer_model_forward.1} parent=1 // pred_check_branch
      %337 = sbr.rel (0) target = $region189
    $region188: #{transformer_model_forward.1} parent=1 // pred_region
      %338 = dma.done [#allocation20], 32
    $region189: #{transformer_model_forward.1} parent=1 // pred_fallthru
      _
    // Predicated region
    $region190: #{transformer_model_forward.1} parent=1 // pred_check
      _
    $region191: #{transformer_model_forward.1} parent=1 // pred_check_branch
      %340 = sbr.rel (0) target = $region193
    $region192: #{transformer_model_forward.1} parent=1 // pred_region
      %341 = dma.done [#allocation23], 32
    $region193: #{transformer_model_forward.1} parent=1 // pred_fallthru
      _
    // Predicated region
    $region194: #{transformer_model_forward.1} parent=1 // pred_check
      _
    $region195: #{transformer_model_forward.1} parent=1 // pred_check_branch
      %343 = sbr.rel (0) target = $region197
    $region196: #{transformer_model_forward.1} parent=1 // pred_region
      %344 = dma.done [#allocation23], 32
    $region197: #{transformer_model_forward.1} parent=1 // pred_fallthru
      _
    %v346 = vld [vmem:[%s1] sm:$0xff]
    %v347 = vld [vmem:[%s1 + $0x8] sm:$0xff]
    %v348 = vld [vmem:[%s1 + $0x10] sm:$0xff]
    %v349 = vld [vmem:[%s1 + $0x18] sm:$0xff]
    %v350 = vld [vmem:[%s5] sm:$0xff]
    %v351 = vld [vmem:[%s5 + $0x8] sm:$0xff]
    %v352 = vadd.f32 %v346, %v350
    %v353 = vadd.f32 %v347, %v351
    %v354 = vadd.f32 %v348, %v350
    %v355 = vadd.f32 %v349, %v351
    loop: start=0, step=1, limit=2
    $region198: #{transformer_model_forward.1} parent=1 // loop_pre_header
      _
    $region199: #{transformer_model_forward.1} parent=1 // loop_header
      %s357 = sphi 0, %s361
      %p358 = scmp.ge.s32.totalorder %s357, 2
      %v362 = vphi %v352, %v2053
      %v363 = vphi %v353, %v2054
      %v364 = vphi %v354, %v2055
      %v365 = vphi %v355, %v2056
    $region200: #{transformer_model_forward.1} parent=1 // loop_header_branch
      %360 = sbr.rel (%p358) target = $region204
    $region201: #{transformer_model_forward.1} parent=1 // loop_body
      %s366 = smul.u32 %s357, 4
      %s367 = smul.addr %s366, 4
      %s368 = scalar_lea.vmem %s9, %s367
      %v369 = vld [vmem:[%s368] sm:$0xf]
      %v370 = vld [vmem:[%s368 + $0x4] sm:$0xf]
      %v371 = vld [vmem:[%s368 + $0x8] sm:$0xf]
      %v372 = vld [vmem:[%s368 + $0xc] sm:$0xf]
      %s373 = scalar_lea.vmem %s11, %s357
      %v374 = vld [vmem:[%s373] sm:$0x1]
      %v375 = vpack.c.bf16 %v363, %v362
      %v376 = vpack.c.bf16 %v365, %v364
      %v378 = vlaneseq
      %v379 = vshrl.u32 %v378, 7
      %v380 = vsub.s32 0, %v379
      %v381 = vrot.slane %v374, %v380
      %v387 = vunpack.c.l.b16 %v369
      %v388 = vunpack.c.l.b16 %v370
      %v389 = vunpack.c.l.b16 %v371
      %v390 = vunpack.c.l.b16 %v372
      %v391 = vpack.c.b16 %v388, %v387
      %v392 = vpack.c.b16 %v390, %v389
      %vm395 = vcmask 261120
      %v397 = vsel %vm395, %v375, 0
      %v400 = vsel %vm395, %v376, 0
      %402 = vmatprep.subr.bf16.mxu0 0
      %403 = vmatpush1.bf16.msra.mxu0 %v391
      %404 = vmatprep.subr.bf16.mxu0 0
      %405 = vmatpush1.bf16.msra.mxu0 %v392
      %406 = vmatprep.subr.bf16.mxu0 0
      %407 = vmatpush1.bf16.msra.mxu0 0
      %408 = vmatprep.subr.bf16.mxu0 0
      %409 = vmatpush1.bf16.msra.mxu0 0
      %410 = vmatprep.subr.bf16.mxu0 0
      %411 = vmatpush1.bf16.msra.mxu0 0
      %412 = vmatprep.subr.bf16.mxu0 0
      %413 = vmatpush1.bf16.msra.mxu0 0
      %414 = vmatprep.subr.bf16.mxu0 0
      %415 = vmatpush1.bf16.msra.mxu0 0
      %416 = vmatprep.subr.bf16.mxu0 0
      %417 = vmatpush1.bf16.msra.mxu0 0
      %418 = vmatprep.subr.bf16.mxu0 0
      %419 = vmatpush1.bf16.msra.mxu0 0
      %420 = vmatprep.subr.bf16.mxu0 0
      %421 = vmatpush1.bf16.msra.mxu0 0
      %422 = vmatprep.subr.bf16.mxu0 0
      %423 = vmatpush1.bf16.msra.mxu0 0
      %424 = vmatprep.subr.bf16.mxu0 0
      %425 = vmatpush1.bf16.msra.mxu0 0
      %426 = vmatprep.subr.bf16.mxu0 0
      %427 = vmatpush1.bf16.msra.mxu0 0
      %428 = vmatprep.subr.bf16.mxu0 0
      %429 = vmatpush1.bf16.msra.mxu0 0
      %430 = vmatprep.subr.bf16.mxu0 0
      %431 = vmatpush1.bf16.msra.mxu0 0
      %432 = vmatprep.subr.bf16.mxu0 0
      %433 = vmatpush1.bf16.msra.mxu0 0
      %434 = vmatprep.mubr.bf16.mxu0 0
      %435 = vmatmul.mubr.bf16.gmra.mrb[0].mxu0 %v397
      %v436 = vpop.f32.mrb[0].mxu0
      %v437 = vadd.f32 %v381, %v436
      %v438 = vpop.f32.mrb[0].mxu0
      %v439 = vpop.f32.mrb[0].mxu0
      %v440 = vadd.f32 %v381, %v439
      %v441 = vpop.f32.mrb[0].mxu0
      %442 = vmatprep.mubr.bf16.mxu0 0
      %443 = vmatmul.mubr.bf16.gmra.mrb[0].mxu0 %v400
      %v444 = vpop.f32.mrb[0].mxu0
      %v445 = vadd.f32 %v381, %v444
      %v446 = vpop.f32.mrb[0].mxu0
      %v447 = vpop.f32.mrb[0].mxu0
      %v448 = vadd.f32 %v381, %v447
      %v449 = vpop.f32.mrb[0].mxu0
      %450 = vdwg.mxu0
      %s451 = smul.addr %s366, 4
      %s452 = scalar_lea.vmem %s13, %s451
      %v453 = vld [vmem:[%s452] sm:$0xf]
      %v454 = vld [vmem:[%s452 + $0x4] sm:$0xf]
      %v455 = vld [vmem:[%s452 + $0x8] sm:$0xf]
      %v456 = vld [vmem:[%s452 + $0xc] sm:$0xf]
      %s457 = scalar_lea.vmem %s15, %s357
      %v458 = vld [vmem:[%s457] sm:$0x1]
      %v459 = vpack.c.bf16 %v440, %v437
      %v460 = vpack.c.bf16 %v448, %v445
      %463 = vrot.lane.b32.xlu0 %v459, 120
      %v464 = vpop.permute.xlu0 %463
      %465 = vrot.lane.b32.xlu0 %v460, 120
      %v466 = vpop.permute.xlu0 %465
      %467 = vrot.lane.b32.xlu0 %v459, 112
      %v468 = vpop.permute.xlu0 %467
      %469 = vrot.lane.b32.xlu0 %v460, 112
      %v470 = vpop.permute.xlu0 %469
      %471 = vrot.lane.b32.xlu0 %v459, 104
      %v472 = vpop.permute.xlu0 %471
      %473 = vrot.lane.b32.xlu0 %v460, 104
      %v474 = vpop.permute.xlu0 %473
      %475 = vrot.lane.b32.xlu0 %v459, 96
      %v476 = vpop.permute.xlu0 %475
      %vm477 = vcmask 64512
      %v479 = vsel %vm477, %v459, 0
      %v482 = vsel %vm477, %v476, 0
      %484 = vmatprep.subr.bf16.mxu0 0
      %485 = vmatpush1.bf16.xpose.msra.mxu0 %v482
      %486 = vmatprep.subr.bf16.mxu0 0
      %487 = vmatpush1.bf16.xpose.msra.mxu0 0
      %488 = vmatprep.subr.bf16.mxu0 0
      %489 = vmatpush1.bf16.xpose.msra.mxu0 0
      %490 = vmatprep.subr.bf16.mxu0 0
      %491 = vmatpush1.bf16.xpose.msra.mxu0 0
      %492 = vmatprep.subr.bf16.mxu0 0
      %493 = vmatpush1.bf16.xpose.msra.mxu0 0
      %494 = vmatprep.subr.bf16.mxu0 0
      %495 = vmatpush1.bf16.xpose.msra.mxu0 0
      %496 = vmatprep.subr.bf16.mxu0 0
      %497 = vmatpush1.bf16.xpose.msra.mxu0 0
      %498 = vmatprep.subr.bf16.mxu0 0
      %499 = vmatpush1.bf16.xpose.msra.mxu0 0
      %500 = vmatprep.subr.bf16.mxu0 0
      %501 = vmatpush1.bf16.xpose.msra.mxu0 0
      %502 = vmatprep.subr.bf16.mxu0 0
      %503 = vmatpush1.bf16.xpose.msra.mxu0 0
      %504 = vmatprep.subr.bf16.mxu0 0
      %505 = vmatpush1.bf16.xpose.msra.mxu0 0
      %506 = vmatprep.subr.bf16.mxu0 0
      %507 = vmatpush1.bf16.xpose.msra.mxu0 0
      %508 = vmatprep.subr.bf16.mxu0 0
      %509 = vmatpush1.bf16.xpose.msra.mxu0 0
      %510 = vmatprep.subr.bf16.mxu0 0
      %511 = vmatpush1.bf16.xpose.msra.mxu0 0
      %512 = vmatprep.subr.bf16.mxu0 0
      %513 = vmatpush1.bf16.xpose.msra.mxu0 0
      %514 = vmatprep.subr.bf16.mxu0 0
      %515 = vmatpush1.bf16.xpose.msra.mxu0 0
      %516 = vmatprep.mubr.bf16.mxu0 0
      %517 = vmatmul.mubr.bf16.gmra.mrb[0].mxu0 %v479
      %v518 = vpop.f32.mrb[0].mxu0
      %v519 = vadd.f32 0.0, %v518
      %v520 = vpop.f32.mrb[0].mxu0
      %v521 = vpop.f32.mrb[0].mxu0
      %v522 = vadd.f32 0.0, %v521
      %v523 = vpop.f32.mrb[0].mxu0
      %524 = vdwg.mxu0
      %525 = vrot.lane.b32.xlu0 %v460, 96
      %v526 = vpop.permute.xlu0 %525
      %v528 = vsel %vm477, %v460, 0
      %v531 = vsel %vm477, %v526, 0
      %533 = vmatprep.subr.bf16.mxu0 0
      %534 = vmatpush1.bf16.xpose.msra.mxu0 %v531
      %535 = vmatprep.subr.bf16.mxu0 0
      %536 = vmatpush1.bf16.xpose.msra.mxu0 0
      %537 = vmatprep.subr.bf16.mxu0 0
      %538 = vmatpush1.bf16.xpose.msra.mxu0 0
      %539 = vmatprep.subr.bf16.mxu0 0
      %540 = vmatpush1.bf16.xpose.msra.mxu0 0
      %541 = vmatprep.subr.bf16.mxu0 0
      %542 = vmatpush1.bf16.xpose.msra.mxu0 0
      %543 = vmatprep.subr.bf16.mxu0 0
      %544 = vmatpush1.bf16.xpose.msra.mxu0 0
      %545 = vmatprep.subr.bf16.mxu0 0
      %546 = vmatpush1.bf16.xpose.msra.mxu0 0
      %547 = vmatprep.subr.bf16.mxu0 0
      %548 = vmatpush1.bf16.xpose.msra.mxu0 0
      %549 = vmatprep.subr.bf16.mxu0 0
      %550 = vmatpush1.bf16.xpose.msra.mxu0 0
      %551 = vmatprep.subr.bf16.mxu0 0
      %552 = vmatpush1.bf16.xpose.msra.mxu0 0
      %553 = vmatprep.subr.bf16.mxu0 0
      %554 = vmatpush1.bf16.xpose.msra.mxu0 0
      %555 = vmatprep.subr.bf16.mxu0 0
      %556 = vmatpush1.bf16.xpose.msra.mxu0 0
      %557 = vmatprep.subr.bf16.mxu0 0
      %558 = vmatpush1.bf16.xpose.msra.mxu0 0
      %559 = vmatprep.subr.bf16.mxu0 0
      %560 = vmatpush1.bf16.xpose.msra.mxu0 0
      %561 = vmatprep.subr.bf16.mxu0 0
      %562 = vmatpush1.bf16.xpose.msra.mxu0 0
      %563 = vmatprep.subr.bf16.mxu0 0
      %564 = vmatpush1.bf16.xpose.msra.mxu0 0
      %565 = vmatprep.mubr.bf16.mxu0 0
      %566 = vmatmul.mubr.bf16.gmra.mrb[0].mxu0 %v528
      %v567 = vpop.f32.mrb[0].mxu0
      %v568 = vadd.f32 0.0, %v567
      %v569 = vpop.f32.mrb[0].mxu0
      %v570 = vpop.f32.mrb[0].mxu0
      %v571 = vadd.f32 0.0, %v570
      %v572 = vpop.f32.mrb[0].mxu0
      %573 = vdwg.mxu0
      %574 = vrot.lane.b32.xlu0 %v464, 96
      %v575 = vpop.permute.xlu0 %574
      %v577 = vsel %vm477, %v464, 0
      %v580 = vsel %vm477, %v575, 0
      %582 = vmatprep.subr.bf16.mxu0 0
      %583 = vmatpush1.bf16.xpose.msra.mxu0 %v580
      %584 = vmatprep.subr.bf16.mxu0 0
      %585 = vmatpush1.bf16.xpose.msra.mxu0 0
      %586 = vmatprep.subr.bf16.mxu0 0
      %587 = vmatpush1.bf16.xpose.msra.mxu0 0
      %588 = vmatprep.subr.bf16.mxu0 0
      %589 = vmatpush1.bf16.xpose.msra.mxu0 0
      %590 = vmatprep.subr.bf16.mxu0 0
      %591 = vmatpush1.bf16.xpose.msra.mxu0 0
      %592 = vmatprep.subr.bf16.mxu0 0
      %593 = vmatpush1.bf16.xpose.msra.mxu0 0
      %594 = vmatprep.subr.bf16.mxu0 0
      %595 = vmatpush1.bf16.xpose.msra.mxu0 0
      %596 = vmatprep.subr.bf16.mxu0 0
      %597 = vmatpush1.bf16.xpose.msra.mxu0 0
      %598 = vmatprep.subr.bf16.mxu0 0
      %599 = vmatpush1.bf16.xpose.msra.mxu0 0
      %600 = vmatprep.subr.bf16.mxu0 0
      %601 = vmatpush1.bf16.xpose.msra.mxu0 0
      %602 = vmatprep.subr.bf16.mxu0 0
      %603 = vmatpush1.bf16.xpose.msra.mxu0 0
      %604 = vmatprep.subr.bf16.mxu0 0
      %605 = vmatpush1.bf16.xpose.msra.mxu0 0
      %606 = vmatprep.subr.bf16.mxu0 0
      %607 = vmatpush1.bf16.xpose.msra.mxu0 0
      %608 = vmatprep.subr.bf16.mxu0 0
      %609 = vmatpush1.bf16.xpose.msra.mxu0 0
      %610 = vmatprep.subr.bf16.mxu0 0
      %611 = vmatpush1.bf16.xpose.msra.mxu0 0
      %612 = vmatprep.subr.bf16.mxu0 0
      %613 = vmatpush1.bf16.xpose.msra.mxu0 0
      %614 = vmatprep.mubr.bf16.mxu0 0
      %615 = vmatmul.mubr.bf16.gmra.mrb[0].mxu0 %v577
      %v616 = vpop.f32.mrb[0].mxu0
      %v617 = vadd.f32 0.0, %v616
      %v618 = vpop.f32.mrb[0].mxu0
      %v619 = vpop.f32.mrb[0].mxu0
      %v620 = vadd.f32 0.0, %v619
      %v621 = vpop.f32.mrb[0].mxu0
      %622 = vdwg.mxu0
      %623 = vrot.lane.b32.xlu0 %v466, 96
      %v624 = vpop.permute.xlu0 %623
      %v626 = vsel %vm477, %v466, 0
      %v629 = vsel %vm477, %v624, 0
      %631 = vmatprep.subr.bf16.mxu0 0
      %632 = vmatpush1.bf16.xpose.msra.mxu0 %v629
      %633 = vmatprep.subr.bf16.mxu0 0
      %634 = vmatpush1.bf16.xpose.msra.mxu0 0
      %635 = vmatprep.subr.bf16.mxu0 0
      %636 = vmatpush1.bf16.xpose.msra.mxu0 0
      %637 = vmatprep.subr.bf16.mxu0 0
      %638 = vmatpush1.bf16.xpose.msra.mxu0 0
      %639 = vmatprep.subr.bf16.mxu0 0
      %640 = vmatpush1.bf16.xpose.msra.mxu0 0
      %641 = vmatprep.subr.bf16.mxu0 0
      %642 = vmatpush1.bf16.xpose.msra.mxu0 0
      %643 = vmatprep.subr.bf16.mxu0 0
      %644 = vmatpush1.bf16.xpose.msra.mxu0 0
      %645 = vmatprep.subr.bf16.mxu0 0
      %646 = vmatpush1.bf16.xpose.msra.mxu0 0
      %647 = vmatprep.subr.bf16.mxu0 0
      %648 = vmatpush1.bf16.xpose.msra.mxu0 0
      %649 = vmatprep.subr.bf16.mxu0 0
      %650 = vmatpush1.bf16.xpose.msra.mxu0 0
      %651 = vmatprep.subr.bf16.mxu0 0
      %652 = vmatpush1.bf16.xpose.msra.mxu0 0
      %653 = vmatprep.subr.bf16.mxu0 0
      %654 = vmatpush1.bf16.xpose.msra.mxu0 0
      %655 = vmatprep.subr.bf16.mxu0 0
      %656 = vmatpush1.bf16.xpose.msra.mxu0 0
      %657 = vmatprep.subr.bf16.mxu0 0
      %658 = vmatpush1.bf16.xpose.msra.mxu0 0
      %659 = vmatprep.subr.bf16.mxu0 0
      %660 = vmatpush1.bf16.xpose.msra.mxu0 0
      %661 = vmatprep.subr.bf16.mxu0 0
      %662 = vmatpush1.bf16.xpose.msra.mxu0 0
      %663 = vmatprep.mubr.bf16.mxu0 0
      %664 = vmatmul.mubr.bf16.gmra.mrb[0].mxu0 %v626
      %v665 = vpop.f32.mrb[0].mxu0
      %v666 = vadd.f32 0.0, %v665
      %v667 = vpop.f32.mrb[0].mxu0
      %v668 = vpop.f32.mrb[0].mxu0
      %v669 = vadd.f32 0.0, %v668
      %v670 = vpop.f32.mrb[0].mxu0
      %671 = vdwg.mxu0
      %672 = vrot.lane.b32.xlu0 %v468, 96
      %v673 = vpop.permute.xlu0 %672
      %v675 = vsel %vm477, %v468, 0
      %v678 = vsel %vm477, %v673, 0
      %680 = vmatprep.subr.bf16.mxu0 0
      %681 = vmatpush1.bf16.xpose.msra.mxu0 %v678
      %682 = vmatprep.subr.bf16.mxu0 0
      %683 = vmatpush1.bf16.xpose.msra.mxu0 0
      %684 = vmatprep.subr.bf16.mxu0 0
      %685 = vmatpush1.bf16.xpose.msra.mxu0 0
      %686 = vmatprep.subr.bf16.mxu0 0
      %687 = vmatpush1.bf16.xpose.msra.mxu0 0
      %688 = vmatprep.subr.bf16.mxu0 0
      %689 = vmatpush1.bf16.xpose.msra.mxu0 0
      %690 = vmatprep.subr.bf16.mxu0 0
      %691 = vmatpush1.bf16.xpose.msra.mxu0 0
      %692 = vmatprep.subr.bf16.mxu0 0
      %693 = vmatpush1.bf16.xpose.msra.mxu0 0
      %694 = vmatprep.subr.bf16.mxu0 0
      %695 = vmatpush1.bf16.xpose.msra.mxu0 0
      %696 = vmatprep.subr.bf16.mxu0 0
      %697 = vmatpush1.bf16.xpose.msra.mxu0 0
      %698 = vmatprep.subr.bf16.mxu0 0
      %699 = vmatpush1.bf16.xpose.msra.mxu0 0
      %700 = vmatprep.subr.bf16.mxu0 0
      %701 = vmatpush1.bf16.xpose.msra.mxu0 0
      %702 = vmatprep.subr.bf16.mxu0 0
      %703 = vmatpush1.bf16.xpose.msra.mxu0 0
      %704 = vmatprep.subr.bf16.mxu0 0
      %705 = vmatpush1.bf16.xpose.msra.mxu0 0
      %706 = vmatprep.subr.bf16.mxu0 0
      %707 = vmatpush1.bf16.xpose.msra.mxu0 0
      %708 = vmatprep.subr.bf16.mxu0 0
      %709 = vmatpush1.bf16.xpose.msra.mxu0 0
      %710 = vmatprep.subr.bf16.mxu0 0
      %711 = vmatpush1.bf16.xpose.msra.mxu0 0
      %712 = vmatprep.mubr.bf16.mxu0 0
      %713 = vmatmul.mubr.bf16.gmra.mrb[0].mxu0 %v675
      %v714 = vpop.f32.mrb[0].mxu0
      %v715 = vadd.f32 0.0, %v714
      %v716 = vpop.f32.mrb[0].mxu0
      %v717 = vpop.f32.mrb[0].mxu0
      %v718 = vadd.f32 0.0, %v717
      %v719 = vpop.f32.mrb[0].mxu0
      %720 = vdwg.mxu0
      %721 = vrot.lane.b32.xlu0 %v470, 96
      %v722 = vpop.permute.xlu0 %721
      %v724 = vsel %vm477, %v470, 0
      %v727 = vsel %vm477, %v722, 0
      %729 = vmatprep.subr.bf16.mxu0 0
      %730 = vmatpush1.bf16.xpose.msra.mxu0 %v727
      %731 = vmatprep.subr.bf16.mxu0 0
      %732 = vmatpush1.bf16.xpose.msra.mxu0 0
      %733 = vmatprep.subr.bf16.mxu0 0
      %734 = vmatpush1.bf16.xpose.msra.mxu0 0
      %735 = vmatprep.subr.bf16.mxu0 0
      %736 = vmatpush1.bf16.xpose.msra.mxu0 0
      %737 = vmatprep.subr.bf16.mxu0 0
      %738 = vmatpush1.bf16.xpose.msra.mxu0 0
      %739 = vmatprep.subr.bf16.mxu0 0
      %740 = vmatpush1.bf16.xpose.msra.mxu0 0
      %741 = vmatprep.subr.bf16.mxu0 0
      %742 = vmatpush1.bf16.xpose.msra.mxu0 0
      %743 = vmatprep.subr.bf16.mxu0 0
      %744 = vmatpush1.bf16.xpose.msra.mxu0 0
      %745 = vmatprep.subr.bf16.mxu0 0
      %746 = vmatpush1.bf16.xpose.msra.mxu0 0
      %747 = vmatprep.subr.bf16.mxu0 0
      %748 = vmatpush1.bf16.xpose.msra.mxu0 0
      %749 = vmatprep.subr.bf16.mxu0 0
      %750 = vmatpush1.bf16.xpose.msra.mxu0 0
      %751 = vmatprep.subr.bf16.mxu0 0
      %752 = vmatpush1.bf16.xpose.msra.mxu0 0
      %753 = vmatprep.subr.bf16.mxu0 0
      %754 = vmatpush1.bf16.xpose.msra.mxu0 0
      %755 = vmatprep.subr.bf16.mxu0 0
      %756 = vmatpush1.bf16.xpose.msra.mxu0 0
      %757 = vmatprep.subr.bf16.mxu0 0
      %758 = vmatpush1.bf16.xpose.msra.mxu0 0
      %759 = vmatprep.subr.bf16.mxu0 0
      %760 = vmatpush1.bf16.xpose.msra.mxu0 0
      %761 = vmatprep.mubr.bf16.mxu0 0
      %762 = vmatmul.mubr.bf16.gmra.mrb[0].mxu0 %v724
      %v763 = vpop.f32.mrb[0].mxu0
      %v764 = vadd.f32 0.0, %v763
      %v765 = vpop.f32.mrb[0].mxu0
      %v766 = vpop.f32.mrb[0].mxu0
      %v767 = vadd.f32 0.0, %v766
      %v768 = vpop.f32.mrb[0].mxu0
      %769 = vdwg.mxu0
      %770 = vrot.lane.b32.xlu0 %v472, 96
      %v771 = vpop.permute.xlu0 %770
      %v773 = vsel %vm477, %v472, 0
      %v776 = vsel %vm477, %v771, 0
      %778 = vmatprep.subr.bf16.mxu0 0
      %779 = vmatpush1.bf16.xpose.msra.mxu0 %v776
      %780 = vmatprep.subr.bf16.mxu0 0
      %781 = vmatpush1.bf16.xpose.msra.mxu0 0
      %782 = vmatprep.subr.bf16.mxu0 0
      %783 = vmatpush1.bf16.xpose.msra.mxu0 0
      %784 = vmatprep.subr.bf16.mxu0 0
      %785 = vmatpush1.bf16.xpose.msra.mxu0 0
      %786 = vmatprep.subr.bf16.mxu0 0
      %787 = vmatpush1.bf16.xpose.msra.mxu0 0
      %788 = vmatprep.subr.bf16.mxu0 0
      %789 = vmatpush1.bf16.xpose.msra.mxu0 0
      %790 = vmatprep.subr.bf16.mxu0 0
      %791 = vmatpush1.bf16.xpose.msra.mxu0 0
      %792 = vmatprep.subr.bf16.mxu0 0
      %793 = vmatpush1.bf16.xpose.msra.mxu0 0
      %794 = vmatprep.subr.bf16.mxu0 0
      %795 = vmatpush1.bf16.xpose.msra.mxu0 0
      %796 = vmatprep.subr.bf16.mxu0 0
      %797 = vmatpush1.bf16.xpose.msra.mxu0 0
      %798 = vmatprep.subr.bf16.mxu0 0
      %799 = vmatpush1.bf16.xpose.msra.mxu0 0
      %800 = vmatprep.subr.bf16.mxu0 0
      %801 = vmatpush1.bf16.xpose.msra.mxu0 0
      %802 = vmatprep.subr.bf16.mxu0 0
      %803 = vmatpush1.bf16.xpose.msra.mxu0 0
      %804 = vmatprep.subr.bf16.mxu0 0
      %805 = vmatpush1.bf16.xpose.msra.mxu0 0
      %806 = vmatprep.subr.bf16.mxu0 0
      %807 = vmatpush1.bf16.xpose.msra.mxu0 0
      %808 = vmatprep.subr.bf16.mxu0 0
      %809 = vmatpush1.bf16.xpose.msra.mxu0 0
      %810 = vmatprep.mubr.bf16.mxu0 0
      %811 = vmatmul.mubr.bf16.gmra.mrb[0].mxu0 %v773
      %v812 = vpop.f32.mrb[0].mxu0
      %v813 = vadd.f32 0.0, %v812
      %v814 = vpop.f32.mrb[0].mxu0
      %v815 = vpop.f32.mrb[0].mxu0
      %v816 = vadd.f32 0.0, %v815
      %v817 = vpop.f32.mrb[0].mxu0
      %818 = vdwg.mxu0
      %819 = vrot.lane.b32.xlu0 %v474, 96
      %v820 = vpop.permute.xlu0 %819
      %v822 = vsel %vm477, %v474, 0
      %v825 = vsel %vm477, %v820, 0
      %827 = vmatprep.subr.bf16.mxu0 0
      %828 = vmatpush1.bf16.xpose.msra.mxu0 %v825
      %829 = vmatprep.subr.bf16.mxu0 0
      %830 = vmatpush1.bf16.xpose.msra.mxu0 0
      %831 = vmatprep.subr.bf16.mxu0 0
      %832 = vmatpush1.bf16.xpose.msra.mxu0 0
      %833 = vmatprep.subr.bf16.mxu0 0
      %834 = vmatpush1.bf16.xpose.msra.mxu0 0
      %835 = vmatprep.subr.bf16.mxu0 0
      %836 = vmatpush1.bf16.xpose.msra.mxu0 0
      %837 = vmatprep.subr.bf16.mxu0 0
      %838 = vmatpush1.bf16.xpose.msra.mxu0 0
      %839 = vmatprep.subr.bf16.mxu0 0
      %840 = vmatpush1.bf16.xpose.msra.mxu0 0
      %841 = vmatprep.subr.bf16.mxu0 0
      %842 = vmatpush1.bf16.xpose.msra.mxu0 0
      %843 = vmatprep.subr.bf16.mxu0 0
      %844 = vmatpush1.bf16.xpose.msra.mxu0 0
      %845 = vmatprep.subr.bf16.mxu0 0
      %846 = vmatpush1.bf16.xpose.msra.mxu0 0
      %847 = vmatprep.subr.bf16.mxu0 0
      %848 = vmatpush1.bf16.xpose.msra.mxu0 0
      %849 = vmatprep.subr.bf16.mxu0 0
      %850 = vmatpush1.bf16.xpose.msra.mxu0 0
      %851 = vmatprep.subr.bf16.mxu0 0
      %852 = vmatpush1.bf16.xpose.msra.mxu0 0
      %853 = vmatprep.subr.bf16.mxu0 0
      %854 = vmatpush1.bf16.xpose.msra.mxu0 0
      %855 = vmatprep.subr.bf16.mxu0 0
      %856 = vmatpush1.bf16.xpose.msra.mxu0 0
      %857 = vmatprep.subr.bf16.mxu0 0
      %858 = vmatpush1.bf16.xpose.msra.mxu0 0
      %859 = vmatprep.mubr.bf16.mxu0 0
      %860 = vmatmul.mubr.bf16.gmra.mrb[0].mxu0 %v822
      %v861 = vpop.f32.mrb[0].mxu0
      %v862 = vadd.f32 0.0, %v861
      %v863 = vpop.f32.mrb[0].mxu0
      %v864 = vpop.f32.mrb[0].mxu0
      %v865 = vadd.f32 0.0, %v864
      %v866 = vpop.f32.mrb[0].mxu0
      %867 = vdwg.mxu0
      %vm868 = vcmask 130048
      %v869 = vsel %vm868, %v519, -inf
      %870 = vmax.xlane.f32.xlu0 %v869
      %v871 = vpop.xlane.xlu0 %870
      %v872 = vsel %vm868, %v522, -inf
      %873 = vmax.xlane.f32.xlu0 %v872
      %v874 = vpop.xlane.xlu0 %873
      %v875 = vsel %vm868, %v568, -inf
      %876 = vmax.xlane.f32.xlu0 %v875
      %v877 = vpop.xlane.xlu0 %876
      %v878 = vsel %vm868, %v571, -inf
      %879 = vmax.xlane.f32.xlu0 %v878
      %v880 = vpop.xlane.xlu0 %879
      %v881 = vsel %vm868, %v617, -inf
      %882 = vmax.xlane.f32.xlu0 %v881
      %v883 = vpop.xlane.xlu0 %882
      %v884 = vsel %vm868, %v620, -inf
      %885 = vmax.xlane.f32.xlu0 %v884
      %v886 = vpop.xlane.xlu0 %885
      %v887 = vsel %vm868, %v666, -inf
      %888 = vmax.xlane.f32.xlu0 %v887
      %v889 = vpop.xlane.xlu0 %888
      %v890 = vsel %vm868, %v669, -inf
      %891 = vmax.xlane.f32.xlu0 %v890
      %v892 = vpop.xlane.xlu0 %891
      %v893 = vsel %vm868, %v715, -inf
      %894 = vmax.xlane.f32.xlu0 %v893
      %v895 = vpop.xlane.xlu0 %894
      %v896 = vsel %vm868, %v718, -inf
      %897 = vmax.xlane.f32.xlu0 %v896
      %v898 = vpop.xlane.xlu0 %897
      %v899 = vsel %vm868, %v764, -inf
      %900 = vmax.xlane.f32.xlu0 %v899
      %v901 = vpop.xlane.xlu0 %900
      %v902 = vsel %vm868, %v767, -inf
      %903 = vmax.xlane.f32.xlu0 %v902
      %v904 = vpop.xlane.xlu0 %903
      %v905 = vsel %vm868, %v813, -inf
      %906 = vmax.xlane.f32.xlu0 %v905
      %v907 = vpop.xlane.xlu0 %906
      %v908 = vsel %vm868, %v816, -inf
      %909 = vmax.xlane.f32.xlu0 %v908
      %v910 = vpop.xlane.xlu0 %909
      %v911 = vsel %vm868, %v862, -inf
      %912 = vmax.xlane.f32.xlu0 %v911
      %v913 = vpop.xlane.xlu0 %912
      %v914 = vsel %vm868, %v865, -inf
      %915 = vmax.xlane.f32.xlu0 %v914
      %v916 = vpop.xlane.xlu0 %915
      %v917 = vsub.f32 %v519, %v871
      %v918 = vsub.f32 %v522, %v874
      %v919 = vsub.f32 %v568, %v877
      %v920 = vsub.f32 %v571, %v880
      %v921 = vsub.f32 %v617, %v883
      %v922 = vsub.f32 %v620, %v886
      %v923 = vsub.f32 %v666, %v889
      %v924 = vsub.f32 %v669, %v892
      %v925 = vsub.f32 %v715, %v895
      %v926 = vsub.f32 %v718, %v898
      %v927 = vsub.f32 %v764, %v901
      %v928 = vsub.f32 %v767, %v904
      %v929 = vsub.f32 %v813, %v907
      %v930 = vsub.f32 %v816, %v910
      %v931 = vsub.f32 %v862, %v913
      %v932 = vsub.f32 %v865, %v916
      %v933 = vmul.f32 %v917, 1.442695
      %v934 = vpow.pop %v933
      %v935 = vmul.f32 %v918, 1.442695
      %v936 = vpow.pop %v935
      %v937 = vmul.f32 %v919, 1.442695
      %v938 = vpow.pop %v937
      %v939 = vmul.f32 %v920, 1.442695
      %v940 = vpow.pop %v939
      %v941 = vmul.f32 %v921, 1.442695
      %v942 = vpow.pop %v941
      %v943 = vmul.f32 %v922, 1.442695
      %v944 = vpow.pop %v943
      %v945 = vmul.f32 %v923, 1.442695
      %v946 = vpow.pop %v945
      %v947 = vmul.f32 %v924, 1.442695
      %v948 = vpow.pop %v947
      %v949 = vmul.f32 %v925, 1.442695
      %v950 = vpow.pop %v949
      %v951 = vmul.f32 %v926, 1.442695
      %v952 = vpow.pop %v951
      %v953 = vmul.f32 %v927, 1.442695
      %v954 = vpow.pop %v953
      %v955 = vmul.f32 %v928, 1.442695
      %v956 = vpow.pop %v955
      %v957 = vmul.f32 %v929, 1.442695
      %v958 = vpow.pop %v957
      %v959 = vmul.f32 %v930, 1.442695
      %v960 = vpow.pop %v959
      %v961 = vmul.f32 %v931, 1.442695
      %v962 = vpow.pop %v961
      %v963 = vmul.f32 %v932, 1.442695
      %v964 = vpow.pop %v963
      %v965 = vsel %vm868, %v934, 0.0
      %966 = vadd.xlane.f32.xlu0 %v965
      %v967 = vpop.xlane.xlu0 %966
      %v968 = vsel %vm868, %v936, 0.0
      %969 = vadd.xlane.f32.xlu0 %v968
      %v970 = vpop.xlane.xlu0 %969
      %v971 = vsel %vm868, %v938, 0.0
      %972 = vadd.xlane.f32.xlu0 %v971
      %v973 = vpop.xlane.xlu0 %972
      %v974 = vsel %vm868, %v940, 0.0
      %975 = vadd.xlane.f32.xlu0 %v974
      %v976 = vpop.xlane.xlu0 %975
      %v977 = vsel %vm868, %v942, 0.0
      %978 = vadd.xlane.f32.xlu0 %v977
      %v979 = vpop.xlane.xlu0 %978
      %v980 = vsel %vm868, %v944, 0.0
      %981 = vadd.xlane.f32.xlu0 %v980
      %v982 = vpop.xlane.xlu0 %981
      %v983 = vsel %vm868, %v946, 0.0
      %984 = vadd.xlane.f32.xlu0 %v983
      %v985 = vpop.xlane.xlu0 %984
      %v986 = vsel %vm868, %v948, 0.0
      %987 = vadd.xlane.f32.xlu0 %v986
      %v988 = vpop.xlane.xlu0 %987
      %v989 = vsel %vm868, %v950, 0.0
      %990 = vadd.xlane.f32.xlu0 %v989
      %v991 = vpop.xlane.xlu0 %990
      %v992 = vsel %vm868, %v952, 0.0
      %993 = vadd.xlane.f32.xlu0 %v992
      %v994 = vpop.xlane.xlu0 %993
      %v995 = vsel %vm868, %v954, 0.0
      %996 = vadd.xlane.f32.xlu0 %v995
      %v997 = vpop.xlane.xlu0 %996
      %v998 = vsel %vm868, %v956, 0.0
      %999 = vadd.xlane.f32.xlu0 %v998
      %v1000 = vpop.xlane.xlu0 %999
      %v1001 = vsel %vm868, %v958, 0.0
      %1002 = vadd.xlane.f32.xlu0 %v1001
      %v1003 = vpop.xlane.xlu0 %1002
      %v1004 = vsel %vm868, %v960, 0.0
      %1005 = vadd.xlane.f32.xlu0 %v1004
      %v1006 = vpop.xlane.xlu0 %1005
      %v1007 = vsel %vm868, %v962, 0.0
      %1008 = vadd.xlane.f32.xlu0 %v1007
      %v1009 = vpop.xlane.xlu0 %1008
      %v1010 = vsel %vm868, %v964, 0.0
      %1011 = vadd.xlane.f32.xlu0 %v1010
      %v1012 = vpop.xlane.xlu0 %1011
      %v1013 = vrcp.pop %v967
      %v1014 = vrcp.pop %v970
      %v1015 = vrcp.pop %v973
      %v1016 = vrcp.pop %v976
      %v1017 = vrcp.pop %v979
      %v1018 = vrcp.pop %v982
      %v1019 = vrcp.pop %v985
      %v1020 = vrcp.pop %v988
      %v1021 = vrcp.pop %v991
      %v1022 = vrcp.pop %v994
      %v1023 = vrcp.pop %v997
      %v1024 = vrcp.pop %v1000
      %v1025 = vrcp.pop %v1003
      %v1026 = vrcp.pop %v1006
      %v1027 = vrcp.pop %v1009
      %v1028 = vrcp.pop %v1012
      %v1029 = vmul.f32 %v934, %v1013
      %v1030 = vmul.f32 %v936, %v1014
      %v1031 = vmul.f32 %v938, %v1015
      %v1032 = vmul.f32 %v940, %v1016
      %v1033 = vmul.f32 %v942, %v1017
      %v1034 = vmul.f32 %v944, %v1018
      %v1035 = vmul.f32 %v946, %v1019
      %v1036 = vmul.f32 %v948, %v1020
      %v1037 = vmul.f32 %v950, %v1021
      %v1038 = vmul.f32 %v952, %v1022
      %v1039 = vmul.f32 %v954, %v1023
      %v1040 = vmul.f32 %v956, %v1024
      %v1041 = vmul.f32 %v958, %v1025
      %v1042 = vmul.f32 %v960, %v1026
      %v1043 = vmul.f32 %v962, %v1027
      %v1044 = vmul.f32 %v964, %v1028
      %v1045 = vpack.c.bf16 %v1030, %v1029
      %v1046 = vpack.c.bf16 %v1032, %v1031
      %v1047 = vpack.c.bf16 %v1034, %v1033
      %v1048 = vpack.c.bf16 %v1036, %v1035
      %v1049 = vpack.c.bf16 %v1038, %v1037
      %v1050 = vpack.c.bf16 %v1040, %v1039
      %v1051 = vpack.c.bf16 %v1042, %v1041
      %v1052 = vpack.c.bf16 %v1044, %v1043
      %1053 = vrot.lane.b32.xlu0 %v459, 64
      %v1054 = vpop.permute.xlu0 %1053
      %v1057 = vsel %vm868, %v1045, 0
      %1059 = vmatprep.subr.bf16.mxu0 0
      %1060 = vmatpush1.bf16.msra.mxu0 %v1054
      %1061 = vmatprep.subr.bf16.mxu0 0
      %1062 = vmatpush1.bf16.msra.mxu0 0
      %1063 = vmatprep.subr.bf16.mxu0 0
      %1064 = vmatpush1.bf16.msra.mxu0 0
      %1065 = vmatprep.subr.bf16.mxu0 0
      %1066 = vmatpush1.bf16.msra.mxu0 0
      %1067 = vmatprep.subr.bf16.mxu0 0
      %1068 = vmatpush1.bf16.msra.mxu0 0
      %1069 = vmatprep.subr.bf16.mxu0 0
      %1070 = vmatpush1.bf16.msra.mxu0 0
      %1071 = vmatprep.subr.bf16.mxu0 0
      %1072 = vmatpush1.bf16.msra.mxu0 0
      %1073 = vmatprep.subr.bf16.mxu0 0
      %1074 = vmatpush1.bf16.msra.mxu0 0
      %1075 = vmatprep.subr.bf16.mxu0 0
      %1076 = vmatpush1.bf16.msra.mxu0 0
      %1077 = vmatprep.subr.bf16.mxu0 0
      %1078 = vmatpush1.bf16.msra.mxu0 0
      %1079 = vmatprep.subr.bf16.mxu0 0
      %1080 = vmatpush1.bf16.msra.mxu0 0
      %1081 = vmatprep.subr.bf16.mxu0 0
      %1082 = vmatpush1.bf16.msra.mxu0 0
      %1083 = vmatprep.subr.bf16.mxu0 0
      %1084 = vmatpush1.bf16.msra.mxu0 0
      %1085 = vmatprep.subr.bf16.mxu0 0
      %1086 = vmatpush1.bf16.msra.mxu0 0
      %1087 = vmatprep.subr.bf16.mxu0 0
      %1088 = vmatpush1.bf16.msra.mxu0 0
      %1089 = vmatprep.subr.bf16.mxu0 0
      %1090 = vmatpush1.bf16.msra.mxu0 0
      %1091 = vmatprep.mubr.bf16.mxu0 0
      %1092 = vmatmul.mubr.bf16.gmra.mrb[0].mxu0 %v1057
      %v1093 = vpop.f32.mrb[0].mxu0
      %v1094 = vadd.f32 0.0, %v1093
      %v1095 = vpop.f32.mrb[0].mxu0
      %v1096 = vpop.f32.mrb[0].mxu0
      %v1097 = vadd.f32 0.0, %v1096
      %v1098 = vpop.f32.mrb[0].mxu0
      %1099 = vdwg.mxu0
      %1100 = vrot.lane.b32.xlu0 %v460, 64
      %v1101 = vpop.permute.xlu0 %1100
      %v1104 = vsel %vm868, %v1046, 0
      %1106 = vmatprep.subr.bf16.mxu0 0
      %1107 = vmatpush1.bf16.msra.mxu0 %v1101
      %1108 = vmatprep.subr.bf16.mxu0 0
      %1109 = vmatpush1.bf16.msra.mxu0 0
      %1110 = vmatprep.subr.bf16.mxu0 0
      %1111 = vmatpush1.bf16.msra.mxu0 0
      %1112 = vmatprep.subr.bf16.mxu0 0
      %1113 = vmatpush1.bf16.msra.mxu0 0
      %1114 = vmatprep.subr.bf16.mxu0 0
      %1115 = vmatpush1.bf16.msra.mxu0 0
      %1116 = vmatprep.subr.bf16.mxu0 0
      %1117 = vmatpush1.bf16.msra.mxu0 0
      %1118 = vmatprep.subr.bf16.mxu0 0
      %1119 = vmatpush1.bf16.msra.mxu0 0
      %1120 = vmatprep.subr.bf16.mxu0 0
      %1121 = vmatpush1.bf16.msra.mxu0 0
      %1122 = vmatprep.subr.bf16.mxu0 0
      %1123 = vmatpush1.bf16.msra.mxu0 0
      %1124 = vmatprep.subr.bf16.mxu0 0
      %1125 = vmatpush1.bf16.msra.mxu0 0
      %1126 = vmatprep.subr.bf16.mxu0 0
      %1127 = vmatpush1.bf16.msra.mxu0 0
      %1128 = vmatprep.subr.bf16.mxu0 0
      %1129 = vmatpush1.bf16.msra.mxu0 0
      %1130 = vmatprep.subr.bf16.mxu0 0
      %1131 = vmatpush1.bf16.msra.mxu0 0
      %1132 = vmatprep.subr.bf16.mxu0 0
      %1133 = vmatpush1.bf16.msra.mxu0 0
      %1134 = vmatprep.subr.bf16.mxu0 0
      %1135 = vmatpush1.bf16.msra.mxu0 0
      %1136 = vmatprep.subr.bf16.mxu0 0
      %1137 = vmatpush1.bf16.msra.mxu0 0
      %1138 = vmatprep.mubr.bf16.mxu0 0
      %1139 = vmatmul.mubr.bf16.gmra.mrb[0].mxu0 %v1104
      %v1140 = vpop.f32.mrb[0].mxu0
      %v1141 = vadd.f32 0.0, %v1140
      %v1142 = vpop.f32.mrb[0].mxu0
      %v1143 = vpop.f32.mrb[0].mxu0
      %v1144 = vadd.f32 0.0, %v1143
      %v1145 = vpop.f32.mrb[0].mxu0
      %1146 = vdwg.mxu0
      %1147 = vrot.lane.b32.xlu0 %v464, 64
      %v1148 = vpop.permute.xlu0 %1147
      %v1151 = vsel %vm868, %v1047, 0
      %1153 = vmatprep.subr.bf16.mxu0 0
      %1154 = vmatpush1.bf16.msra.mxu0 %v1148
      %1155 = vmatprep.subr.bf16.mxu0 0
      %1156 = vmatpush1.bf16.msra.mxu0 0
      %1157 = vmatprep.subr.bf16.mxu0 0
      %1158 = vmatpush1.bf16.msra.mxu0 0
      %1159 = vmatprep.subr.bf16.mxu0 0
      %1160 = vmatpush1.bf16.msra.mxu0 0
      %1161 = vmatprep.subr.bf16.mxu0 0
      %1162 = vmatpush1.bf16.msra.mxu0 0
      %1163 = vmatprep.subr.bf16.mxu0 0
      %1164 = vmatpush1.bf16.msra.mxu0 0
      %1165 = vmatprep.subr.bf16.mxu0 0
      %1166 = vmatpush1.bf16.msra.mxu0 0
      %1167 = vmatprep.subr.bf16.mxu0 0
      %1168 = vmatpush1.bf16.msra.mxu0 0
      %1169 = vmatprep.subr.bf16.mxu0 0
      %1170 = vmatpush1.bf16.msra.mxu0 0
      %1171 = vmatprep.subr.bf16.mxu0 0
      %1172 = vmatpush1.bf16.msra.mxu0 0
      %1173 = vmatprep.subr.bf16.mxu0 0
      %1174 = vmatpush1.bf16.msra.mxu0 0
      %1175 = vmatprep.subr.bf16.mxu0 0
      %1176 = vmatpush1.bf16.msra.mxu0 0
      %1177 = vmatprep.subr.bf16.mxu0 0
      %1178 = vmatpush1.bf16.msra.mxu0 0
      %1179 = vmatprep.subr.bf16.mxu0 0
      %1180 = vmatpush1.bf16.msra.mxu0 0
      %1181 = vmatprep.subr.bf16.mxu0 0
      %1182 = vmatpush1.bf16.msra.mxu0 0
      %1183 = vmatprep.subr.bf16.mxu0 0
      %1184 = vmatpush1.bf16.msra.mxu0 0
      %1185 = vmatprep.mubr.bf16.mxu0 0
      %1186 = vmatmul.mubr.bf16.gmra.mrb[0].mxu0 %v1151
      %v1187 = vpop.f32.mrb[0].mxu0
      %v1188 = vadd.f32 0.0, %v1187
      %v1189 = vpop.f32.mrb[0].mxu0
      %v1190 = vpop.f32.mrb[0].mxu0
      %v1191 = vadd.f32 0.0, %v1190
      %v1192 = vpop.f32.mrb[0].mxu0
      %1193 = vdwg.mxu0
      %1194 = vrot.lane.b32.xlu0 %v466, 64
      %v1195 = vpop.permute.xlu0 %1194
      %v1198 = vsel %vm868, %v1048, 0
      %1200 = vmatprep.subr.bf16.mxu0 0
      %1201 = vmatpush1.bf16.msra.mxu0 %v1195
      %1202 = vmatprep.subr.bf16.mxu0 0
      %1203 = vmatpush1.bf16.msra.mxu0 0
      %1204 = vmatprep.subr.bf16.mxu0 0
      %1205 = vmatpush1.bf16.msra.mxu0 0
      %1206 = vmatprep.subr.bf16.mxu0 0
      %1207 = vmatpush1.bf16.msra.mxu0 0
      %1208 = vmatprep.subr.bf16.mxu0 0
      %1209 = vmatpush1.bf16.msra.mxu0 0
      %1210 = vmatprep.subr.bf16.mxu0 0
      %1211 = vmatpush1.bf16.msra.mxu0 0
      %1212 = vmatprep.subr.bf16.mxu0 0
      %1213 = vmatpush1.bf16.msra.mxu0 0
      %1214 = vmatprep.subr.bf16.mxu0 0
      %1215 = vmatpush1.bf16.msra.mxu0 0
      %1216 = vmatprep.subr.bf16.mxu0 0
      %1217 = vmatpush1.bf16.msra.mxu0 0
      %1218 = vmatprep.subr.bf16.mxu0 0
      %1219 = vmatpush1.bf16.msra.mxu0 0
      %1220 = vmatprep.subr.bf16.mxu0 0
      %1221 = vmatpush1.bf16.msra.mxu0 0
      %1222 = vmatprep.subr.bf16.mxu0 0
      %1223 = vmatpush1.bf16.msra.mxu0 0
      %1224 = vmatprep.subr.bf16.mxu0 0
      %1225 = vmatpush1.bf16.msra.mxu0 0
      %1226 = vmatprep.subr.bf16.mxu0 0
      %1227 = vmatpush1.bf16.msra.mxu0 0
      %1228 = vmatprep.subr.bf16.mxu0 0
      %1229 = vmatpush1.bf16.msra.mxu0 0
      %1230 = vmatprep.subr.bf16.mxu0 0
      %1231 = vmatpush1.bf16.msra.mxu0 0
      %1232 = vmatprep.mubr.bf16.mxu0 0
      %1233 = vmatmul.mubr.bf16.gmra.mrb[0].mxu0 %v1198
      %v1234 = vpop.f32.mrb[0].mxu0
      %v1235 = vadd.f32 0.0, %v1234
      %v1236 = vpop.f32.mrb[0].mxu0
      %v1237 = vpop.f32.mrb[0].mxu0
      %v1238 = vadd.f32 0.0, %v1237
      %v1239 = vpop.f32.mrb[0].mxu0
      %1240 = vdwg.mxu0
      %1241 = vrot.lane.b32.xlu0 %v468, 64
      %v1242 = vpop.permute.xlu0 %1241
      %v1245 = vsel %vm868, %v1049, 0
      %1247 = vmatprep.subr.bf16.mxu0 0
      %1248 = vmatpush1.bf16.msra.mxu0 %v1242
      %1249 = vmatprep.subr.bf16.mxu0 0
      %1250 = vmatpush1.bf16.msra.mxu0 0
      %1251 = vmatprep.subr.bf16.mxu0 0
      %1252 = vmatpush1.bf16.msra.mxu0 0
      %1253 = vmatprep.subr.bf16.mxu0 0
      %1254 = vmatpush1.bf16.msra.mxu0 0
      %1255 = vmatprep.subr.bf16.mxu0 0
      %1256 = vmatpush1.bf16.msra.mxu0 0
      %1257 = vmatprep.subr.bf16.mxu0 0
      %1258 = vmatpush1.bf16.msra.mxu0 0
      %1259 = vmatprep.subr.bf16.mxu0 0
      %1260 = vmatpush1.bf16.msra.mxu0 0
      %1261 = vmatprep.subr.bf16.mxu0 0
      %1262 = vmatpush1.bf16.msra.mxu0 0
      %1263 = vmatprep.subr.bf16.mxu0 0
      %1264 = vmatpush1.bf16.msra.mxu0 0
      %1265 = vmatprep.subr.bf16.mxu0 0
      %1266 = vmatpush1.bf16.msra.mxu0 0
      %1267 = vmatprep.subr.bf16.mxu0 0
      %1268 = vmatpush1.bf16.msra.mxu0 0
      %1269 = vmatprep.subr.bf16.mxu0 0
      %1270 = vmatpush1.bf16.msra.mxu0 0
      %1271 = vmatprep.subr.bf16.mxu0 0
      %1272 = vmatpush1.bf16.msra.mxu0 0
      %1273 = vmatprep.subr.bf16.mxu0 0
      %1274 = vmatpush1.bf16.msra.mxu0 0
      %1275 = vmatprep.subr.bf16.mxu0 0
      %1276 = vmatpush1.bf16.msra.mxu0 0
      %1277 = vmatprep.subr.bf16.mxu0 0
      %1278 = vmatpush1.bf16.msra.mxu0 0
      %1279 = vmatprep.mubr.bf16.mxu0 0
      %1280 = vmatmul.mubr.bf16.gmra.mrb[0].mxu0 %v1245
      %v1281 = vpop.f32.mrb[0].mxu0
      %v1282 = vadd.f32 0.0, %v1281
      %v1283 = vpop.f32.mrb[0].mxu0
      %v1284 = vpop.f32.mrb[0].mxu0
      %v1285 = vadd.f32 0.0, %v1284
      %v1286 = vpop.f32.mrb[0].mxu0
      %1287 = vdwg.mxu0
      %1288 = vrot.lane.b32.xlu0 %v470, 64
      %v1289 = vpop.permute.xlu0 %1288
      %v1292 = vsel %vm868, %v1050, 0
      %1294 = vmatprep.subr.bf16.mxu0 0
      %1295 = vmatpush1.bf16.msra.mxu0 %v1289
      %1296 = vmatprep.subr.bf16.mxu0 0
      %1297 = vmatpush1.bf16.msra.mxu0 0
      %1298 = vmatprep.subr.bf16.mxu0 0
      %1299 = vmatpush1.bf16.msra.mxu0 0
      %1300 = vmatprep.subr.bf16.mxu0 0
      %1301 = vmatpush1.bf16.msra.mxu0 0
      %1302 = vmatprep.subr.bf16.mxu0 0
      %1303 = vmatpush1.bf16.msra.mxu0 0
      %1304 = vmatprep.subr.bf16.mxu0 0
      %1305 = vmatpush1.bf16.msra.mxu0 0
      %1306 = vmatprep.subr.bf16.mxu0 0
      %1307 = vmatpush1.bf16.msra.mxu0 0
      %1308 = vmatprep.subr.bf16.mxu0 0
      %1309 = vmatpush1.bf16.msra.mxu0 0
      %1310 = vmatprep.subr.bf16.mxu0 0
      %1311 = vmatpush1.bf16.msra.mxu0 0
      %1312 = vmatprep.subr.bf16.mxu0 0
      %1313 = vmatpush1.bf16.msra.mxu0 0
      %1314 = vmatprep.subr.bf16.mxu0 0
      %1315 = vmatpush1.bf16.msra.mxu0 0
      %1316 = vmatprep.subr.bf16.mxu0 0
      %1317 = vmatpush1.bf16.msra.mxu0 0
      %1318 = vmatprep.subr.bf16.mxu0 0
      %1319 = vmatpush1.bf16.msra.mxu0 0
      %1320 = vmatprep.subr.bf16.mxu0 0
      %1321 = vmatpush1.bf16.msra.mxu0 0
      %1322 = vmatprep.subr.bf16.mxu0 0
      %1323 = vmatpush1.bf16.msra.mxu0 0
      %1324 = vmatprep.subr.bf16.mxu0 0
      %1325 = vmatpush1.bf16.msra.mxu0 0
      %1326 = vmatprep.mubr.bf16.mxu0 0
      %1327 = vmatmul.mubr.bf16.gmra.mrb[0].mxu0 %v1292
      %v1328 = vpop.f32.mrb[0].mxu0
      %v1329 = vadd.f32 0.0, %v1328
      %v1330 = vpop.f32.mrb[0].mxu0
      %v1331 = vpop.f32.mrb[0].mxu0
      %v1332 = vadd.f32 0.0, %v1331
      %v1333 = vpop.f32.mrb[0].mxu0
      %1334 = vdwg.mxu0
      %1335 = vrot.lane.b32.xlu0 %v472, 64
      %v1336 = vpop.permute.xlu0 %1335
      %v1339 = vsel %vm868, %v1051, 0
      %1341 = vmatprep.subr.bf16.mxu0 0
      %1342 = vmatpush1.bf16.msra.mxu0 %v1336
      %1343 = vmatprep.subr.bf16.mxu0 0
      %1344 = vmatpush1.bf16.msra.mxu0 0
      %1345 = vmatprep.subr.bf16.mxu0 0
      %1346 = vmatpush1.bf16.msra.mxu0 0
      %1347 = vmatprep.subr.bf16.mxu0 0
      %1348 = vmatpush1.bf16.msra.mxu0 0
      %1349 = vmatprep.subr.bf16.mxu0 0
      %1350 = vmatpush1.bf16.msra.mxu0 0
      %1351 = vmatprep.subr.bf16.mxu0 0
      %1352 = vmatpush1.bf16.msra.mxu0 0
      %1353 = vmatprep.subr.bf16.mxu0 0
      %1354 = vmatpush1.bf16.msra.mxu0 0
      %1355 = vmatprep.subr.bf16.mxu0 0
      %1356 = vmatpush1.bf16.msra.mxu0 0
      %1357 = vmatprep.subr.bf16.mxu0 0
      %1358 = vmatpush1.bf16.msra.mxu0 0
      %1359 = vmatprep.subr.bf16.mxu0 0
      %1360 = vmatpush1.bf16.msra.mxu0 0
      %1361 = vmatprep.subr.bf16.mxu0 0
      %1362 = vmatpush1.bf16.msra.mxu0 0
      %1363 = vmatprep.subr.bf16.mxu0 0
      %1364 = vmatpush1.bf16.msra.mxu0 0
      %1365 = vmatprep.subr.bf16.mxu0 0
      %1366 = vmatpush1.bf16.msra.mxu0 0
      %1367 = vmatprep.subr.bf16.mxu0 0
      %1368 = vmatpush1.bf16.msra.mxu0 0
      %1369 = vmatprep.subr.bf16.mxu0 0
      %1370 = vmatpush1.bf16.msra.mxu0 0
      %1371 = vmatprep.subr.bf16.mxu0 0
      %1372 = vmatpush1.bf16.msra.mxu0 0
      %1373 = vmatprep.mubr.bf16.mxu0 0
      %1374 = vmatmul.mubr.bf16.gmra.mrb[0].mxu0 %v1339
      %v1375 = vpop.f32.mrb[0].mxu0
      %v1376 = vadd.f32 0.0, %v1375
      %v1377 = vpop.f32.mrb[0].mxu0
      %v1378 = vpop.f32.mrb[0].mxu0
      %v1379 = vadd.f32 0.0, %v1378
      %v1380 = vpop.f32.mrb[0].mxu0
      %1381 = vdwg.mxu0
      %1382 = vrot.lane.b32.xlu0 %v474, 64
      %v1383 = vpop.permute.xlu0 %1382
      %v1386 = vsel %vm868, %v1052, 0
      %1388 = vmatprep.subr.bf16.mxu0 0
      %1389 = vmatpush1.bf16.msra.mxu0 %v1383
      %1390 = vmatprep.subr.bf16.mxu0 0
      %1391 = vmatpush1.bf16.msra.mxu0 0
      %1392 = vmatprep.subr.bf16.mxu0 0
      %1393 = vmatpush1.bf16.msra.mxu0 0
      %1394 = vmatprep.subr.bf16.mxu0 0
      %1395 = vmatpush1.bf16.msra.mxu0 0
      %1396 = vmatprep.subr.bf16.mxu0 0
      %1397 = vmatpush1.bf16.msra.mxu0 0
      %1398 = vmatprep.subr.bf16.mxu0 0
      %1399 = vmatpush1.bf16.msra.mxu0 0
      %1400 = vmatprep.subr.bf16.mxu0 0
      %1401 = vmatpush1.bf16.msra.mxu0 0
      %1402 = vmatprep.subr.bf16.mxu0 0
      %1403 = vmatpush1.bf16.msra.mxu0 0
      %1404 = vmatprep.subr.bf16.mxu0 0
      %1405 = vmatpush1.bf16.msra.mxu0 0
      %1406 = vmatprep.subr.bf16.mxu0 0
      %1407 = vmatpush1.bf16.msra.mxu0 0
      %1408 = vmatprep.subr.bf16.mxu0 0
      %1409 = vmatpush1.bf16.msra.mxu0 0
      %1410 = vmatprep.subr.bf16.mxu0 0
      %1411 = vmatpush1.bf16.msra.mxu0 0
      %1412 = vmatprep.subr.bf16.mxu0 0
      %1413 = vmatpush1.bf16.msra.mxu0 0
      %1414 = vmatprep.subr.bf16.mxu0 0
      %1415 = vmatpush1.bf16.msra.mxu0 0
      %1416 = vmatprep.subr.bf16.mxu0 0
      %1417 = vmatpush1.bf16.msra.mxu0 0
      %1418 = vmatprep.subr.bf16.mxu0 0
      %1419 = vmatpush1.bf16.msra.mxu0 0
      %1420 = vmatprep.mubr.bf16.mxu0 0
      %1421 = vmatmul.mubr.bf16.gmra.mrb[0].mxu0 %v1386
      %v1422 = vpop.f32.mrb[0].mxu0
      %v1423 = vadd.f32 0.0, %v1422
      %v1424 = vpop.f32.mrb[0].mxu0
      %v1425 = vpop.f32.mrb[0].mxu0
      %v1426 = vadd.f32 0.0, %v1425
      %v1427 = vpop.f32.mrb[0].mxu0
      %1428 = vdwg.mxu0
      %v1429 = vpack.c.bf16 %v1097, %v1094
      %v1430 = vpack.c.bf16 %v1144, %v1141
      %v1431 = vpack.c.bf16 %v1191, %v1188
      %v1432 = vpack.c.bf16 %v1238, %v1235
      %v1433 = vpack.c.bf16 %v1285, %v1282
      %v1434 = vpack.c.bf16 %v1332, %v1329
      %v1435 = vpack.c.bf16 %v1379, %v1376
      %v1436 = vpack.c.bf16 %v1426, %v1423
      %v1438 = vsel %vm477, %v1429, 0
      %v1441 = vsel %vm477, %v1430, 0
      %vm1443 = vcmask 1043456
      %v1445 = vsel %vm1443, %v453, 0
      %1447 = vmatprep.subr.bf16.mxu0 0
      %1448 = vmatpush1.bf16.msra.mxu0 %v1445
      %1449 = vmatprep.subr.bf16.mxu0 0
      %1450 = vmatpush1.bf16.msra.mxu0 0
      %1451 = vmatprep.subr.bf16.mxu0 0
      %1452 = vmatpush1.bf16.msra.mxu0 0
      %1453 = vmatprep.subr.bf16.mxu0 0
      %1454 = vmatpush1.bf16.msra.mxu0 0
      %1455 = vmatprep.subr.bf16.mxu0 0
      %1456 = vmatpush1.bf16.msra.mxu0 0
      %1457 = vmatprep.subr.bf16.mxu0 0
      %1458 = vmatpush1.bf16.msra.mxu0 0
      %1459 = vmatprep.subr.bf16.mxu0 0
      %1460 = vmatpush1.bf16.msra.mxu0 0
      %1461 = vmatprep.subr.bf16.mxu0 0
      %1462 = vmatpush1.bf16.msra.mxu0 0
      %1463 = vmatprep.subr.bf16.mxu0 0
      %1464 = vmatpush1.bf16.msra.mxu0 0
      %1465 = vmatprep.subr.bf16.mxu0 0
      %1466 = vmatpush1.bf16.msra.mxu0 0
      %1467 = vmatprep.subr.bf16.mxu0 0
      %1468 = vmatpush1.bf16.msra.mxu0 0
      %1469 = vmatprep.subr.bf16.mxu0 0
      %1470 = vmatpush1.bf16.msra.mxu0 0
      %1471 = vmatprep.subr.bf16.mxu0 0
      %1472 = vmatpush1.bf16.msra.mxu0 0
      %1473 = vmatprep.subr.bf16.mxu0 0
      %1474 = vmatpush1.bf16.msra.mxu0 0
      %1475 = vmatprep.subr.bf16.mxu0 0
      %1476 = vmatpush1.bf16.msra.mxu0 0
      %1477 = vmatprep.subr.bf16.mxu0 0
      %1478 = vmatpush1.bf16.msra.mxu0 0
      %1479 = vmatprep.mubr.bf16.mxu0 0
      %1480 = vmatmul.mubr.bf16.gmra.mrb[0].mxu0 %v1438
      %v1481 = vpop.f32.mrb[0].mxu0
      %v1482 = vadd.f32 0.0, %v1481
      %v1483 = vpop.f32.mrb[0].mxu0
      %v1484 = vpop.f32.mrb[0].mxu0
      %v1485 = vadd.f32 0.0, %v1484
      %v1486 = vpop.f32.mrb[0].mxu0
      %1487 = vmatprep.mubr.bf16.mxu0 0
      %1488 = vmatmul.mubr.bf16.gmra.mrb[0].mxu0 %v1441
      %v1489 = vpop.f32.mrb[0].mxu0
      %v1490 = vadd.f32 0.0, %v1489
      %v1491 = vpop.f32.mrb[0].mxu0
      %v1492 = vpop.f32.mrb[0].mxu0
      %v1493 = vadd.f32 0.0, %v1492
      %v1494 = vpop.f32.mrb[0].mxu0
      %1495 = vdwg.mxu0
      %v1497 = vsel %vm477, %v1431, 0
      %v1500 = vsel %vm477, %v1432, 0
      %v1503 = vsel %vm1443, %v454, 0
      %1505 = vmatprep.subr.bf16.mxu0 0
      %1506 = vmatpush1.bf16.msra.mxu0 %v1503
      %1507 = vmatprep.subr.bf16.mxu0 0
      %1508 = vmatpush1.bf16.msra.mxu0 0
      %1509 = vmatprep.subr.bf16.mxu0 0
      %1510 = vmatpush1.bf16.msra.mxu0 0
      %1511 = vmatprep.subr.bf16.mxu0 0
      %1512 = vmatpush1.bf16.msra.mxu0 0
      %1513 = vmatprep.subr.bf16.mxu0 0
      %1514 = vmatpush1.bf16.msra.mxu0 0
      %1515 = vmatprep.subr.bf16.mxu0 0
      %1516 = vmatpush1.bf16.msra.mxu0 0
      %1517 = vmatprep.subr.bf16.mxu0 0
      %1518 = vmatpush1.bf16.msra.mxu0 0
      %1519 = vmatprep.subr.bf16.mxu0 0
      %1520 = vmatpush1.bf16.msra.mxu0 0
      %1521 = vmatprep.subr.bf16.mxu0 0
      %1522 = vmatpush1.bf16.msra.mxu0 0
      %1523 = vmatprep.subr.bf16.mxu0 0
      %1524 = vmatpush1.bf16.msra.mxu0 0
      %1525 = vmatprep.subr.bf16.mxu0 0
      %1526 = vmatpush1.bf16.msra.mxu0 0
      %1527 = vmatprep.subr.bf16.mxu0 0
      %1528 = vmatpush1.bf16.msra.mxu0 0
      %1529 = vmatprep.subr.bf16.mxu0 0
      %1530 = vmatpush1.bf16.msra.mxu0 0
      %1531 = vmatprep.subr.bf16.mxu0 0
      %1532 = vmatpush1.bf16.msra.mxu0 0
      %1533 = vmatprep.subr.bf16.mxu0 0
      %1534 = vmatpush1.bf16.msra.mxu0 0
      %1535 = vmatprep.subr.bf16.mxu0 0
      %1536 = vmatpush1.bf16.msra.mxu0 0
      %1537 = vmatprep.mubr.bf16.mxu0 0
      %1538 = vmatmul.mubr.bf16.gmra.mrb[0].mxu0 %v1497
      %v1539 = vpop.f32.mrb[0].mxu0
      %v1540 = vadd.f32 0.0, %v1539
      %v1541 = vpop.f32.mrb[0].mxu0
      %v1542 = vpop.f32.mrb[0].mxu0
      %v1543 = vadd.f32 0.0, %v1542
      %v1544 = vpop.f32.mrb[0].mxu0
      %1545 = vmatprep.mubr.bf16.mxu0 0
      %1546 = vmatmul.mubr.bf16.gmra.mrb[0].mxu0 %v1500
      %v1547 = vpop.f32.mrb[0].mxu0
      %v1548 = vadd.f32 0.0, %v1547
      %v1549 = vpop.f32.mrb[0].mxu0
      %v1550 = vpop.f32.mrb[0].mxu0
      %v1551 = vadd.f32 0.0, %v1550
      %v1552 = vpop.f32.mrb[0].mxu0
      %1553 = vdwg.mxu0
      %v1555 = vsel %vm477, %v1433, 0
      %v1558 = vsel %vm477, %v1434, 0
      %v1561 = vsel %vm1443, %v455, 0
      %1563 = vmatprep.subr.bf16.mxu0 0
      %1564 = vmatpush1.bf16.msra.mxu0 %v1561
      %1565 = vmatprep.subr.bf16.mxu0 0
      %1566 = vmatpush1.bf16.msra.mxu0 0
      %1567 = vmatprep.subr.bf16.mxu0 0
      %1568 = vmatpush1.bf16.msra.mxu0 0
      %1569 = vmatprep.subr.bf16.mxu0 0
      %1570 = vmatpush1.bf16.msra.mxu0 0
      %1571 = vmatprep.subr.bf16.mxu0 0
      %1572 = vmatpush1.bf16.msra.mxu0 0
      %1573 = vmatprep.subr.bf16.mxu0 0
      %1574 = vmatpush1.bf16.msra.mxu0 0
      %1575 = vmatprep.subr.bf16.mxu0 0
      %1576 = vmatpush1.bf16.msra.mxu0 0
      %1577 = vmatprep.subr.bf16.mxu0 0
      %1578 = vmatpush1.bf16.msra.mxu0 0
      %1579 = vmatprep.subr.bf16.mxu0 0
      %1580 = vmatpush1.bf16.msra.mxu0 0
      %1581 = vmatprep.subr.bf16.mxu0 0
      %1582 = vmatpush1.bf16.msra.mxu0 0
      %1583 = vmatprep.subr.bf16.mxu0 0
      %1584 = vmatpush1.bf16.msra.mxu0 0
      %1585 = vmatprep.subr.bf16.mxu0 0
      %1586 = vmatpush1.bf16.msra.mxu0 0
      %1587 = vmatprep.subr.bf16.mxu0 0
      %1588 = vmatpush1.bf16.msra.mxu0 0
      %1589 = vmatprep.subr.bf16.mxu0 0
      %1590 = vmatpush1.bf16.msra.mxu0 0
      %1591 = vmatprep.subr.bf16.mxu0 0
      %1592 = vmatpush1.bf16.msra.mxu0 0
      %1593 = vmatprep.subr.bf16.mxu0 0
      %1594 = vmatpush1.bf16.msra.mxu0 0
      %1595 = vmatprep.mubr.bf16.mxu0 0
      %1596 = vmatmul.mubr.bf16.gmra.mrb[0].mxu0 %v1555
      %v1597 = vpop.f32.mrb[0].mxu0
      %v1598 = vadd.f32 0.0, %v1597
      %v1599 = vpop.f32.mrb[0].mxu0
      %v1600 = vpop.f32.mrb[0].mxu0
      %v1601 = vadd.f32 0.0, %v1600
      %v1602 = vpop.f32.mrb[0].mxu0
      %1603 = vmatprep.mubr.bf16.mxu0 0
      %1604 = vmatmul.mubr.bf16.gmra.mrb[0].mxu0 %v1558
      %v1605 = vpop.f32.mrb[0].mxu0
      %v1606 = vadd.f32 0.0, %v1605
      %v1607 = vpop.f32.mrb[0].mxu0
      %v1608 = vpop.f32.mrb[0].mxu0
      %v1609 = vadd.f32 0.0, %v1608
      %v1610 = vpop.f32.mrb[0].mxu0
      %1611 = vdwg.mxu0
      %v1613 = vsel %vm477, %v1435, 0
      %v1616 = vsel %vm477, %v1436, 0
      %v1619 = vsel %vm1443, %v456, 0
      %1621 = vmatprep.subr.bf16.mxu0 0
      %1622 = vmatpush1.bf16.msra.mxu0 %v1619
      %1623 = vmatprep.subr.bf16.mxu0 0
      %1624 = vmatpush1.bf16.msra.mxu0 0
      %1625 = vmatprep.subr.bf16.mxu0 0
      %1626 = vmatpush1.bf16.msra.mxu0 0
      %1627 = vmatprep.subr.bf16.mxu0 0
      %1628 = vmatpush1.bf16.msra.mxu0 0
      %1629 = vmatprep.subr.bf16.mxu0 0
      %1630 = vmatpush1.bf16.msra.mxu0 0
      %1631 = vmatprep.subr.bf16.mxu0 0
      %1632 = vmatpush1.bf16.msra.mxu0 0
      %1633 = vmatprep.subr.bf16.mxu0 0
      %1634 = vmatpush1.bf16.msra.mxu0 0
      %1635 = vmatprep.subr.bf16.mxu0 0
      %1636 = vmatpush1.bf16.msra.mxu0 0
      %1637 = vmatprep.subr.bf16.mxu0 0
      %1638 = vmatpush1.bf16.msra.mxu0 0
      %1639 = vmatprep.subr.bf16.mxu0 0
      %1640 = vmatpush1.bf16.msra.mxu0 0
      %1641 = vmatprep.subr.bf16.mxu0 0
      %1642 = vmatpush1.bf16.msra.mxu0 0
      %1643 = vmatprep.subr.bf16.mxu0 0
      %1644 = vmatpush1.bf16.msra.mxu0 0
      %1645 = vmatprep.subr.bf16.mxu0 0
      %1646 = vmatpush1.bf16.msra.mxu0 0
      %1647 = vmatprep.subr.bf16.mxu0 0
      %1648 = vmatpush1.bf16.msra.mxu0 0
      %1649 = vmatprep.subr.bf16.mxu0 0
      %1650 = vmatpush1.bf16.msra.mxu0 0
      %1651 = vmatprep.subr.bf16.mxu0 0
      %1652 = vmatpush1.bf16.msra.mxu0 0
      %1653 = vmatprep.mubr.bf16.mxu0 0
      %1654 = vmatmul.mubr.bf16.gmra.mrb[0].mxu0 %v1613
      %v1655 = vpop.f32.mrb[0].mxu0
      %v1656 = vadd.f32 0.0, %v1655
      %v1657 = vpop.f32.mrb[0].mxu0
      %v1658 = vpop.f32.mrb[0].mxu0
      %v1659 = vadd.f32 0.0, %v1658
      %v1660 = vpop.f32.mrb[0].mxu0
      %1661 = vmatprep.mubr.bf16.mxu0 0
      %1662 = vmatmul.mubr.bf16.gmra.mrb[0].mxu0 %v1616
      %v1663 = vpop.f32.mrb[0].mxu0
      %v1664 = vadd.f32 0.0, %v1663
      %v1665 = vpop.f32.mrb[0].mxu0
      %v1666 = vpop.f32.mrb[0].mxu0
      %v1667 = vadd.f32 0.0, %v1666
      %v1668 = vpop.f32.mrb[0].mxu0
      %1669 = vdwg.mxu0
      %v1670 = vsel %vm395, %v1482, 0.0
      %v1671 = vsel %vm395, %v1540, 0.0
      %v1672 = vadd.f32 %v1670, %v1671
      %v1673 = vsel %vm395, %v1598, 0.0
      %v1674 = vadd.f32 %v1672, %v1673
      %v1675 = vsel %vm395, %v1656, 0.0
      %v1676 = vadd.f32 %v1674, %v1675
      %v1677 = vsel %vm395, %v1485, 0.0
      %v1678 = vsel %vm395, %v1543, 0.0
      %v1679 = vadd.f32 %v1677, %v1678
      %v1680 = vsel %vm395, %v1601, 0.0
      %v1681 = vadd.f32 %v1679, %v1680
      %v1682 = vsel %vm395, %v1659, 0.0
      %v1683 = vadd.f32 %v1681, %v1682
      %v1684 = vsel %vm395, %v1490, 0.0
      %v1685 = vsel %vm395, %v1548, 0.0
      %v1686 = vadd.f32 %v1684, %v1685
      %v1687 = vsel %vm395, %v1606, 0.0
      %v1688 = vadd.f32 %v1686, %v1687
      %v1689 = vsel %vm395, %v1664, 0.0
      %v1690 = vadd.f32 %v1688, %v1689
      %v1691 = vsel %vm395, %v1493, 0.0
      %v1692 = vsel %vm395, %v1551, 0.0
      %v1693 = vadd.f32 %v1691, %v1692
      %v1694 = vsel %vm395, %v1609, 0.0
      %v1695 = vadd.f32 %v1693, %v1694
      %v1696 = vsel %vm395, %v1667, 0.0
      %v1697 = vadd.f32 %v1695, %v1696
      %v1699 = vlaneseq
      %v1700 = vshrl.u32 %v1699, 7
      %v1701 = vsub.s32 0, %v1700
      %v1702 = vrot.slane %v458, %v1701
      %v1704 = vadd.f32 %v1676, %v1702
      %v1705 = vadd.f32 %v1683, %v1702
      %v1706 = vadd.f32 %v1690, %v1702
      %v1707 = vadd.f32 %v1697, %v1702
      %v1708 = vadd.f32 %v362, %v1704
      %v1709 = vadd.f32 %v363, %v1705
      %v1710 = vadd.f32 %v364, %v1706
      %v1711 = vadd.f32 %v365, %v1707
      %s1712 = scalar_lea.vmem %s25, %s357
      %v1713 = vld [vmem:[%s1712] sm:$0x1]
      %s1714 = scalar_lea.vmem %s27, %s357
      %v1715 = vld [vmem:[%s1714] sm:$0x1]
      %v1716 = vsel %vm395, %v1708, 0.0
      %1717 = vadd.xlane.f32.xlu0 %v1716
      %v1718 = vpop.xlane.xlu0 %1717
      %v1719 = vsel %vm395, %v1709, 0.0
      %1720 = vadd.xlane.f32.xlu0 %v1719
      %v1721 = vpop.xlane.xlu0 %1720
      %v1722 = vsel %vm395, %v1710, 0.0
      %1723 = vadd.xlane.f32.xlu0 %v1722
      %v1724 = vpop.xlane.xlu0 %1723
      %v1725 = vsel %vm395, %v1711, 0.0
      %1726 = vadd.xlane.f32.xlu0 %v1725
      %v1727 = vpop.xlane.xlu0 %1726
      %v1728 = vrcp.pop 32.0
      %v1729 = vmul.f32 %v1718, %v1728
      %v1730 = vmul.f32 %v1721, %v1728
      %v1731 = vmul.f32 %v1724, %v1728
      %v1732 = vmul.f32 %v1727, %v1728
      %v1733 = vsub.f32 %v1708, %v1729
      %v1734 = vsub.f32 %v1709, %v1730
      %v1735 = vsub.f32 %v1710, %v1731
      %v1736 = vsub.f32 %v1711, %v1732
      %v1737 = vmul.f32 %v1733, %v1733
      %v1738 = vmul.f32 %v1734, %v1734
      %v1739 = vmul.f32 %v1735, %v1735
      %v1740 = vmul.f32 %v1736, %v1736
      %v1741 = vsel %vm395, %v1737, 0.0
      %1742 = vadd.xlane.f32.xlu0 %v1741
      %v1743 = vpop.xlane.xlu0 %1742
      %v1744 = vsel %vm395, %v1738, 0.0
      %1745 = vadd.xlane.f32.xlu0 %v1744
      %v1746 = vpop.xlane.xlu0 %1745
      %v1747 = vsel %vm395, %v1739, 0.0
      %1748 = vadd.xlane.f32.xlu0 %v1747
      %v1749 = vpop.xlane.xlu0 %1748
      %v1750 = vsel %vm395, %v1740, 0.0
      %1751 = vadd.xlane.f32.xlu0 %v1750
      %v1752 = vpop.xlane.xlu0 %1751
      %v1753 = vmul.f32 %v1743, %v1728
      %v1754 = vmul.f32 %v1746, %v1728
      %v1755 = vmul.f32 %v1749, %v1728
      %v1756 = vmul.f32 %v1752, %v1728
      %v1757 = vadd.f32 %v1753, 1e-05
      %v1758 = vadd.f32 %v1754, 1e-05
      %v1759 = vadd.f32 %v1755, 1e-05
      %v1760 = vadd.f32 %v1756, 1e-05
      %v1761 = vrsqrt.pop %v1757
      %v1762 = vrsqrt.pop %v1758
      %v1763 = vrsqrt.pop %v1759
      %v1764 = vrsqrt.pop %v1760
      %v1765 = vmul.f32 %v1733, %v1761
      %v1766 = vmul.f32 %v1734, %v1762
      %v1767 = vmul.f32 %v1735, %v1763
      %v1768 = vmul.f32 %v1736, %v1764
      %v1770 = vlaneseq
      %v1771 = vshrl.u32 %v1770, 7
      %v1772 = vsub.s32 0, %v1771
      %v1773 = vrot.slane %v1713, %v1772
      %v1775 = vmul.f32 %v1765, %v1773
      %v1776 = vmul.f32 %v1766, %v1773
      %v1777 = vmul.f32 %v1767, %v1773
      %v1778 = vmul.f32 %v1768, %v1773
      %v1780 = vlaneseq
      %v1781 = vshrl.u32 %v1780, 7
      %v1782 = vsub.s32 0, %v1781
      %v1783 = vrot.slane %v1715, %v1782
      %v1785 = vadd.f32 %v1775, %v1783
      %v1786 = vadd.f32 %v1776, %v1783
      %v1787 = vadd.f32 %v1777, %v1783
      %v1788 = vadd.f32 %v1778, %v1783
      %s1789 = smul.addr %s366, 4
      %s1790 = scalar_lea.vmem %s17, %s1789
      %v1791 = vld [vmem:[%s1790] sm:$0xf]
      %v1792 = vld [vmem:[%s1790 + $0x4] sm:$0xf]
      %v1793 = vld [vmem:[%s1790 + $0x8] sm:$0xf]
      %v1794 = vld [vmem:[%s1790 + $0xc] sm:$0xf]
      %s1795 = scalar_lea.vmem %s19, %s357
      %v1796 = vld [vmem:[%s1795] sm:$0x1]
      %v1797 = vpack.c.bf16 %v1786, %v1785
      %v1798 = vpack.c.bf16 %v1788, %v1787
      %v1800 = vlaneseq
      %v1801 = vshrl.u32 %v1800, 7
      %v1802 = vsub.s32 0, %v1801
      %v1803 = vrot.slane %v1796, %v1802
      %v1809 = vunpack.c.l.b16 %v1791
      %v1810 = vunpack.c.l.b16 %v1792
      %v1811 = vunpack.c.l.b16 %v1793
      %v1812 = vunpack.c.l.b16 %v1794
      %v1813 = vpack.c.b16 %v1810, %v1809
      %v1814 = vpack.c.b16 %v1812, %v1811
      %v1818 = vsel %vm395, %v1797, 0
      %v1821 = vsel %vm395, %v1798, 0
      %1823 = vmatprep.subr.bf16.mxu0 0
      %1824 = vmatpush1.bf16.msra.mxu0 %v1813
      %1825 = vmatprep.subr.bf16.mxu0 0
      %1826 = vmatpush1.bf16.msra.mxu0 %v1814
      %1827 = vmatprep.subr.bf16.mxu0 0
      %1828 = vmatpush1.bf16.msra.mxu0 0
      %1829 = vmatprep.subr.bf16.mxu0 0
      %1830 = vmatpush1.bf16.msra.mxu0 0
      %1831 = vmatprep.subr.bf16.mxu0 0
      %1832 = vmatpush1.bf16.msra.mxu0 0
      %1833 = vmatprep.subr.bf16.mxu0 0
      %1834 = vmatpush1.bf16.msra.mxu0 0
      %1835 = vmatprep.subr.bf16.mxu0 0
      %1836 = vmatpush1.bf16.msra.mxu0 0
      %1837 = vmatprep.subr.bf16.mxu0 0
      %1838 = vmatpush1.bf16.msra.mxu0 0
      %1839 = vmatprep.subr.bf16.mxu0 0
      %1840 = vmatpush1.bf16.msra.mxu0 0
      %1841 = vmatprep.subr.bf16.mxu0 0
      %1842 = vmatpush1.bf16.msra.mxu0 0
      %1843 = vmatprep.subr.bf16.mxu0 0
      %1844 = vmatpush1.bf16.msra.mxu0 0
      %1845 = vmatprep.subr.bf16.mxu0 0
      %1846 = vmatpush1.bf16.msra.mxu0 0
      %1847 = vmatprep.subr.bf16.mxu0 0
      %1848 = vmatpush1.bf16.msra.mxu0 0
      %1849 = vmatprep.subr.bf16.mxu0 0
      %1850 = vmatpush1.bf16.msra.mxu0 0
      %1851 = vmatprep.subr.bf16.mxu0 0
      %1852 = vmatpush1.bf16.msra.mxu0 0
      %1853 = vmatprep.subr.bf16.mxu0 0
      %1854 = vmatpush1.bf16.msra.mxu0 0
      %1855 = vmatprep.mubr.bf16.mxu0 0
      %1856 = vmatmul.mubr.bf16.gmra.mrb[0].mxu0 %v1818
      %v1857 = vpop.f32.mrb[0].mxu0
      %v1858 = vadd.f32 %v1803, %v1857
      %v1859 = vpop.f32.mrb[0].mxu0
      %v1860 = vpop.f32.mrb[0].mxu0
      %v1861 = vadd.f32 %v1803, %v1860
      %v1862 = vpop.f32.mrb[0].mxu0
      %1863 = vmatprep.mubr.bf16.mxu0 0
      %1864 = vmatmul.mubr.bf16.gmra.mrb[0].mxu0 %v1821
      %v1865 = vpop.f32.mrb[0].mxu0
      %v1866 = vadd.f32 %v1803, %v1865
      %v1867 = vpop.f32.mrb[0].mxu0
      %v1868 = vpop.f32.mrb[0].mxu0
      %v1869 = vadd.f32 %v1803, %v1868
      %v1870 = vpop.f32.mrb[0].mxu0
      %1871 = vdwg.mxu0
      %v1872 = vmax.f32 %v1858, 0.0
      %v1873 = vmax.f32 %v1861, 0.0
      %v1874 = vmax.f32 %v1866, 0.0
      %v1875 = vmax.f32 %v1869, 0.0
      %s1876 = smul.u32 %s357, 8
      %s1877 = smul.addr %s1876, 4
      %s1878 = scalar_lea.vmem %s21, %s1877
      %v1879 = vld [vmem:[%s1878] sm:$0xf]
      %v1880 = vld [vmem:[%s1878 + $0x4] sm:$0xf]
      %v1881 = vld [vmem:[%s1878 + $0x8] sm:$0xf]
      %v1882 = vld [vmem:[%s1878 + $0xc] sm:$0xf]
      %v1883 = vld [vmem:[%s1878 + $0x10] sm:$0xf]
      %v1884 = vld [vmem:[%s1878 + $0x14] sm:$0xf]
      %v1885 = vld [vmem:[%s1878 + $0x18] sm:$0xf]
      %v1886 = vld [vmem:[%s1878 + $0x1c] sm:$0xf]
      %s1887 = scalar_lea.vmem %s23, %s357
      %v1888 = vld [vmem:[%s1887] sm:$0x1]
      %v1889 = vpack.c.bf16 %v1873, %v1872
      %v1890 = vpack.c.bf16 %v1875, %v1874
      %v1892 = vlaneseq
      %v1893 = vshrl.u32 %v1892, 7
      %v1894 = vsub.s32 0, %v1893
      %v1895 = vrot.slane %v1888, %v1894
      %v1905 = vunpack.c.l.b16 %v1879
      %v1906 = vunpack.c.l.b16 %v1880
      %v1907 = vunpack.c.l.b16 %v1881
      %v1908 = vunpack.c.l.b16 %v1882
      %v1909 = vunpack.c.l.b16 %v1883
      %v1910 = vunpack.c.l.b16 %v1884
      %v1911 = vunpack.c.l.b16 %v1885
      %v1912 = vunpack.c.l.b16 %v1886
      %v1913 = vpack.c.b16 %v1906, %v1905
      %v1914 = vpack.c.b16 %v1908, %v1907
      %v1915 = vpack.c.b16 %v1910, %v1909
      %v1916 = vpack.c.b16 %v1912, %v1911
      %vm1921 = vcmask 523264
      %v1923 = vsel %vm1921, %v1889, 0
      %v1926 = vsel %vm1921, %v1890, 0
      %1928 = vmatprep.subr.bf16.mxu0 0
      %1929 = vmatpush1.bf16.msra.mxu0 %v1913
      %1930 = vmatprep.subr.bf16.mxu0 0
      %1931 = vmatpush1.bf16.msra.mxu0 %v1914
      %1932 = vmatprep.subr.bf16.mxu0 0
      %1933 = vmatpush1.bf16.msra.mxu0 %v1915
      %1934 = vmatprep.subr.bf16.mxu0 0
      %1935 = vmatpush1.bf16.msra.mxu0 %v1916
      %1936 = vmatprep.subr.bf16.mxu0 0
      %1937 = vmatpush1.bf16.msra.mxu0 0
      %1938 = vmatprep.subr.bf16.mxu0 0
      %1939 = vmatpush1.bf16.msra.mxu0 0
      %1940 = vmatprep.subr.bf16.mxu0 0
      %1941 = vmatpush1.bf16.msra.mxu0 0
      %1942 = vmatprep.subr.bf16.mxu0 0
      %1943 = vmatpush1.bf16.msra.mxu0 0
      %1944 = vmatprep.subr.bf16.mxu0 0
      %1945 = vmatpush1.bf16.msra.mxu0 0
      %1946 = vmatprep.subr.bf16.mxu0 0
      %1947 = vmatpush1.bf16.msra.mxu0 0
      %1948 = vmatprep.subr.bf16.mxu0 0
      %1949 = vmatpush1.bf16.msra.mxu0 0
      %1950 = vmatprep.subr.bf16.mxu0 0
      %1951 = vmatpush1.bf16.msra.mxu0 0
      %1952 = vmatprep.subr.bf16.mxu0 0
      %1953 = vmatpush1.bf16.msra.mxu0 0
      %1954 = vmatprep.subr.bf16.mxu0 0
      %1955 = vmatpush1.bf16.msra.mxu0 0
      %1956 = vmatprep.subr.bf16.mxu0 0
      %1957 = vmatpush1.bf16.msra.mxu0 0
      %1958 = vmatprep.subr.bf16.mxu0 0
      %1959 = vmatpush1.bf16.msra.mxu0 0
      %1960 = vmatprep.mubr.bf16.mxu0 0
      %1961 = vmatmul.mubr.bf16.gmra.mrb[0].mxu0 %v1923
      %v1962 = vpop.f32.mrb[0].mxu0
      %v1963 = vadd.f32 %v1895, %v1962
      %v1964 = vpop.f32.mrb[0].mxu0
      %v1965 = vpop.f32.mrb[0].mxu0
      %v1966 = vadd.f32 %v1895, %v1965
      %v1967 = vpop.f32.mrb[0].mxu0
      %1968 = vmatprep.mubr.bf16.mxu0 0
      %1969 = vmatmul.mubr.bf16.gmra.mrb[0].mxu0 %v1926
      %v1970 = vpop.f32.mrb[0].mxu0
      %v1971 = vadd.f32 %v1895, %v1970
      %v1972 = vpop.f32.mrb[0].mxu0
      %v1973 = vpop.f32.mrb[0].mxu0
      %v1974 = vadd.f32 %v1895, %v1973
      %v1975 = vpop.f32.mrb[0].mxu0
      %1976 = vdwg.mxu0
      %v1977 = vadd.f32 %v1785, %v1963
      %v1978 = vadd.f32 %v1786, %v1966
      %v1979 = vadd.f32 %v1787, %v1971
      %v1980 = vadd.f32 %v1788, %v1974
      %s1981 = scalar_lea.vmem %s29, %s357
      %v1982 = vld [vmem:[%s1981] sm:$0x1]
      %s1983 = scalar_lea.vmem %s31, %s357
      %v1984 = vld [vmem:[%s1983] sm:$0x1]
      %v1985 = vsel %vm395, %v1977, 0.0
      %1986 = vadd.xlane.f32.xlu0 %v1985
      %v1987 = vpop.xlane.xlu0 %1986
      %v1988 = vsel %vm395, %v1978, 0.0
      %1989 = vadd.xlane.f32.xlu0 %v1988
      %v1990 = vpop.xlane.xlu0 %1989
      %v1991 = vsel %vm395, %v1979, 0.0
      %1992 = vadd.xlane.f32.xlu0 %v1991
      %v1993 = vpop.xlane.xlu0 %1992
      %v1994 = vsel %vm395, %v1980, 0.0
      %1995 = vadd.xlane.f32.xlu0 %v1994
      %v1996 = vpop.xlane.xlu0 %1995
      %v1997 = vmul.f32 %v1987, %v1728
      %v1998 = vmul.f32 %v1990, %v1728
      %v1999 = vmul.f32 %v1993, %v1728
      %v2000 = vmul.f32 %v1996, %v1728
      %v2001 = vsub.f32 %v1977, %v1997
      %v2002 = vsub.f32 %v1978, %v1998
      %v2003 = vsub.f32 %v1979, %v1999
      %v2004 = vsub.f32 %v1980, %v2000
      %v2005 = vmul.f32 %v2001, %v2001
      %v2006 = vmul.f32 %v2002, %v2002
      %v2007 = vmul.f32 %v2003, %v2003
      %v2008 = vmul.f32 %v2004, %v2004
      %v2009 = vsel %vm395, %v2005, 0.0
      %2010 = vadd.xlane.f32.xlu0 %v2009
      %v2011 = vpop.xlane.xlu0 %2010
      %v2012 = vsel %vm395, %v2006, 0.0
      %2013 = vadd.xlane.f32.xlu0 %v2012
      %v2014 = vpop.xlane.xlu0 %2013
      %v2015 = vsel %vm395, %v2007, 0.0
      %2016 = vadd.xlane.f32.xlu0 %v2015
      %v2017 = vpop.xlane.xlu0 %2016
      %v2018 = vsel %vm395, %v2008, 0.0
      %2019 = vadd.xlane.f32.xlu0 %v2018
      %v2020 = vpop.xlane.xlu0 %2019
      %v2021 = vmul.f32 %v2011, %v1728
      %v2022 = vmul.f32 %v2014, %v1728
      %v2023 = vmul.f32 %v2017, %v1728
      %v2024 = vmul.f32 %v2020, %v1728
      %v2025 = vadd.f32 %v2021, 1e-05
      %v2026 = vadd.f32 %v2022, 1e-05
      %v2027 = vadd.f32 %v2023, 1e-05
      %v2028 = vadd.f32 %v2024, 1e-05
      %v2029 = vrsqrt.pop %v2025
      %v2030 = vrsqrt.pop %v2026
      %v2031 = vrsqrt.pop %v2027
      %v2032 = vrsqrt.pop %v2028
      %v2033 = vmul.f32 %v2001, %v2029
      %v2034 = vmul.f32 %v2002, %v2030
      %v2035 = vmul.f32 %v2003, %v2031
      %v2036 = vmul.f32 %v2004, %v2032
      %v2038 = vlaneseq
      %v2039 = vshrl.u32 %v2038, 7
      %v2040 = vsub.s32 0, %v2039
      %v2041 = vrot.slane %v1982, %v2040
      %v2043 = vmul.f32 %v2033, %v2041
      %v2044 = vmul.f32 %v2034, %v2041
      %v2045 = vmul.f32 %v2035, %v2041
      %v2046 = vmul.f32 %v2036, %v2041
      %v2048 = vlaneseq
      %v2049 = vshrl.u32 %v2048, 7
      %v2050 = vsub.s32 0, %v2049
      %v2051 = vrot.slane %v1984, %v2050
      %v2053 = vadd.f32 %v2043, %v2051
      %v2054 = vadd.f32 %v2044, %v2051
      %v2055 = vadd.f32 %v2045, %v2051
      %v2056 = vadd.f32 %v2046, %v2051
    $region202: #{transformer_model_forward.1} parent=1 // loop_footer
      %s361 = sadd.s32 1, %s357
    $region203: #{transformer_model_forward.1} parent=1 // loop_footer_branch
      %356 = sbr.rel target = $region199
    $region204: #{transformer_model_forward.1} parent=1 // loop_exit
      _
    %v2057 = vpack.c.bf16 %v363, %v362
    %v2058 = vpack.c.bf16 %v365, %v364
    %v2059 = vld [vmem:[%s3] sm:$0xff]
    %v2060 = vld [vmem:[%s3 + $0x8] sm:$0xff]
    %v2061 = vld [vmem:[%s7] sm:$0xff]
    %v2062 = vadd.f32 %v2059, %v2061
    %v2063 = vadd.f32 %v2060, %v2061
    loop: start=0, step=1, limit=2
    $region205: #{transformer_model_forward.1} parent=1 // loop_pre_header
      _
    $region206: #{transformer_model_forward.1} parent=1 // loop_header
      %s2065 = sphi 0, %s2069
      %p2066 = scmp.ge.s32.totalorder %s2065, 2
      %v2070 = vphi %v2062, %v4792
      %v2071 = vphi %v2063, %v4793
    $region207: #{transformer_model_forward.1} parent=1 // loop_header_branch
      %2068 = sbr.rel (%p2066) target = $region211
    $region208: #{transformer_model_forward.1} parent=1 // loop_body
      %s2072 = smul.u32 %s2065, 4
      %s2073 = smul.addr %s2072, 4
      %s2074 = scalar_lea.vmem %s33, %s2073
      %v2075 = vld [vmem:[%s2074] sm:$0xf]
      %v2076 = vld [vmem:[%s2074 + $0x4] sm:$0xf]
      %v2077 = vld [vmem:[%s2074 + $0x8] sm:$0xf]
      %v2078 = vld [vmem:[%s2074 + $0xc] sm:$0xf]
      %s2079 = scalar_lea.vmem [#allocation2], %s2065
      %v2080 = vld [vmem:[%s2079] sm:$0x1]
      %v2081 = vpack.c.bf16 %v2071, %v2070
      %v2083 = vlaneseq
      %v2084 = vshrl.u32 %v2083, 7
      %v2085 = vsub.s32 0, %v2084
      %v2086 = vrot.slane %v2080, %v2085
      %v2092 = vunpack.c.l.b16 %v2075
      %v2093 = vunpack.c.l.b16 %v2076
      %v2094 = vunpack.c.l.b16 %v2077
      %v2095 = vunpack.c.l.b16 %v2078
      %v2096 = vpack.c.b16 %v2093, %v2092
      %v2097 = vpack.c.b16 %v2095, %v2094
      %vm2100 = vcmask 261120
      %v2102 = vsel %vm2100, %v2081, 0
      %2104 = vmatprep.subr.bf16.mxu0 0
      %2105 = vmatpush1.bf16.msra.mxu0 %v2096
      %2106 = vmatprep.subr.bf16.mxu0 0
      %2107 = vmatpush1.bf16.msra.mxu0 %v2097
      %2108 = vmatprep.subr.bf16.mxu0 0
      %2109 = vmatpush1.bf16.msra.mxu0 0
      %2110 = vmatprep.subr.bf16.mxu0 0
      %2111 = vmatpush1.bf16.msra.mxu0 0
      %2112 = vmatprep.subr.bf16.mxu0 0
      %2113 = vmatpush1.bf16.msra.mxu0 0
      %2114 = vmatprep.subr.bf16.mxu0 0
      %2115 = vmatpush1.bf16.msra.mxu0 0
      %2116 = vmatprep.subr.bf16.mxu0 0
      %2117 = vmatpush1.bf16.msra.mxu0 0
      %2118 = vmatprep.subr.bf16.mxu0 0
      %2119 = vmatpush1.bf16.msra.mxu0 0
      %2120 = vmatprep.subr.bf16.mxu0 0
      %2121 = vmatpush1.bf16.msra.mxu0 0
      %2122 = vmatprep.subr.bf16.mxu0 0
      %2123 = vmatpush1.bf16.msra.mxu0 0
      %2124 = vmatprep.subr.bf16.mxu0 0
      %2125 = vmatpush1.bf16.msra.mxu0 0
      %2126 = vmatprep.subr.bf16.mxu0 0
      %2127 = vmatpush1.bf16.msra.mxu0 0
      %2128 = vmatprep.subr.bf16.mxu0 0
      %2129 = vmatpush1.bf16.msra.mxu0 0
      %2130 = vmatprep.subr.bf16.mxu0 0
      %2131 = vmatpush1.bf16.msra.mxu0 0
      %2132 = vmatprep.subr.bf16.mxu0 0
      %2133 = vmatpush1.bf16.msra.mxu0 0
      %2134 = vmatprep.subr.bf16.mxu0 0
      %2135 = vmatpush1.bf16.msra.mxu0 0
      %2136 = vmatprep.mubr.bf16.mxu0 0
      %2137 = vmatmul.mubr.bf16.gmra.mrb[0].mxu0 %v2102
      %v2138 = vpop.f32.mrb[0].mxu0
      %v2139 = vadd.f32 %v2086, %v2138
      %v2140 = vpop.f32.mrb[0].mxu0
      %v2141 = vpop.f32.mrb[0].mxu0
      %v2142 = vadd.f32 %v2086, %v2141
      %v2143 = vpop.f32.mrb[0].mxu0
      %2144 = vdwg.mxu0
      %s2145 = smul.addr %s2072, 4
      %s2146 = scalar_lea.vmem %s37, %s2145
      %v2147 = vld [vmem:[%s2146] sm:$0xf]
      %v2148 = vld [vmem:[%s2146 + $0x4] sm:$0xf]
      %v2149 = vld [vmem:[%s2146 + $0x8] sm:$0xf]
      %v2150 = vld [vmem:[%s2146 + $0xc] sm:$0xf]
      %s2151 = scalar_lea.vmem [#allocation4], %s2065
      %v2152 = vld [vmem:[%s2151] sm:$0x1]
      %v2153 = vpack.c.bf16 %v2142, %v2139
      %v2155 = vunpack.c.l.b16 %v2153
      %v2156 = vunpack.c.h.b16 %v2153
      %v2157 = vpack.c.b16 %v2155, %v2155
      %v2158 = vpack.c.b16 %v2156, %v2156
      %2159 = vrot.lane.b32.xlu0 %v2157, 120
      %v2160 = vpop.permute.xlu0 %2159
      %2161 = vrot.lane.b32.xlu0 %v2158, 120
      %v2162 = vpop.permute.xlu0 %2161
      %2163 = vrot.lane.b32.xlu0 %v2157, 112
      %v2164 = vpop.permute.xlu0 %2163
      %2165 = vrot.lane.b32.xlu0 %v2158, 112
      %v2166 = vpop.permute.xlu0 %2165
      %2167 = vrot.lane.b32.xlu0 %v2157, 104
      %v2168 = vpop.permute.xlu0 %2167
      %2169 = vrot.lane.b32.xlu0 %v2158, 104
      %v2170 = vpop.permute.xlu0 %2169
      %2171 = vrot.lane.b32.xlu0 %v2157, 96
      %v2172 = vpop.permute.xlu0 %2171
      %vm2173 = vcmask 64512
      %v2175 = vsel %vm2173, %v2157, 0
      %v2178 = vsel %vm2173, %v2172, 0
      %2180 = vmatprep.subr.bf16.mxu0 0
      %2181 = vmatpush1.bf16.xpose.msra.mxu0 %v2178
      %2182 = vmatprep.subr.bf16.mxu0 0
      %2183 = vmatpush1.bf16.xpose.msra.mxu0 0
      %2184 = vmatprep.subr.bf16.mxu0 0
      %2185 = vmatpush1.bf16.xpose.msra.mxu0 0
      %2186 = vmatprep.subr.bf16.mxu0 0
      %2187 = vmatpush1.bf16.xpose.msra.mxu0 0
      %2188 = vmatprep.subr.bf16.mxu0 0
      %2189 = vmatpush1.bf16.xpose.msra.mxu0 0
      %2190 = vmatprep.subr.bf16.mxu0 0
      %2191 = vmatpush1.bf16.xpose.msra.mxu0 0
      %2192 = vmatprep.subr.bf16.mxu0 0
      %2193 = vmatpush1.bf16.xpose.msra.mxu0 0
      %2194 = vmatprep.subr.bf16.mxu0 0
      %2195 = vmatpush1.bf16.xpose.msra.mxu0 0
      %2196 = vmatprep.subr.bf16.mxu0 0
      %2197 = vmatpush1.bf16.xpose.msra.mxu0 0
      %2198 = vmatprep.subr.bf16.mxu0 0
      %2199 = vmatpush1.bf16.xpose.msra.mxu0 0
      %2200 = vmatprep.subr.bf16.mxu0 0
      %2201 = vmatpush1.bf16.xpose.msra.mxu0 0
      %2202 = vmatprep.subr.bf16.mxu0 0
      %2203 = vmatpush1.bf16.xpose.msra.mxu0 0
      %2204 = vmatprep.subr.bf16.mxu0 0
      %2205 = vmatpush1.bf16.xpose.msra.mxu0 0
      %2206 = vmatprep.subr.bf16.mxu0 0
      %2207 = vmatpush1.bf16.xpose.msra.mxu0 0
      %2208 = vmatprep.subr.bf16.mxu0 0
      %2209 = vmatpush1.bf16.xpose.msra.mxu0 0
      %2210 = vmatprep.subr.bf16.mxu0 0
      %2211 = vmatpush1.bf16.xpose.msra.mxu0 0
      %2212 = vmatprep.mubr.bf16.mxu0 0
      %2213 = vmatmul.mubr.bf16.gmra.mrb[0].mxu0 %v2175
      %v2214 = vpop.f32.mrb[0].mxu0
      %v2215 = vadd.f32 0.0, %v2214
      %v2216 = vpop.f32.mrb[0].mxu0
      %v2217 = vpop.f32.mrb[0].mxu0
      %v2218 = vpop.f32.mrb[0].mxu0
      %2219 = vdwg.mxu0
      %2220 = vrot.lane.b32.xlu0 %v2158, 96
      %v2221 = vpop.permute.xlu0 %2220
      %v2223 = vsel %vm2173, %v2158, 0
      %v2226 = vsel %vm2173, %v2221, 0
      %2228 = vmatprep.subr.bf16.mxu0 0
      %2229 = vmatpush1.bf16.xpose.msra.mxu0 %v2226
      %2230 = vmatprep.subr.bf16.mxu0 0
      %2231 = vmatpush1.bf16.xpose.msra.mxu0 0
      %2232 = vmatprep.subr.bf16.mxu0 0
      %2233 = vmatpush1.bf16.xpose.msra.mxu0 0
      %2234 = vmatprep.subr.bf16.mxu0 0
      %2235 = vmatpush1.bf16.xpose.msra.mxu0 0
      %2236 = vmatprep.subr.bf16.mxu0 0
      %2237 = vmatpush1.bf16.xpose.msra.mxu0 0
      %2238 = vmatprep.subr.bf16.mxu0 0
      %2239 = vmatpush1.bf16.xpose.msra.mxu0 0
      %2240 = vmatprep.subr.bf16.mxu0 0
      %2241 = vmatpush1.bf16.xpose.msra.mxu0 0
      %2242 = vmatprep.subr.bf16.mxu0 0
      %2243 = vmatpush1.bf16.xpose.msra.mxu0 0
      %2244 = vmatprep.subr.bf16.mxu0 0
      %2245 = vmatpush1.bf16.xpose.msra.mxu0 0
      %2246 = vmatprep.subr.bf16.mxu0 0
      %2247 = vmatpush1.bf16.xpose.msra.mxu0 0
      %2248 = vmatprep.subr.bf16.mxu0 0
      %2249 = vmatpush1.bf16.xpose.msra.mxu0 0
      %2250 = vmatprep.subr.bf16.mxu0 0
      %2251 = vmatpush1.bf16.xpose.msra.mxu0 0
      %2252 = vmatprep.subr.bf16.mxu0 0
      %2253 = vmatpush1.bf16.xpose.msra.mxu0 0
      %2254 = vmatprep.subr.bf16.mxu0 0
      %2255 = vmatpush1.bf16.xpose.msra.mxu0 0
      %2256 = vmatprep.subr.bf16.mxu0 0
      %2257 = vmatpush1.bf16.xpose.msra.mxu0 0
      %2258 = vmatprep.subr.bf16.mxu0 0
      %2259 = vmatpush1.bf16.xpose.msra.mxu0 0
      %2260 = vmatprep.mubr.bf16.mxu0 0
      %2261 = vmatmul.mubr.bf16.gmra.mrb[0].mxu0 %v2223
      %v2262 = vpop.f32.mrb[0].mxu0
      %v2263 = vadd.f32 0.0, %v2262
      %v2264 = vpop.f32.mrb[0].mxu0
      %v2265 = vpop.f32.mrb[0].mxu0
      %v2266 = vpop.f32.mrb[0].mxu0
      %2267 = vdwg.mxu0
      %v2268 = vunpack.c.l.b16 %v2160
      %v2269 = vpack.c.b16 %v2268, %v2268
      %2270 = vrot.lane.b32.xlu0 %v2269, 96
      %v2271 = vpop.permute.xlu0 %2270
      %v2273 = vsel %vm2173, %v2160, 0
      %v2276 = vsel %vm2173, %v2271, 0
      %2278 = vmatprep.subr.bf16.mxu0 0
      %2279 = vmatpush1.bf16.xpose.msra.mxu0 %v2276
      %2280 = vmatprep.subr.bf16.mxu0 0
      %2281 = vmatpush1.bf16.xpose.msra.mxu0 0
      %2282 = vmatprep.subr.bf16.mxu0 0
      %2283 = vmatpush1.bf16.xpose.msra.mxu0 0
      %2284 = vmatprep.subr.bf16.mxu0 0
      %2285 = vmatpush1.bf16.xpose.msra.mxu0 0
      %2286 = vmatprep.subr.bf16.mxu0 0
      %2287 = vmatpush1.bf16.xpose.msra.mxu0 0
      %2288 = vmatprep.subr.bf16.mxu0 0
      %2289 = vmatpush1.bf16.xpose.msra.mxu0 0
      %2290 = vmatprep.subr.bf16.mxu0 0
      %2291 = vmatpush1.bf16.xpose.msra.mxu0 0
      %2292 = vmatprep.subr.bf16.mxu0 0
      %2293 = vmatpush1.bf16.xpose.msra.mxu0 0
      %2294 = vmatprep.subr.bf16.mxu0 0
      %2295 = vmatpush1.bf16.xpose.msra.mxu0 0
      %2296 = vmatprep.subr.bf16.mxu0 0
      %2297 = vmatpush1.bf16.xpose.msra.mxu0 0
      %2298 = vmatprep.subr.bf16.mxu0 0
      %2299 = vmatpush1.bf16.xpose.msra.mxu0 0
      %2300 = vmatprep.subr.bf16.mxu0 0
      %2301 = vmatpush1.bf16.xpose.msra.mxu0 0
      %2302 = vmatprep.subr.bf16.mxu0 0
      %2303 = vmatpush1.bf16.xpose.msra.mxu0 0
      %2304 = vmatprep.subr.bf16.mxu0 0
      %2305 = vmatpush1.bf16.xpose.msra.mxu0 0
      %2306 = vmatprep.subr.bf16.mxu0 0
      %2307 = vmatpush1.bf16.xpose.msra.mxu0 0
      %2308 = vmatprep.subr.bf16.mxu0 0
      %2309 = vmatpush1.bf16.xpose.msra.mxu0 0
      %2310 = vmatprep.mubr.bf16.mxu0 0
      %2311 = vmatmul.mubr.bf16.gmra.mrb[0].mxu0 %v2273
      %v2312 = vpop.f32.mrb[0].mxu0
      %v2313 = vadd.f32 0.0, %v2312
      %v2314 = vpop.f32.mrb[0].mxu0
      %v2315 = vpop.f32.mrb[0].mxu0
      %v2316 = vpop.f32.mrb[0].mxu0
      %2317 = vdwg.mxu0
      %v2318 = vunpack.c.l.b16 %v2162
      %v2319 = vpack.c.b16 %v2318, %v2318
      %2320 = vrot.lane.b32.xlu0 %v2319, 96
      %v2321 = vpop.permute.xlu0 %2320
      %v2323 = vsel %vm2173, %v2162, 0
      %v2326 = vsel %vm2173, %v2321, 0
      %2328 = vmatprep.subr.bf16.mxu0 0
      %2329 = vmatpush1.bf16.xpose.msra.mxu0 %v2326
      %2330 = vmatprep.subr.bf16.mxu0 0
      %2331 = vmatpush1.bf16.xpose.msra.mxu0 0
      %2332 = vmatprep.subr.bf16.mxu0 0
      %2333 = vmatpush1.bf16.xpose.msra.mxu0 0
      %2334 = vmatprep.subr.bf16.mxu0 0
      %2335 = vmatpush1.bf16.xpose.msra.mxu0 0
      %2336 = vmatprep.subr.bf16.mxu0 0
      %2337 = vmatpush1.bf16.xpose.msra.mxu0 0
      %2338 = vmatprep.subr.bf16.mxu0 0
      %2339 = vmatpush1.bf16.xpose.msra.mxu0 0
      %2340 = vmatprep.subr.bf16.mxu0 0
      %2341 = vmatpush1.bf16.xpose.msra.mxu0 0
      %2342 = vmatprep.subr.bf16.mxu0 0
      %2343 = vmatpush1.bf16.xpose.msra.mxu0 0
      %2344 = vmatprep.subr.bf16.mxu0 0
      %2345 = vmatpush1.bf16.xpose.msra.mxu0 0
      %2346 = vmatprep.subr.bf16.mxu0 0
      %2347 = vmatpush1.bf16.xpose.msra.mxu0 0
      %2348 = vmatprep.subr.bf16.mxu0 0
      %2349 = vmatpush1.bf16.xpose.msra.mxu0 0
      %2350 = vmatprep.subr.bf16.mxu0 0
      %2351 = vmatpush1.bf16.xpose.msra.mxu0 0
      %2352 = vmatprep.subr.bf16.mxu0 0
      %2353 = vmatpush1.bf16.xpose.msra.mxu0 0
      %2354 = vmatprep.subr.bf16.mxu0 0
      %2355 = vmatpush1.bf16.xpose.msra.mxu0 0
      %2356 = vmatprep.subr.bf16.mxu0 0
      %2357 = vmatpush1.bf16.xpose.msra.mxu0 0
      %2358 = vmatprep.subr.bf16.mxu0 0
      %2359 = vmatpush1.bf16.xpose.msra.mxu0 0
      %2360 = vmatprep.mubr.bf16.mxu0 0
      %2361 = vmatmul.mubr.bf16.gmra.mrb[0].mxu0 %v2323
      %v2362 = vpop.f32.mrb[0].mxu0
      %v2363 = vadd.f32 0.0, %v2362
      %v2364 = vpop.f32.mrb[0].mxu0
      %v2365 = vpop.f32.mrb[0].mxu0
      %v2366 = vpop.f32.mrb[0].mxu0
      %2367 = vdwg.mxu0
      %v2368 = vunpack.c.l.b16 %v2164
      %v2369 = vpack.c.b16 %v2368, %v2368
      %2370 = vrot.lane.b32.xlu0 %v2369, 96
      %v2371 = vpop.permute.xlu0 %2370
      %v2373 = vsel %vm2173, %v2164, 0
      %v2376 = vsel %vm2173, %v2371, 0
      %2378 = vmatprep.subr.bf16.mxu0 0
      %2379 = vmatpush1.bf16.xpose.msra.mxu0 %v2376
      %2380 = vmatprep.subr.bf16.mxu0 0
      %2381 = vmatpush1.bf16.xpose.msra.mxu0 0
      %2382 = vmatprep.subr.bf16.mxu0 0
      %2383 = vmatpush1.bf16.xpose.msra.mxu0 0
      %2384 = vmatprep.subr.bf16.mxu0 0
      %2385 = vmatpush1.bf16.xpose.msra.mxu0 0
      %2386 = vmatprep.subr.bf16.mxu0 0
      %2387 = vmatpush1.bf16.xpose.msra.mxu0 0
      %2388 = vmatprep.subr.bf16.mxu0 0
      %2389 = vmatpush1.bf16.xpose.msra.mxu0 0
      %2390 = vmatprep.subr.bf16.mxu0 0
      %2391 = vmatpush1.bf16.xpose.msra.mxu0 0
      %2392 = vmatprep.subr.bf16.mxu0 0
      %2393 = vmatpush1.bf16.xpose.msra.mxu0 0
      %2394 = vmatprep.subr.bf16.mxu0 0
      %2395 = vmatpush1.bf16.xpose.msra.mxu0 0
      %2396 = vmatprep.subr.bf16.mxu0 0
      %2397 = vmatpush1.bf16.xpose.msra.mxu0 0
      %2398 = vmatprep.subr.bf16.mxu0 0
      %2399 = vmatpush1.bf16.xpose.msra.mxu0 0
      %2400 = vmatprep.subr.bf16.mxu0 0
      %2401 = vmatpush1.bf16.xpose.msra.mxu0 0
      %2402 = vmatprep.subr.bf16.mxu0 0
      %2403 = vmatpush1.bf16.xpose.msra.mxu0 0
      %2404 = vmatprep.subr.bf16.mxu0 0
      %2405 = vmatpush1.bf16.xpose.msra.mxu0 0
      %2406 = vmatprep.subr.bf16.mxu0 0
      %2407 = vmatpush1.bf16.xpose.msra.mxu0 0
      %2408 = vmatprep.subr.bf16.mxu0 0
      %2409 = vmatpush1.bf16.xpose.msra.mxu0 0
      %2410 = vmatprep.mubr.bf16.mxu0 0
      %2411 = vmatmul.mubr.bf16.gmra.mrb[0].mxu0 %v2373
      %v2412 = vpop.f32.mrb[0].mxu0
      %v2413 = vadd.f32 0.0, %v2412
      %v2414 = vpop.f32.mrb[0].mxu0
      %v2415 = vpop.f32.mrb[0].mxu0
      %v2416 = vpop.f32.mrb[0].mxu0
      %2417 = vdwg.mxu0
      %v2418 = vunpack.c.l.b16 %v2166
      %v2419 = vpack.c.b16 %v2418, %v2418
      %2420 = vrot.lane.b32.xlu0 %v2419, 96
      %v2421 = vpop.permute.xlu0 %2420
      %v2423 = vsel %vm2173, %v2166, 0
      %v2426 = vsel %vm2173, %v2421, 0
      %2428 = vmatprep.subr.bf16.mxu0 0
      %2429 = vmatpush1.bf16.xpose.msra.mxu0 %v2426
      %2430 = vmatprep.subr.bf16.mxu0 0
      %2431 = vmatpush1.bf16.xpose.msra.mxu0 0
      %2432 = vmatprep.subr.bf16.mxu0 0
      %2433 = vmatpush1.bf16.xpose.msra.mxu0 0
      %2434 = vmatprep.subr.bf16.mxu0 0
      %2435 = vmatpush1.bf16.xpose.msra.mxu0 0
      %2436 = vmatprep.subr.bf16.mxu0 0
      %2437 = vmatpush1.bf16.xpose.msra.mxu0 0
      %2438 = vmatprep.subr.bf16.mxu0 0
      %2439 = vmatpush1.bf16.xpose.msra.mxu0 0
      %2440 = vmatprep.subr.bf16.mxu0 0
      %2441 = vmatpush1.bf16.xpose.msra.mxu0 0
      %2442 = vmatprep.subr.bf16.mxu0 0
      %2443 = vmatpush1.bf16.xpose.msra.mxu0 0
      %2444 = vmatprep.subr.bf16.mxu0 0
      %2445 = vmatpush1.bf16.xpose.msra.mxu0 0
      %2446 = vmatprep.subr.bf16.mxu0 0
      %2447 = vmatpush1.bf16.xpose.msra.mxu0 0
      %2448 = vmatprep.subr.bf16.mxu0 0
      %2449 = vmatpush1.bf16.xpose.msra.mxu0 0
      %2450 = vmatprep.subr.bf16.mxu0 0
      %2451 = vmatpush1.bf16.xpose.msra.mxu0 0
      %2452 = vmatprep.subr.bf16.mxu0 0
      %2453 = vmatpush1.bf16.xpose.msra.mxu0 0
      %2454 = vmatprep.subr.bf16.mxu0 0
      %2455 = vmatpush1.bf16.xpose.msra.mxu0 0
      %2456 = vmatprep.subr.bf16.mxu0 0
      %2457 = vmatpush1.bf16.xpose.msra.mxu0 0
      %2458 = vmatprep.subr.bf16.mxu0 0
      %2459 = vmatpush1.bf16.xpose.msra.mxu0 0
      %2460 = vmatprep.mubr.bf16.mxu0 0
      %2461 = vmatmul.mubr.bf16.gmra.mrb[0].mxu0 %v2423
      %v2462 = vpop.f32.mrb[0].mxu0
      %v2463 = vadd.f32 0.0, %v2462
      %v2464 = vpop.f32.mrb[0].mxu0
      %v2465 = vpop.f32.mrb[0].mxu0
      %v2466 = vpop.f32.mrb[0].mxu0
      %2467 = vdwg.mxu0
      %v2468 = vunpack.c.l.b16 %v2168
      %v2469 = vpack.c.b16 %v2468, %v2468
      %2470 = vrot.lane.b32.xlu0 %v2469, 96
      %v2471 = vpop.permute.xlu0 %2470
      %v2473 = vsel %vm2173, %v2168, 0
      %v2476 = vsel %vm2173, %v2471, 0
      %2478 = vmatprep.subr.bf16.mxu0 0
      %2479 = vmatpush1.bf16.xpose.msra.mxu0 %v2476
      %2480 = vmatprep.subr.bf16.mxu0 0
      %2481 = vmatpush1.bf16.xpose.msra.mxu0 0
      %2482 = vmatprep.subr.bf16.mxu0 0
      %2483 = vmatpush1.bf16.xpose.msra.mxu0 0
      %2484 = vmatprep.subr.bf16.mxu0 0
      %2485 = vmatpush1.bf16.xpose.msra.mxu0 0
      %2486 = vmatprep.subr.bf16.mxu0 0
      %2487 = vmatpush1.bf16.xpose.msra.mxu0 0
      %2488 = vmatprep.subr.bf16.mxu0 0
      %2489 = vmatpush1.bf16.xpose.msra.mxu0 0
      %2490 = vmatprep.subr.bf16.mxu0 0
      %2491 = vmatpush1.bf16.xpose.msra.mxu0 0
      %2492 = vmatprep.subr.bf16.mxu0 0
      %2493 = vmatpush1.bf16.xpose.msra.mxu0 0
      %2494 = vmatprep.subr.bf16.mxu0 0
      %2495 = vmatpush1.bf16.xpose.msra.mxu0 0
      %2496 = vmatprep.subr.bf16.mxu0 0
      %2497 = vmatpush1.bf16.xpose.msra.mxu0 0
      %2498 = vmatprep.subr.bf16.mxu0 0
      %2499 = vmatpush1.bf16.xpose.msra.mxu0 0
      %2500 = vmatprep.subr.bf16.mxu0 0
      %2501 = vmatpush1.bf16.xpose.msra.mxu0 0
      %2502 = vmatprep.subr.bf16.mxu0 0
      %2503 = vmatpush1.bf16.xpose.msra.mxu0 0
      %2504 = vmatprep.subr.bf16.mxu0 0
      %2505 = vmatpush1.bf16.xpose.msra.mxu0 0
      %2506 = vmatprep.subr.bf16.mxu0 0
      %2507 = vmatpush1.bf16.xpose.msra.mxu0 0
      %2508 = vmatprep.subr.bf16.mxu0 0
      %2509 = vmatpush1.bf16.xpose.msra.mxu0 0
      %2510 = vmatprep.mubr.bf16.mxu0 0
      %2511 = vmatmul.mubr.bf16.gmra.mrb[0].mxu0 %v2473
      %v2512 = vpop.f32.mrb[0].mxu0
      %v2513 = vadd.f32 0.0, %v2512
      %v2514 = vpop.f32.mrb[0].mxu0
      %v2515 = vpop.f32.mrb[0].mxu0
      %v2516 = vpop.f32.mrb[0].mxu0
      %2517 = vdwg.mxu0
      %v2518 = vunpack.c.l.b16 %v2170
      %v2519 = vpack.c.b16 %v2518, %v2518
      %2520 = vrot.lane.b32.xlu0 %v2519, 96
      %v2521 = vpop.permute.xlu0 %2520
      %v2523 = vsel %vm2173, %v2170, 0
      %v2526 = vsel %vm2173, %v2521, 0
      %2528 = vmatprep.subr.bf16.mxu0 0
      %2529 = vmatpush1.bf16.xpose.msra.mxu0 %v2526
      %2530 = vmatprep.subr.bf16.mxu0 0
      %2531 = vmatpush1.bf16.xpose.msra.mxu0 0
      %2532 = vmatprep.subr.bf16.mxu0 0
      %2533 = vmatpush1.bf16.xpose.msra.mxu0 0
      %2534 = vmatprep.subr.bf16.mxu0 0
      %2535 = vmatpush1.bf16.xpose.msra.mxu0 0
      %2536 = vmatprep.subr.bf16.mxu0 0
      %2537 = vmatpush1.bf16.xpose.msra.mxu0 0
      %2538 = vmatprep.subr.bf16.mxu0 0
      %2539 = vmatpush1.bf16.xpose.msra.mxu0 0
      %2540 = vmatprep.subr.bf16.mxu0 0
      %2541 = vmatpush1.bf16.xpose.msra.mxu0 0
      %2542 = vmatprep.subr.bf16.mxu0 0
      %2543 = vmatpush1.bf16.xpose.msra.mxu0 0
      %2544 = vmatprep.subr.bf16.mxu0 0
      %2545 = vmatpush1.bf16.xpose.msra.mxu0 0
      %2546 = vmatprep.subr.bf16.mxu0 0
      %2547 = vmatpush1.bf16.xpose.msra.mxu0 0
      %2548 = vmatprep.subr.bf16.mxu0 0
      %2549 = vmatpush1.bf16.xpose.msra.mxu0 0
      %2550 = vmatprep.subr.bf16.mxu0 0
      %2551 = vmatpush1.bf16.xpose.msra.mxu0 0
      %2552 = vmatprep.subr.bf16.mxu0 0
      %2553 = vmatpush1.bf16.xpose.msra.mxu0 0
      %2554 = vmatprep.subr.bf16.mxu0 0
      %2555 = vmatpush1.bf16.xpose.msra.mxu0 0
      %2556 = vmatprep.subr.bf16.mxu0 0
      %2557 = vmatpush1.bf16.xpose.msra.mxu0 0
      %2558 = vmatprep.subr.bf16.mxu0 0
      %2559 = vmatpush1.bf16.xpose.msra.mxu0 0
      %2560 = vmatprep.mubr.bf16.mxu0 0
      %2561 = vmatmul.mubr.bf16.gmra.mrb[0].mxu0 %v2523
      %v2562 = vpop.f32.mrb[0].mxu0
      %v2563 = vadd.f32 0.0, %v2562
      %v2564 = vpop.f32.mrb[0].mxu0
      %v2565 = vpop.f32.mrb[0].mxu0
      %v2566 = vpop.f32.mrb[0].mxu0
      %2567 = vdwg.mxu0
      %v2568 = vsel %vm2173, %v2215, -inf
      %2569 = vmax.xlane.f32.xlu0 %v2568
      %v2570 = vpop.xlane.xlu0 %2569
      %v2571 = vsel %vm2173, %v2263, -inf
      %2572 = vmax.xlane.f32.xlu0 %v2571
      %v2573 = vpop.xlane.xlu0 %2572
      %v2574 = vsel %vm2173, %v2313, -inf
      %2575 = vmax.xlane.f32.xlu0 %v2574
      %v2576 = vpop.xlane.xlu0 %2575
      %v2577 = vsel %vm2173, %v2363, -inf
      %2578 = vmax.xlane.f32.xlu0 %v2577
      %v2579 = vpop.xlane.xlu0 %2578
      %v2580 = vsel %vm2173, %v2413, -inf
      %2581 = vmax.xlane.f32.xlu0 %v2580
      %v2582 = vpop.xlane.xlu0 %2581
      %v2583 = vsel %vm2173, %v2463, -inf
      %2584 = vmax.xlane.f32.xlu0 %v2583
      %v2585 = vpop.xlane.xlu0 %2584
      %v2586 = vsel %vm2173, %v2513, -inf
      %2587 = vmax.xlane.f32.xlu0 %v2586
      %v2588 = vpop.xlane.xlu0 %2587
      %v2589 = vsel %vm2173, %v2563, -inf
      %2590 = vmax.xlane.f32.xlu0 %v2589
      %v2591 = vpop.xlane.xlu0 %2590
      %v2592 = vsub.f32 %v2215, %v2570
      %v2593 = vsub.f32 %v2263, %v2573
      %v2594 = vsub.f32 %v2313, %v2576
      %v2595 = vsub.f32 %v2363, %v2579
      %v2596 = vsub.f32 %v2413, %v2582
      %v2597 = vsub.f32 %v2463, %v2585
      %v2598 = vsub.f32 %v2513, %v2588
      %v2599 = vsub.f32 %v2563, %v2591
      %v2600 = vmul.f32 %v2592, 1.442695
      %v2601 = vpow.pop %v2600
      %v2602 = vmul.f32 %v2593, 1.442695
      %v2603 = vpow.pop %v2602
      %v2604 = vmul.f32 %v2594, 1.442695
      %v2605 = vpow.pop %v2604
      %v2606 = vmul.f32 %v2595, 1.442695
      %v2607 = vpow.pop %v2606
      %v2608 = vmul.f32 %v2596, 1.442695
      %v2609 = vpow.pop %v2608
      %v2610 = vmul.f32 %v2597, 1.442695
      %v2611 = vpow.pop %v2610
      %v2612 = vmul.f32 %v2598, 1.442695
      %v2613 = vpow.pop %v2612
      %v2614 = vmul.f32 %v2599, 1.442695
      %v2615 = vpow.pop %v2614
      %v2616 = vsel %vm2173, %v2601, 0.0
      %2617 = vadd.xlane.f32.xlu0 %v2616
      %v2618 = vpop.xlane.xlu0 %2617
      %v2619 = vsel %vm2173, %v2603, 0.0
      %2620 = vadd.xlane.f32.xlu0 %v2619
      %v2621 = vpop.xlane.xlu0 %2620
      %v2622 = vsel %vm2173, %v2605, 0.0
      %2623 = vadd.xlane.f32.xlu0 %v2622
      %v2624 = vpop.xlane.xlu0 %2623
      %v2625 = vsel %vm2173, %v2607, 0.0
      %2626 = vadd.xlane.f32.xlu0 %v2625
      %v2627 = vpop.xlane.xlu0 %2626
      %v2628 = vsel %vm2173, %v2609, 0.0
      %2629 = vadd.xlane.f32.xlu0 %v2628
      %v2630 = vpop.xlane.xlu0 %2629
      %v2631 = vsel %vm2173, %v2611, 0.0
      %2632 = vadd.xlane.f32.xlu0 %v2631
      %v2633 = vpop.xlane.xlu0 %2632
      %v2634 = vsel %vm2173, %v2613, 0.0
      %2635 = vadd.xlane.f32.xlu0 %v2634
      %v2636 = vpop.xlane.xlu0 %2635
      %v2637 = vsel %vm2173, %v2615, 0.0
      %2638 = vadd.xlane.f32.xlu0 %v2637
      %v2639 = vpop.xlane.xlu0 %2638
      %v2640 = vrcp.pop %v2618
      %v2641 = vrcp.pop %v2621
      %v2642 = vrcp.pop %v2624
      %v2643 = vrcp.pop %v2627
      %v2644 = vrcp.pop %v2630
      %v2645 = vrcp.pop %v2633
      %v2646 = vrcp.pop %v2636
      %v2647 = vrcp.pop %v2639
      %v2648 = vmul.f32 %v2601, %v2640
      %v2649 = vmul.f32 %v2603, %v2641
      %v2650 = vmul.f32 %v2605, %v2642
      %v2651 = vmul.f32 %v2607, %v2643
      %v2652 = vmul.f32 %v2609, %v2644
      %v2653 = vmul.f32 %v2611, %v2645
      %v2654 = vmul.f32 %v2613, %v2646
      %v2655 = vmul.f32 %v2615, %v2647
      %v2656 = vpack.c.bf16 %v2648, %v2648
      %v2657 = vpack.c.bf16 %v2649, %v2649
      %v2658 = vpack.c.bf16 %v2650, %v2650
      %v2659 = vpack.c.bf16 %v2651, %v2651
      %v2660 = vpack.c.bf16 %v2652, %v2652
      %v2661 = vpack.c.bf16 %v2653, %v2653
      %v2662 = vpack.c.bf16 %v2654, %v2654
      %v2663 = vpack.c.bf16 %v2655, %v2655
      %2664 = vrot.lane.b32.xlu0 %v2157, 64
      %v2665 = vpop.permute.xlu0 %2664
      %v2667 = vsel %vm2173, %v2656, 0
      %vm2669 = vcmask 1043456
      %v2671 = vsel %vm2669, %v2665, 0
      %2673 = vmatprep.subr.bf16.mxu0 0
      %2674 = vmatpush1.bf16.msra.mxu0 %v2671
      %2675 = vmatprep.subr.bf16.mxu0 0
      %2676 = vmatpush1.bf16.msra.mxu0 0
      %2677 = vmatprep.subr.bf16.mxu0 0
      %2678 = vmatpush1.bf16.msra.mxu0 0
      %2679 = vmatprep.subr.bf16.mxu0 0
      %2680 = vmatpush1.bf16.msra.mxu0 0
      %2681 = vmatprep.subr.bf16.mxu0 0
      %2682 = vmatpush1.bf16.msra.mxu0 0
      %2683 = vmatprep.subr.bf16.mxu0 0
      %2684 = vmatpush1.bf16.msra.mxu0 0
      %2685 = vmatprep.subr.bf16.mxu0 0
      %2686 = vmatpush1.bf16.msra.mxu0 0
      %2687 = vmatprep.subr.bf16.mxu0 0
      %2688 = vmatpush1.bf16.msra.mxu0 0
      %2689 = vmatprep.subr.bf16.mxu0 0
      %2690 = vmatpush1.bf16.msra.mxu0 0
      %2691 = vmatprep.subr.bf16.mxu0 0
      %2692 = vmatpush1.bf16.msra.mxu0 0
      %2693 = vmatprep.subr.bf16.mxu0 0
      %2694 = vmatpush1.bf16.msra.mxu0 0
      %2695 = vmatprep.subr.bf16.mxu0 0
      %2696 = vmatpush1.bf16.msra.mxu0 0
      %2697 = vmatprep.subr.bf16.mxu0 0
      %2698 = vmatpush1.bf16.msra.mxu0 0
      %2699 = vmatprep.subr.bf16.mxu0 0
      %2700 = vmatpush1.bf16.msra.mxu0 0
      %2701 = vmatprep.subr.bf16.mxu0 0
      %2702 = vmatpush1.bf16.msra.mxu0 0
      %2703 = vmatprep.subr.bf16.mxu0 0
      %2704 = vmatpush1.bf16.msra.mxu0 0
      %2705 = vmatprep.mubr.bf16.mxu0 0
      %2706 = vmatmul.mubr.bf16.gmra.mrb[0].mxu0 %v2667
      %v2707 = vpop.f32.mrb[0].mxu0
      %v2708 = vadd.f32 0.0, %v2707
      %v2709 = vpop.f32.mrb[0].mxu0
      %v2710 = vpop.f32.mrb[0].mxu0
      %v2711 = vpop.f32.mrb[0].mxu0
      %2712 = vdwg.mxu0
      %2713 = vrot.lane.b32.xlu0 %v2158, 64
      %v2714 = vpop.permute.xlu0 %2713
      %v2716 = vsel %vm2173, %v2657, 0
      %v2719 = vsel %vm2669, %v2714, 0
      %2721 = vmatprep.subr.bf16.mxu0 0
      %2722 = vmatpush1.bf16.msra.mxu0 %v2719
      %2723 = vmatprep.subr.bf16.mxu0 0
      %2724 = vmatpush1.bf16.msra.mxu0 0
      %2725 = vmatprep.subr.bf16.mxu0 0
      %2726 = vmatpush1.bf16.msra.mxu0 0
      %2727 = vmatprep.subr.bf16.mxu0 0
      %2728 = vmatpush1.bf16.msra.mxu0 0
      %2729 = vmatprep.subr.bf16.mxu0 0
      %2730 = vmatpush1.bf16.msra.mxu0 0
      %2731 = vmatprep.subr.bf16.mxu0 0
      %2732 = vmatpush1.bf16.msra.mxu0 0
      %2733 = vmatprep.subr.bf16.mxu0 0
      %2734 = vmatpush1.bf16.msra.mxu0 0
      %2735 = vmatprep.subr.bf16.mxu0 0
      %2736 = vmatpush1.bf16.msra.mxu0 0
      %2737 = vmatprep.subr.bf16.mxu0 0
      %2738 = vmatpush1.bf16.msra.mxu0 0
      %2739 = vmatprep.subr.bf16.mxu0 0
      %2740 = vmatpush1.bf16.msra.mxu0 0
      %2741 = vmatprep.subr.bf16.mxu0 0
      %2742 = vmatpush1.bf16.msra.mxu0 0
      %2743 = vmatprep.subr.bf16.mxu0 0
      %2744 = vmatpush1.bf16.msra.mxu0 0
      %2745 = vmatprep.subr.bf16.mxu0 0
      %2746 = vmatpush1.bf16.msra.mxu0 0
      %2747 = vmatprep.subr.bf16.mxu0 0
      %2748 = vmatpush1.bf16.msra.mxu0 0
      %2749 = vmatprep.subr.bf16.mxu0 0
      %2750 = vmatpush1.bf16.msra.mxu0 0
      %2751 = vmatprep.subr.bf16.mxu0 0
      %2752 = vmatpush1.bf16.msra.mxu0 0
      %2753 = vmatprep.mubr.bf16.mxu0 0
      %2754 = vmatmul.mubr.bf16.gmra.mrb[0].mxu0 %v2716
      %v2755 = vpop.f32.mrb[0].mxu0
      %v2756 = vadd.f32 0.0, %v2755
      %v2757 = vpop.f32.mrb[0].mxu0
      %v2758 = vpop.f32.mrb[0].mxu0
      %v2759 = vpop.f32.mrb[0].mxu0
      %2760 = vdwg.mxu0
      %2761 = vrot.lane.b32.xlu0 %v2269, 64
      %v2762 = vpop.permute.xlu0 %2761
      %v2764 = vsel %vm2173, %v2658, 0
      %v2767 = vsel %vm2669, %v2762, 0
      %2769 = vmatprep.subr.bf16.mxu0 0
      %2770 = vmatpush1.bf16.msra.mxu0 %v2767
      %2771 = vmatprep.subr.bf16.mxu0 0
      %2772 = vmatpush1.bf16.msra.mxu0 0
      %2773 = vmatprep.subr.bf16.mxu0 0
      %2774 = vmatpush1.bf16.msra.mxu0 0
      %2775 = vmatprep.subr.bf16.mxu0 0
      %2776 = vmatpush1.bf16.msra.mxu0 0
      %2777 = vmatprep.subr.bf16.mxu0 0
      %2778 = vmatpush1.bf16.msra.mxu0 0
      %2779 = vmatprep.subr.bf16.mxu0 0
      %2780 = vmatpush1.bf16.msra.mxu0 0
      %2781 = vmatprep.subr.bf16.mxu0 0
      %2782 = vmatpush1.bf16.msra.mxu0 0
      %2783 = vmatprep.subr.bf16.mxu0 0
      %2784 = vmatpush1.bf16.msra.mxu0 0
      %2785 = vmatprep.subr.bf16.mxu0 0
      %2786 = vmatpush1.bf16.msra.mxu0 0
      %2787 = vmatprep.subr.bf16.mxu0 0
      %2788 = vmatpush1.bf16.msra.mxu0 0
      %2789 = vmatprep.subr.bf16.mxu0 0
      %2790 = vmatpush1.bf16.msra.mxu0 0
      %2791 = vmatprep.subr.bf16.mxu0 0
      %2792 = vmatpush1.bf16.msra.mxu0 0
      %2793 = vmatprep.subr.bf16.mxu0 0
      %2794 = vmatpush1.bf16.msra.mxu0 0
      %2795 = vmatprep.subr.bf16.mxu0 0
      %2796 = vmatpush1.bf16.msra.mxu0 0
      %2797 = vmatprep.subr.bf16.mxu0 0
      %2798 = vmatpush1.bf16.msra.mxu0 0
      %2799 = vmatprep.subr.bf16.mxu0 0
      %2800 = vmatpush1.bf16.msra.mxu0 0
      %2801 = vmatprep.mubr.bf16.mxu0 0
      %2802 = vmatmul.mubr.bf16.gmra.mrb[0].mxu0 %v2764
      %v2803 = vpop.f32.mrb[0].mxu0
      %v2804 = vadd.f32 0.0, %v2803
      %v2805 = vpop.f32.mrb[0].mxu0
      %v2806 = vpop.f32.mrb[0].mxu0
      %v2807 = vpop.f32.mrb[0].mxu0
      %2808 = vdwg.mxu0
      %2809 = vrot.lane.b32.xlu0 %v2319, 64
      %v2810 = vpop.permute.xlu0 %2809
      %v2812 = vsel %vm2173, %v2659, 0
      %v2815 = vsel %vm2669, %v2810, 0
      %2817 = vmatprep.subr.bf16.mxu0 0
      %2818 = vmatpush1.bf16.msra.mxu0 %v2815
      %2819 = vmatprep.subr.bf16.mxu0 0
      %2820 = vmatpush1.bf16.msra.mxu0 0
      %2821 = vmatprep.subr.bf16.mxu0 0
      %2822 = vmatpush1.bf16.msra.mxu0 0
      %2823 = vmatprep.subr.bf16.mxu0 0
      %2824 = vmatpush1.bf16.msra.mxu0 0
      %2825 = vmatprep.subr.bf16.mxu0 0
      %2826 = vmatpush1.bf16.msra.mxu0 0
      %2827 = vmatprep.subr.bf16.mxu0 0
      %2828 = vmatpush1.bf16.msra.mxu0 0
      %2829 = vmatprep.subr.bf16.mxu0 0
      %2830 = vmatpush1.bf16.msra.mxu0 0
      %2831 = vmatprep.subr.bf16.mxu0 0
      %2832 = vmatpush1.bf16.msra.mxu0 0
      %2833 = vmatprep.subr.bf16.mxu0 0
      %2834 = vmatpush1.bf16.msra.mxu0 0
      %2835 = vmatprep.subr.bf16.mxu0 0
      %2836 = vmatpush1.bf16.msra.mxu0 0
      %2837 = vmatprep.subr.bf16.mxu0 0
      %2838 = vmatpush1.bf16.msra.mxu0 0
      %2839 = vmatprep.subr.bf16.mxu0 0
      %2840 = vmatpush1.bf16.msra.mxu0 0
      %2841 = vmatprep.subr.bf16.mxu0 0
      %2842 = vmatpush1.bf16.msra.mxu0 0
      %2843 = vmatprep.subr.bf16.mxu0 0
      %2844 = vmatpush1.bf16.msra.mxu0 0
      %2845 = vmatprep.subr.bf16.mxu0 0
      %2846 = vmatpush1.bf16.msra.mxu0 0
      %2847 = vmatprep.subr.bf16.mxu0 0
      %2848 = vmatpush1.bf16.msra.mxu0 0
      %2849 = vmatprep.mubr.bf16.mxu0 0
      %2850 = vmatmul.mubr.bf16.gmra.mrb[0].mxu0 %v2812
      %v2851 = vpop.f32.mrb[0].mxu0
      %v2852 = vadd.f32 0.0, %v2851
      %v2853 = vpop.f32.mrb[0].mxu0
      %v2854 = vpop.f32.mrb[0].mxu0
      %v2855 = vpop.f32.mrb[0].mxu0
      %2856 = vdwg.mxu0
      %2857 = vrot.lane.b32.xlu0 %v2369, 64
      %v2858 = vpop.permute.xlu0 %2857
      %v2860 = vsel %vm2173, %v2660, 0
      %v2863 = vsel %vm2669, %v2858, 0
      %2865 = vmatprep.subr.bf16.mxu0 0
      %2866 = vmatpush1.bf16.msra.mxu0 %v2863
      %2867 = vmatprep.subr.bf16.mxu0 0
      %2868 = vmatpush1.bf16.msra.mxu0 0
      %2869 = vmatprep.subr.bf16.mxu0 0
      %2870 = vmatpush1.bf16.msra.mxu0 0
      %2871 = vmatprep.subr.bf16.mxu0 0
      %2872 = vmatpush1.bf16.msra.mxu0 0
      %2873 = vmatprep.subr.bf16.mxu0 0
      %2874 = vmatpush1.bf16.msra.mxu0 0
      %2875 = vmatprep.subr.bf16.mxu0 0
      %2876 = vmatpush1.bf16.msra.mxu0 0
      %2877 = vmatprep.subr.bf16.mxu0 0
      %2878 = vmatpush1.bf16.msra.mxu0 0
      %2879 = vmatprep.subr.bf16.mxu0 0
      %2880 = vmatpush1.bf16.msra.mxu0 0
      %2881 = vmatprep.subr.bf16.mxu0 0
      %2882 = vmatpush1.bf16.msra.mxu0 0
      %2883 = vmatprep.subr.bf16.mxu0 0
      %2884 = vmatpush1.bf16.msra.mxu0 0
      %2885 = vmatprep.subr.bf16.mxu0 0
      %2886 = vmatpush1.bf16.msra.mxu0 0
      %2887 = vmatprep.subr.bf16.mxu0 0
      %2888 = vmatpush1.bf16.msra.mxu0 0
      %2889 = vmatprep.subr.bf16.mxu0 0
      %2890 = vmatpush1.bf16.msra.mxu0 0
      %2891 = vmatprep.subr.bf16.mxu0 0
      %2892 = vmatpush1.bf16.msra.mxu0 0
      %2893 = vmatprep.subr.bf16.mxu0 0
      %2894 = vmatpush1.bf16.msra.mxu0 0
      %2895 = vmatprep.subr.bf16.mxu0 0
      %2896 = vmatpush1.bf16.msra.mxu0 0
      %2897 = vmatprep.mubr.bf16.mxu0 0
      %2898 = vmatmul.mubr.bf16.gmra.mrb[0].mxu0 %v2860
      %v2899 = vpop.f32.mrb[0].mxu0
      %v2900 = vadd.f32 0.0, %v2899
      %v2901 = vpop.f32.mrb[0].mxu0
      %v2902 = vpop.f32.mrb[0].mxu0
      %v2903 = vpop.f32.mrb[0].mxu0
      %2904 = vdwg.mxu0
      %2905 = vrot.lane.b32.xlu0 %v2419, 64
      %v2906 = vpop.permute.xlu0 %2905
      %v2908 = vsel %vm2173, %v2661, 0
      %v2911 = vsel %vm2669, %v2906, 0
      %2913 = vmatprep.subr.bf16.mxu0 0
      %2914 = vmatpush1.bf16.msra.mxu0 %v2911
      %2915 = vmatprep.subr.bf16.mxu0 0
      %2916 = vmatpush1.bf16.msra.mxu0 0
      %2917 = vmatprep.subr.bf16.mxu0 0
      %2918 = vmatpush1.bf16.msra.mxu0 0
      %2919 = vmatprep.subr.bf16.mxu0 0
      %2920 = vmatpush1.bf16.msra.mxu0 0
      %2921 = vmatprep.subr.bf16.mxu0 0
      %2922 = vmatpush1.bf16.msra.mxu0 0
      %2923 = vmatprep.subr.bf16.mxu0 0
      %2924 = vmatpush1.bf16.msra.mxu0 0
      %2925 = vmatprep.subr.bf16.mxu0 0
      %2926 = vmatpush1.bf16.msra.mxu0 0
      %2927 = vmatprep.subr.bf16.mxu0 0
      %2928 = vmatpush1.bf16.msra.mxu0 0
      %2929 = vmatprep.subr.bf16.mxu0 0
      %2930 = vmatpush1.bf16.msra.mxu0 0
      %2931 = vmatprep.subr.bf16.mxu0 0
      %2932 = vmatpush1.bf16.msra.mxu0 0
      %2933 = vmatprep.subr.bf16.mxu0 0
      %2934 = vmatpush1.bf16.msra.mxu0 0
      %2935 = vmatprep.subr.bf16.mxu0 0
      %2936 = vmatpush1.bf16.msra.mxu0 0
      %2937 = vmatprep.subr.bf16.mxu0 0
      %2938 = vmatpush1.bf16.msra.mxu0 0
      %2939 = vmatprep.subr.bf16.mxu0 0
      %2940 = vmatpush1.bf16.msra.mxu0 0
      %2941 = vmatprep.subr.bf16.mxu0 0
      %2942 = vmatpush1.bf16.msra.mxu0 0
      %2943 = vmatprep.subr.bf16.mxu0 0
      %2944 = vmatpush1.bf16.msra.mxu0 0
      %2945 = vmatprep.mubr.bf16.mxu0 0
      %2946 = vmatmul.mubr.bf16.gmra.mrb[0].mxu0 %v2908
      %v2947 = vpop.f32.mrb[0].mxu0
      %v2948 = vadd.f32 0.0, %v2947
      %v2949 = vpop.f32.mrb[0].mxu0
      %v2950 = vpop.f32.mrb[0].mxu0
      %v2951 = vpop.f32.mrb[0].mxu0
      %2952 = vdwg.mxu0
      %2953 = vrot.lane.b32.xlu0 %v2469, 64
      %v2954 = vpop.permute.xlu0 %2953
      %v2956 = vsel %vm2173, %v2662, 0
      %v2959 = vsel %vm2669, %v2954, 0
      %2961 = vmatprep.subr.bf16.mxu0 0
      %2962 = vmatpush1.bf16.msra.mxu0 %v2959
      %2963 = vmatprep.subr.bf16.mxu0 0
      %2964 = vmatpush1.bf16.msra.mxu0 0
      %2965 = vmatprep.subr.bf16.mxu0 0
      %2966 = vmatpush1.bf16.msra.mxu0 0
      %2967 = vmatprep.subr.bf16.mxu0 0
      %2968 = vmatpush1.bf16.msra.mxu0 0
      %2969 = vmatprep.subr.bf16.mxu0 0
      %2970 = vmatpush1.bf16.msra.mxu0 0
      %2971 = vmatprep.subr.bf16.mxu0 0
      %2972 = vmatpush1.bf16.msra.mxu0 0
      %2973 = vmatprep.subr.bf16.mxu0 0
      %2974 = vmatpush1.bf16.msra.mxu0 0
      %2975 = vmatprep.subr.bf16.mxu0 0
      %2976 = vmatpush1.bf16.msra.mxu0 0
      %2977 = vmatprep.subr.bf16.mxu0 0
      %2978 = vmatpush1.bf16.msra.mxu0 0
      %2979 = vmatprep.subr.bf16.mxu0 0
      %2980 = vmatpush1.bf16.msra.mxu0 0
      %2981 = vmatprep.subr.bf16.mxu0 0
      %2982 = vmatpush1.bf16.msra.mxu0 0
      %2983 = vmatprep.subr.bf16.mxu0 0
      %2984 = vmatpush1.bf16.msra.mxu0 0
      %2985 = vmatprep.subr.bf16.mxu0 0
      %2986 = vmatpush1.bf16.msra.mxu0 0
      %2987 = vmatprep.subr.bf16.mxu0 0
      %2988 = vmatpush1.bf16.msra.mxu0 0
      %2989 = vmatprep.subr.bf16.mxu0 0
      %2990 = vmatpush1.bf16.msra.mxu0 0
      %2991 = vmatprep.subr.bf16.mxu0 0
      %2992 = vmatpush1.bf16.msra.mxu0 0
      %2993 = vmatprep.mubr.bf16.mxu0 0
      %2994 = vmatmul.mubr.bf16.gmra.mrb[0].mxu0 %v2956
      %v2995 = vpop.f32.mrb[0].mxu0
      %v2996 = vadd.f32 0.0, %v2995
      %v2997 = vpop.f32.mrb[0].mxu0
      %v2998 = vpop.f32.mrb[0].mxu0
      %v2999 = vpop.f32.mrb[0].mxu0
      %3000 = vdwg.mxu0
      %3001 = vrot.lane.b32.xlu0 %v2519, 64
      %v3002 = vpop.permute.xlu0 %3001
      %v3004 = vsel %vm2173, %v2663, 0
      %v3007 = vsel %vm2669, %v3002, 0
      %3009 = vmatprep.subr.bf16.mxu0 0
      %3010 = vmatpush1.bf16.msra.mxu0 %v3007
      %3011 = vmatprep.subr.bf16.mxu0 0
      %3012 = vmatpush1.bf16.msra.mxu0 0
      %3013 = vmatprep.subr.bf16.mxu0 0
      %3014 = vmatpush1.bf16.msra.mxu0 0
      %3015 = vmatprep.subr.bf16.mxu0 0
      %3016 = vmatpush1.bf16.msra.mxu0 0
      %3017 = vmatprep.subr.bf16.mxu0 0
      %3018 = vmatpush1.bf16.msra.mxu0 0
      %3019 = vmatprep.subr.bf16.mxu0 0
      %3020 = vmatpush1.bf16.msra.mxu0 0
      %3021 = vmatprep.subr.bf16.mxu0 0
      %3022 = vmatpush1.bf16.msra.mxu0 0
      %3023 = vmatprep.subr.bf16.mxu0 0
      %3024 = vmatpush1.bf16.msra.mxu0 0
      %3025 = vmatprep.subr.bf16.mxu0 0
      %3026 = vmatpush1.bf16.msra.mxu0 0
      %3027 = vmatprep.subr.bf16.mxu0 0
      %3028 = vmatpush1.bf16.msra.mxu0 0
      %3029 = vmatprep.subr.bf16.mxu0 0
      %3030 = vmatpush1.bf16.msra.mxu0 0
      %3031 = vmatprep.subr.bf16.mxu0 0
      %3032 = vmatpush1.bf16.msra.mxu0 0
      %3033 = vmatprep.subr.bf16.mxu0 0
      %3034 = vmatpush1.bf16.msra.mxu0 0
      %3035 = vmatprep.subr.bf16.mxu0 0
      %3036 = vmatpush1.bf16.msra.mxu0 0
      %3037 = vmatprep.subr.bf16.mxu0 0
      %3038 = vmatpush1.bf16.msra.mxu0 0
      %3039 = vmatprep.subr.bf16.mxu0 0
      %3040 = vmatpush1.bf16.msra.mxu0 0
      %3041 = vmatprep.mubr.bf16.mxu0 0
      %3042 = vmatmul.mubr.bf16.gmra.mrb[0].mxu0 %v3004
      %v3043 = vpop.f32.mrb[0].mxu0
      %v3044 = vadd.f32 0.0, %v3043
      %v3045 = vpop.f32.mrb[0].mxu0
      %v3046 = vpop.f32.mrb[0].mxu0
      %v3047 = vpop.f32.mrb[0].mxu0
      %3048 = vdwg.mxu0
      %v3049 = vpack.c.bf16 %v2756, %v2708
      %v3050 = vpack.c.bf16 %v2852, %v2804
      %v3051 = vpack.c.bf16 %v2948, %v2900
      %v3052 = vpack.c.bf16 %v3044, %v2996
      %v3054 = vsel %vm2173, %v3049, 0
      %v3057 = vsel %vm2669, %v2147, 0
      %3059 = vmatprep.subr.bf16.mxu0 0
      %3060 = vmatpush1.bf16.msra.mxu0 %v3057
      %3061 = vmatprep.subr.bf16.mxu0 0
      %3062 = vmatpush1.bf16.msra.mxu0 0
      %3063 = vmatprep.subr.bf16.mxu0 0
      %3064 = vmatpush1.bf16.msra.mxu0 0
      %3065 = vmatprep.subr.bf16.mxu0 0
      %3066 = vmatpush1.bf16.msra.mxu0 0
      %3067 = vmatprep.subr.bf16.mxu0 0
      %3068 = vmatpush1.bf16.msra.mxu0 0
      %3069 = vmatprep.subr.bf16.mxu0 0
      %3070 = vmatpush1.bf16.msra.mxu0 0
      %3071 = vmatprep.subr.bf16.mxu0 0
      %3072 = vmatpush1.bf16.msra.mxu0 0
      %3073 = vmatprep.subr.bf16.mxu0 0
      %3074 = vmatpush1.bf16.msra.mxu0 0
      %3075 = vmatprep.subr.bf16.mxu0 0
      %3076 = vmatpush1.bf16.msra.mxu0 0
      %3077 = vmatprep.subr.bf16.mxu0 0
      %3078 = vmatpush1.bf16.msra.mxu0 0
      %3079 = vmatprep.subr.bf16.mxu0 0
      %3080 = vmatpush1.bf16.msra.mxu0 0
      %3081 = vmatprep.subr.bf16.mxu0 0
      %3082 = vmatpush1.bf16.msra.mxu0 0
      %3083 = vmatprep.subr.bf16.mxu0 0
      %3084 = vmatpush1.bf16.msra.mxu0 0
      %3085 = vmatprep.subr.bf16.mxu0 0
      %3086 = vmatpush1.bf16.msra.mxu0 0
      %3087 = vmatprep.subr.bf16.mxu0 0
      %3088 = vmatpush1.bf16.msra.mxu0 0
      %3089 = vmatprep.subr.bf16.mxu0 0
      %3090 = vmatpush1.bf16.msra.mxu0 0
      %3091 = vmatprep.mubr.bf16.mxu0 0
      %3092 = vmatmul.mubr.bf16.gmra.mrb[0].mxu0 %v3054
      %v3093 = vpop.f32.mrb[0].mxu0
      %v3094 = vadd.f32 0.0, %v3093
      %v3095 = vpop.f32.mrb[0].mxu0
      %v3096 = vpop.f32.mrb[0].mxu0
      %v3097 = vadd.f32 0.0, %v3096
      %v3098 = vpop.f32.mrb[0].mxu0
      %3099 = vdwg.mxu0
      %v3101 = vsel %vm2173, %v3050, 0
      %v3104 = vsel %vm2669, %v2148, 0
      %3106 = vmatprep.subr.bf16.mxu0 0
      %3107 = vmatpush1.bf16.msra.mxu0 %v3104
      %3108 = vmatprep.subr.bf16.mxu0 0
      %3109 = vmatpush1.bf16.msra.mxu0 0
      %3110 = vmatprep.subr.bf16.mxu0 0
      %3111 = vmatpush1.bf16.msra.mxu0 0
      %3112 = vmatprep.subr.bf16.mxu0 0
      %3113 = vmatpush1.bf16.msra.mxu0 0
      %3114 = vmatprep.subr.bf16.mxu0 0
      %3115 = vmatpush1.bf16.msra.mxu0 0
      %3116 = vmatprep.subr.bf16.mxu0 0
      %3117 = vmatpush1.bf16.msra.mxu0 0
      %3118 = vmatprep.subr.bf16.mxu0 0
      %3119 = vmatpush1.bf16.msra.mxu0 0
      %3120 = vmatprep.subr.bf16.mxu0 0
      %3121 = vmatpush1.bf16.msra.mxu0 0
      %3122 = vmatprep.subr.bf16.mxu0 0
      %3123 = vmatpush1.bf16.msra.mxu0 0
      %3124 = vmatprep.subr.bf16.mxu0 0
      %3125 = vmatpush1.bf16.msra.mxu0 0
      %3126 = vmatprep.subr.bf16.mxu0 0
      %3127 = vmatpush1.bf16.msra.mxu0 0
      %3128 = vmatprep.subr.bf16.mxu0 0
      %3129 = vmatpush1.bf16.msra.mxu0 0
      %3130 = vmatprep.subr.bf16.mxu0 0
      %3131 = vmatpush1.bf16.msra.mxu0 0
      %3132 = vmatprep.subr.bf16.mxu0 0
      %3133 = vmatpush1.bf16.msra.mxu0 0
      %3134 = vmatprep.subr.bf16.mxu0 0
      %3135 = vmatpush1.bf16.msra.mxu0 0
      %3136 = vmatprep.subr.bf16.mxu0 0
      %3137 = vmatpush1.bf16.msra.mxu0 0
      %3138 = vmatprep.mubr.bf16.mxu0 0
      %3139 = vmatmul.mubr.bf16.gmra.mrb[0].mxu0 %v3101
      %v3140 = vpop.f32.mrb[0].mxu0
      %v3141 = vadd.f32 0.0, %v3140
      %v3142 = vpop.f32.mrb[0].mxu0
      %v3143 = vpop.f32.mrb[0].mxu0
      %v3144 = vadd.f32 0.0, %v3143
      %v3145 = vpop.f32.mrb[0].mxu0
      %3146 = vdwg.mxu0
      %v3148 = vsel %vm2173, %v3051, 0
      %v3151 = vsel %vm2669, %v2149, 0
      %3153 = vmatprep.subr.bf16.mxu0 0
      %3154 = vmatpush1.bf16.msra.mxu0 %v3151
      %3155 = vmatprep.subr.bf16.mxu0 0
      %3156 = vmatpush1.bf16.msra.mxu0 0
      %3157 = vmatprep.subr.bf16.mxu0 0
      %3158 = vmatpush1.bf16.msra.mxu0 0
      %3159 = vmatprep.subr.bf16.mxu0 0
      %3160 = vmatpush1.bf16.msra.mxu0 0
      %3161 = vmatprep.subr.bf16.mxu0 0
      %3162 = vmatpush1.bf16.msra.mxu0 0
      %3163 = vmatprep.subr.bf16.mxu0 0
      %3164 = vmatpush1.bf16.msra.mxu0 0
      %3165 = vmatprep.subr.bf16.mxu0 0
      %3166 = vmatpush1.bf16.msra.mxu0 0
      %3167 = vmatprep.subr.bf16.mxu0 0
      %3168 = vmatpush1.bf16.msra.mxu0 0
      %3169 = vmatprep.subr.bf16.mxu0 0
      %3170 = vmatpush1.bf16.msra.mxu0 0
      %3171 = vmatprep.subr.bf16.mxu0 0
      %3172 = vmatpush1.bf16.msra.mxu0 0
      %3173 = vmatprep.subr.bf16.mxu0 0
      %3174 = vmatpush1.bf16.msra.mxu0 0
      %3175 = vmatprep.subr.bf16.mxu0 0
      %3176 = vmatpush1.bf16.msra.mxu0 0
      %3177 = vmatprep.subr.bf16.mxu0 0
      %3178 = vmatpush1.bf16.msra.mxu0 0
      %3179 = vmatprep.subr.bf16.mxu0 0
      %3180 = vmatpush1.bf16.msra.mxu0 0
      %3181 = vmatprep.subr.bf16.mxu0 0
      %3182 = vmatpush1.bf16.msra.mxu0 0
      %3183 = vmatprep.subr.bf16.mxu0 0
      %3184 = vmatpush1.bf16.msra.mxu0 0
      %3185 = vmatprep.mubr.bf16.mxu0 0
      %3186 = vmatmul.mubr.bf16.gmra.mrb[0].mxu0 %v3148
      %v3187 = vpop.f32.mrb[0].mxu0
      %v3188 = vadd.f32 0.0, %v3187
      %v3189 = vpop.f32.mrb[0].mxu0
      %v3190 = vpop.f32.mrb[0].mxu0
      %v3191 = vadd.f32 0.0, %v3190
      %v3192 = vpop.f32.mrb[0].mxu0
      %3193 = vdwg.mxu0
      %v3195 = vsel %vm2173, %v3052, 0
      %v3198 = vsel %vm2669, %v2150, 0
      %3200 = vmatprep.subr.bf16.mxu0 0
      %3201 = vmatpush1.bf16.msra.mxu0 %v3198
      %3202 = vmatprep.subr.bf16.mxu0 0
      %3203 = vmatpush1.bf16.msra.mxu0 0
      %3204 = vmatprep.subr.bf16.mxu0 0
      %3205 = vmatpush1.bf16.msra.mxu0 0
      %3206 = vmatprep.subr.bf16.mxu0 0
      %3207 = vmatpush1.bf16.msra.mxu0 0
      %3208 = vmatprep.subr.bf16.mxu0 0
      %3209 = vmatpush1.bf16.msra.mxu0 0
      %3210 = vmatprep.subr.bf16.mxu0 0
      %3211 = vmatpush1.bf16.msra.mxu0 0
      %3212 = vmatprep.subr.bf16.mxu0 0
      %3213 = vmatpush1.bf16.msra.mxu0 0
      %3214 = vmatprep.subr.bf16.mxu0 0
      %3215 = vmatpush1.bf16.msra.mxu0 0
      %3216 = vmatprep.subr.bf16.mxu0 0
      %3217 = vmatpush1.bf16.msra.mxu0 0
      %3218 = vmatprep.subr.bf16.mxu0 0
      %3219 = vmatpush1.bf16.msra.mxu0 0
      %3220 = vmatprep.subr.bf16.mxu0 0
      %3221 = vmatpush1.bf16.msra.mxu0 0
      %3222 = vmatprep.subr.bf16.mxu0 0
      %3223 = vmatpush1.bf16.msra.mxu0 0
      %3224 = vmatprep.subr.bf16.mxu0 0
      %3225 = vmatpush1.bf16.msra.mxu0 0
      %3226 = vmatprep.subr.bf16.mxu0 0
      %3227 = vmatpush1.bf16.msra.mxu0 0
      %3228 = vmatprep.subr.bf16.mxu0 0
      %3229 = vmatpush1.bf16.msra.mxu0 0
      %3230 = vmatprep.subr.bf16.mxu0 0
      %3231 = vmatpush1.bf16.msra.mxu0 0
      %3232 = vmatprep.mubr.bf16.mxu0 0
      %3233 = vmatmul.mubr.bf16.gmra.mrb[0].mxu0 %v3195
      %v3234 = vpop.f32.mrb[0].mxu0
      %v3235 = vadd.f32 0.0, %v3234
      %v3236 = vpop.f32.mrb[0].mxu0
      %v3237 = vpop.f32.mrb[0].mxu0
      %v3238 = vadd.f32 0.0, %v3237
      %v3239 = vpop.f32.mrb[0].mxu0
      %3240 = vdwg.mxu0
      %v3241 = vsel %vm2100, %v3094, 0.0
      %v3242 = vsel %vm2100, %v3141, 0.0
      %v3243 = vadd.f32 %v3241, %v3242
      %v3244 = vsel %vm2100, %v3188, 0.0
      %v3245 = vadd.f32 %v3243, %v3244
      %v3246 = vsel %vm2100, %v3235, 0.0
      %v3247 = vadd.f32 %v3245, %v3246
      %v3248 = vsel %vm2100, %v3097, 0.0
      %v3249 = vsel %vm2100, %v3144, 0.0
      %v3250 = vadd.f32 %v3248, %v3249
      %v3251 = vsel %vm2100, %v3191, 0.0
      %v3252 = vadd.f32 %v3250, %v3251
      %v3253 = vsel %vm2100, %v3238, 0.0
      %v3254 = vadd.f32 %v3252, %v3253
      %v3256 = vlaneseq
      %v3257 = vshrl.u32 %v3256, 7
      %v3258 = vsub.s32 0, %v3257
      %v3259 = vrot.slane %v2152, %v3258
      %v3261 = vadd.f32 %v3247, %v3259
      %v3262 = vadd.f32 %v3254, %v3259
      %v3263 = vadd.f32 %v2070, %v3261
      %v3264 = vadd.f32 %v2071, %v3262
      %s3265 = scalar_lea.vmem [#allocation16], %s2065
      %v3266 = vld [vmem:[%s3265] sm:$0x1]
      %s3267 = scalar_lea.vmem [#allocation18], %s2065
      %v3268 = vld [vmem:[%s3267] sm:$0x1]
      %v3269 = vsel %vm2100, %v3263, 0.0
      %3270 = vadd.xlane.f32.xlu0 %v3269
      %v3271 = vpop.xlane.xlu0 %3270
      %v3272 = vsel %vm2100, %v3264, 0.0
      %3273 = vadd.xlane.f32.xlu0 %v3272
      %v3274 = vpop.xlane.xlu0 %3273
      %v3275 = vrcp.pop 32.0
      %v3276 = vmul.f32 %v3271, %v3275
      %v3277 = vmul.f32 %v3274, %v3275
      %v3278 = vsub.f32 %v3263, %v3276
      %v3279 = vsub.f32 %v3264, %v3277
      %v3280 = vmul.f32 %v3278, %v3278
      %v3281 = vmul.f32 %v3279, %v3279
      %v3282 = vsel %vm2100, %v3280, 0.0
      %3283 = vadd.xlane.f32.xlu0 %v3282
      %v3284 = vpop.xlane.xlu0 %3283
      %v3285 = vsel %vm2100, %v3281, 0.0
      %3286 = vadd.xlane.f32.xlu0 %v3285
      %v3287 = vpop.xlane.xlu0 %3286
      %v3288 = vmul.f32 %v3284, %v3275
      %v3289 = vmul.f32 %v3287, %v3275
      %v3290 = vadd.f32 %v3288, 1e-05
      %v3291 = vadd.f32 %v3289, 1e-05
      %v3292 = vrsqrt.pop %v3290
      %v3293 = vrsqrt.pop %v3291
      %v3294 = vmul.f32 %v3278, %v3292
      %v3295 = vmul.f32 %v3279, %v3293
      %v3297 = vlaneseq
      %v3298 = vshrl.u32 %v3297, 7
      %v3299 = vsub.s32 0, %v3298
      %v3300 = vrot.slane %v3266, %v3299
      %v3302 = vmul.f32 %v3294, %v3300
      %v3303 = vmul.f32 %v3295, %v3300
      %v3305 = vlaneseq
      %v3306 = vshrl.u32 %v3305, 7
      %v3307 = vsub.s32 0, %v3306
      %v3308 = vrot.slane %v3268, %v3307
      %v3310 = vadd.f32 %v3302, %v3308
      %v3311 = vadd.f32 %v3303, %v3308
      %s3312 = smul.addr %s2072, 4
      %s3313 = scalar_lea.vmem [#allocation6], %s3312
      %v3314 = vld [vmem:[%s3313] sm:$0xf]
      %v3315 = vld [vmem:[%s3313 + $0x4] sm:$0xf]
      %v3316 = vld [vmem:[%s3313 + $0x8] sm:$0xf]
      %v3317 = vld [vmem:[%s3313 + $0xc] sm:$0xf]
      %s3318 = scalar_lea.vmem [#allocation7], %s2065
      %v3319 = vld [vmem:[%s3318] sm:$0x1]
      %v3320 = vpack.c.bf16 %v3311, %v3310
      %v3322 = vlaneseq
      %v3323 = vshrl.u32 %v3322, 7
      %v3324 = vsub.s32 0, %v3323
      %v3325 = vrot.slane %v3319, %v3324
      %v3331 = vunpack.c.l.b16 %v3314
      %v3332 = vunpack.c.l.b16 %v3315
      %v3333 = vunpack.c.l.b16 %v3316
      %v3334 = vunpack.c.l.b16 %v3317
      %v3335 = vpack.c.b16 %v3332, %v3331
      %v3336 = vpack.c.b16 %v3334, %v3333
      %v3340 = vsel %vm2100, %v3320, 0
      %3342 = vmatprep.subr.bf16.mxu0 0
      %3343 = vmatpush1.bf16.msra.mxu0 %v3335
      %3344 = vmatprep.subr.bf16.mxu0 0
      %3345 = vmatpush1.bf16.msra.mxu0 %v3336
      %3346 = vmatprep.subr.bf16.mxu0 0
      %3347 = vmatpush1.bf16.msra.mxu0 0
      %3348 = vmatprep.subr.bf16.mxu0 0
      %3349 = vmatpush1.bf16.msra.mxu0 0
      %3350 = vmatprep.subr.bf16.mxu0 0
      %3351 = vmatpush1.bf16.msra.mxu0 0
      %3352 = vmatprep.subr.bf16.mxu0 0
      %3353 = vmatpush1.bf16.msra.mxu0 0
      %3354 = vmatprep.subr.bf16.mxu0 0
      %3355 = vmatpush1.bf16.msra.mxu0 0
      %3356 = vmatprep.subr.bf16.mxu0 0
      %3357 = vmatpush1.bf16.msra.mxu0 0
      %3358 = vmatprep.subr.bf16.mxu0 0
      %3359 = vmatpush1.bf16.msra.mxu0 0
      %3360 = vmatprep.subr.bf16.mxu0 0
      %3361 = vmatpush1.bf16.msra.mxu0 0
      %3362 = vmatprep.subr.bf16.mxu0 0
      %3363 = vmatpush1.bf16.msra.mxu0 0
      %3364 = vmatprep.subr.bf16.mxu0 0
      %3365 = vmatpush1.bf16.msra.mxu0 0
      %3366 = vmatprep.subr.bf16.mxu0 0
      %3367 = vmatpush1.bf16.msra.mxu0 0
      %3368 = vmatprep.subr.bf16.mxu0 0
      %3369 = vmatpush1.bf16.msra.mxu0 0
      %3370 = vmatprep.subr.bf16.mxu0 0
      %3371 = vmatpush1.bf16.msra.mxu0 0
      %3372 = vmatprep.subr.bf16.mxu0 0
      %3373 = vmatpush1.bf16.msra.mxu0 0
      %3374 = vmatprep.mubr.bf16.mxu0 0
      %3375 = vmatmul.mubr.bf16.gmra.mrb[0].mxu0 %v3340
      %v3376 = vpop.f32.mrb[0].mxu0
      %v3377 = vadd.f32 %v3325, %v3376
      %v3378 = vpop.f32.mrb[0].mxu0
      %v3379 = vpop.f32.mrb[0].mxu0
      %v3380 = vadd.f32 %v3325, %v3379
      %v3381 = vpop.f32.mrb[0].mxu0
      %3382 = vdwg.mxu0
      %3383 = vrot.lane.b32.xlu0 %v3335, 96
      %v3384 = vpop.permute.xlu0 %3383
      %3385 = vrot.lane.b32.xlu0 %v3336, 96
      %v3386 = vpop.permute.xlu0 %3385
      %3389 = vrot.lane.b32.xlu0 %v3325, 96
      %v3390 = vpop.permute.xlu0 %3389
      %v3393 = vsel %vm2100, %v2057, 0
      %v3396 = vsel %vm2100, %v2058, 0
      %3398 = vmatprep.subr.bf16.mxu0 0
      %3399 = vmatpush1.bf16.msra.mxu0 %v3384
      %3400 = vmatprep.subr.bf16.mxu0 0
      %3401 = vmatpush1.bf16.msra.mxu0 %v3386
      %3402 = vmatprep.subr.bf16.mxu0 0
      %3403 = vmatpush1.bf16.msra.mxu0 0
      %3404 = vmatprep.subr.bf16.mxu0 0
      %3405 = vmatpush1.bf16.msra.mxu0 0
      %3406 = vmatprep.subr.bf16.mxu0 0
      %3407 = vmatpush1.bf16.msra.mxu0 0
      %3408 = vmatprep.subr.bf16.mxu0 0
      %3409 = vmatpush1.bf16.msra.mxu0 0
      %3410 = vmatprep.subr.bf16.mxu0 0
      %3411 = vmatpush1.bf16.msra.mxu0 0
      %3412 = vmatprep.subr.bf16.mxu0 0
      %3413 = vmatpush1.bf16.msra.mxu0 0
      %3414 = vmatprep.subr.bf16.mxu0 0
      %3415 = vmatpush1.bf16.msra.mxu0 0
      %3416 = vmatprep.subr.bf16.mxu0 0
      %3417 = vmatpush1.bf16.msra.mxu0 0
      %3418 = vmatprep.subr.bf16.mxu0 0
      %3419 = vmatpush1.bf16.msra.mxu0 0
      %3420 = vmatprep.subr.bf16.mxu0 0
      %3421 = vmatpush1.bf16.msra.mxu0 0
      %3422 = vmatprep.subr.bf16.mxu0 0
      %3423 = vmatpush1.bf16.msra.mxu0 0
      %3424 = vmatprep.subr.bf16.mxu0 0
      %3425 = vmatpush1.bf16.msra.mxu0 0
      %3426 = vmatprep.subr.bf16.mxu0 0
      %3427 = vmatpush1.bf16.msra.mxu0 0
      %3428 = vmatprep.subr.bf16.mxu0 0
      %3429 = vmatpush1.bf16.msra.mxu0 0
      %3430 = vmatprep.mubr.bf16.mxu0 0
      %3431 = vmatmul.mubr.bf16.gmra.mrb[0].mxu0 %v3393
      %v3432 = vpop.f32.mrb[0].mxu0
      %v3433 = vadd.f32 %v3390, %v3432
      %v3434 = vpop.f32.mrb[0].mxu0
      %v3435 = vpop.f32.mrb[0].mxu0
      %v3436 = vadd.f32 %v3390, %v3435
      %v3437 = vpop.f32.mrb[0].mxu0
      %3438 = vmatprep.mubr.bf16.mxu0 0
      %3439 = vmatmul.mubr.bf16.gmra.mrb[0].mxu0 %v3396
      %v3440 = vpop.f32.mrb[0].mxu0
      %v3441 = vadd.f32 %v3390, %v3440
      %v3442 = vpop.f32.mrb[0].mxu0
      %v3443 = vpop.f32.mrb[0].mxu0
      %v3444 = vadd.f32 %v3390, %v3443
      %v3445 = vpop.f32.mrb[0].mxu0
      %3446 = vdwg.mxu0
      %s3447 = smul.addr %s2072, 4
      %s3448 = scalar_lea.vmem [#allocation9], %s3447
      %v3449 = vld [vmem:[%s3448] sm:$0xf]
      %v3450 = vld [vmem:[%s3448 + $0x4] sm:$0xf]
      %v3451 = vld [vmem:[%s3448 + $0x8] sm:$0xf]
      %v3452 = vld [vmem:[%s3448 + $0xc] sm:$0xf]
      %s3453 = scalar_lea.vmem [#allocation10], %s2065
      %v3454 = vld [vmem:[%s3453] sm:$0x1]
      %v3455 = vpack.c.bf16 %v3380, %v3377
      %v3457 = vunpack.c.l.b16 %v3455
      %v3458 = vunpack.c.h.b16 %v3455
      %v3459 = vpack.c.b16 %v3457, %v3457
      %v3460 = vpack.c.b16 %v3458, %v3458
      %3461 = vrot.lane.b32.xlu0 %v3459, 120
      %v3462 = vpop.permute.xlu0 %3461
      %3463 = vrot.lane.b32.xlu0 %v3460, 120
      %v3464 = vpop.permute.xlu0 %3463
      %3465 = vrot.lane.b32.xlu0 %v3459, 112
      %v3466 = vpop.permute.xlu0 %3465
      %3467 = vrot.lane.b32.xlu0 %v3460, 112
      %v3468 = vpop.permute.xlu0 %3467
      %3469 = vrot.lane.b32.xlu0 %v3459, 104
      %v3470 = vpop.permute.xlu0 %3469
      %3471 = vrot.lane.b32.xlu0 %v3460, 104
      %v3472 = vpop.permute.xlu0 %3471
      %v3473 = vpack.c.bf16 %v3436, %v3433
      %v3474 = vpack.c.bf16 %v3444, %v3441
      %3477 = vrot.lane.b32.xlu0 %v3473, 120
      %v3478 = vpop.permute.xlu0 %3477
      %3479 = vrot.lane.b32.xlu0 %v3474, 120
      %v3480 = vpop.permute.xlu0 %3479
      %3481 = vrot.lane.b32.xlu0 %v3473, 112
      %v3482 = vpop.permute.xlu0 %3481
      %3483 = vrot.lane.b32.xlu0 %v3474, 112
      %v3484 = vpop.permute.xlu0 %3483
      %3485 = vrot.lane.b32.xlu0 %v3473, 104
      %v3486 = vpop.permute.xlu0 %3485
      %3487 = vrot.lane.b32.xlu0 %v3474, 104
      %v3488 = vpop.permute.xlu0 %3487
      %v3490 = vsel %vm2173, %v3459, 0
      %v3493 = vsel %vm2173, %v3473, 0
      %3495 = vmatprep.subr.bf16.mxu0 0
      %3496 = vmatpush1.bf16.xpose.msra.mxu0 %v3493
      %3497 = vmatprep.subr.bf16.mxu0 0
      %3498 = vmatpush1.bf16.xpose.msra.mxu0 0
      %3499 = vmatprep.subr.bf16.mxu0 0
      %3500 = vmatpush1.bf16.xpose.msra.mxu0 0
      %3501 = vmatprep.subr.bf16.mxu0 0
      %3502 = vmatpush1.bf16.xpose.msra.mxu0 0
      %3503 = vmatprep.subr.bf16.mxu0 0
      %3504 = vmatpush1.bf16.xpose.msra.mxu0 0
      %3505 = vmatprep.subr.bf16.mxu0 0
      %3506 = vmatpush1.bf16.xpose.msra.mxu0 0
      %3507 = vmatprep.subr.bf16.mxu0 0
      %3508 = vmatpush1.bf16.xpose.msra.mxu0 0
      %3509 = vmatprep.subr.bf16.mxu0 0
      %3510 = vmatpush1.bf16.xpose.msra.mxu0 0
      %3511 = vmatprep.subr.bf16.mxu0 0
      %3512 = vmatpush1.bf16.xpose.msra.mxu0 0
      %3513 = vmatprep.subr.bf16.mxu0 0
      %3514 = vmatpush1.bf16.xpose.msra.mxu0 0
      %3515 = vmatprep.subr.bf16.mxu0 0
      %3516 = vmatpush1.bf16.xpose.msra.mxu0 0
      %3517 = vmatprep.subr.bf16.mxu0 0
      %3518 = vmatpush1.bf16.xpose.msra.mxu0 0
      %3519 = vmatprep.subr.bf16.mxu0 0
      %3520 = vmatpush1.bf16.xpose.msra.mxu0 0
      %3521 = vmatprep.subr.bf16.mxu0 0
      %3522 = vmatpush1.bf16.xpose.msra.mxu0 0
      %3523 = vmatprep.subr.bf16.mxu0 0
      %3524 = vmatpush1.bf16.xpose.msra.mxu0 0
      %3525 = vmatprep.subr.bf16.mxu0 0
      %3526 = vmatpush1.bf16.xpose.msra.mxu0 0
      %3527 = vmatprep.mubr.bf16.mxu0 0
      %3528 = vmatmul.mubr.bf16.gmra.mrb[0].mxu0 %v3490
      %v3529 = vpop.f32.mrb[0].mxu0
      %v3530 = vadd.f32 0.0, %v3529
      %v3531 = vpop.f32.mrb[0].mxu0
      %v3532 = vpop.f32.mrb[0].mxu0
      %v3533 = vpop.f32.mrb[0].mxu0
      %3534 = vdwg.mxu0
      %v3536 = vsel %vm2173, %v3460, 0
      %v3539 = vsel %vm2173, %v3474, 0
      %3541 = vmatprep.subr.bf16.mxu0 0
      %3542 = vmatpush1.bf16.xpose.msra.mxu0 %v3539
      %3543 = vmatprep.subr.bf16.mxu0 0
      %3544 = vmatpush1.bf16.xpose.msra.mxu0 0
      %3545 = vmatprep.subr.bf16.mxu0 0
      %3546 = vmatpush1.bf16.xpose.msra.mxu0 0
      %3547 = vmatprep.subr.bf16.mxu0 0
      %3548 = vmatpush1.bf16.xpose.msra.mxu0 0
      %3549 = vmatprep.subr.bf16.mxu0 0
      %3550 = vmatpush1.bf16.xpose.msra.mxu0 0
      %3551 = vmatprep.subr.bf16.mxu0 0
      %3552 = vmatpush1.bf16.xpose.msra.mxu0 0
      %3553 = vmatprep.subr.bf16.mxu0 0
      %3554 = vmatpush1.bf16.xpose.msra.mxu0 0
      %3555 = vmatprep.subr.bf16.mxu0 0
      %3556 = vmatpush1.bf16.xpose.msra.mxu0 0
      %3557 = vmatprep.subr.bf16.mxu0 0
      %3558 = vmatpush1.bf16.xpose.msra.mxu0 0
      %3559 = vmatprep.subr.bf16.mxu0 0
      %3560 = vmatpush1.bf16.xpose.msra.mxu0 0
      %3561 = vmatprep.subr.bf16.mxu0 0
      %3562 = vmatpush1.bf16.xpose.msra.mxu0 0
      %3563 = vmatprep.subr.bf16.mxu0 0
      %3564 = vmatpush1.bf16.xpose.msra.mxu0 0
      %3565 = vmatprep.subr.bf16.mxu0 0
      %3566 = vmatpush1.bf16.xpose.msra.mxu0 0
      %3567 = vmatprep.subr.bf16.mxu0 0
      %3568 = vmatpush1.bf16.xpose.msra.mxu0 0
      %3569 = vmatprep.subr.bf16.mxu0 0
      %3570 = vmatpush1.bf16.xpose.msra.mxu0 0
      %3571 = vmatprep.subr.bf16.mxu0 0
      %3572 = vmatpush1.bf16.xpose.msra.mxu0 0
      %3573 = vmatprep.mubr.bf16.mxu0 0
      %3574 = vmatmul.mubr.bf16.gmra.mrb[0].mxu0 %v3536
      %v3575 = vpop.f32.mrb[0].mxu0
      %v3576 = vadd.f32 0.0, %v3575
      %v3577 = vpop.f32.mrb[0].mxu0
      %v3578 = vpop.f32.mrb[0].mxu0
      %v3579 = vpop.f32.mrb[0].mxu0
      %3580 = vdwg.mxu0
      %v3582 = vsel %vm2173, %v3462, 0
      %v3585 = vsel %vm2173, %v3478, 0
      %3587 = vmatprep.subr.bf16.mxu0 0
      %3588 = vmatpush1.bf16.xpose.msra.mxu0 %v3585
      %3589 = vmatprep.subr.bf16.mxu0 0
      %3590 = vmatpush1.bf16.xpose.msra.mxu0 0
      %3591 = vmatprep.subr.bf16.mxu0 0
      %3592 = vmatpush1.bf16.xpose.msra.mxu0 0
      %3593 = vmatprep.subr.bf16.mxu0 0
      %3594 = vmatpush1.bf16.xpose.msra.mxu0 0
      %3595 = vmatprep.subr.bf16.mxu0 0
      %3596 = vmatpush1.bf16.xpose.msra.mxu0 0
      %3597 = vmatprep.subr.bf16.mxu0 0
      %3598 = vmatpush1.bf16.xpose.msra.mxu0 0
      %3599 = vmatprep.subr.bf16.mxu0 0
      %3600 = vmatpush1.bf16.xpose.msra.mxu0 0
      %3601 = vmatprep.subr.bf16.mxu0 0
      %3602 = vmatpush1.bf16.xpose.msra.mxu0 0
      %3603 = vmatprep.subr.bf16.mxu0 0
      %3604 = vmatpush1.bf16.xpose.msra.mxu0 0
      %3605 = vmatprep.subr.bf16.mxu0 0
      %3606 = vmatpush1.bf16.xpose.msra.mxu0 0
      %3607 = vmatprep.subr.bf16.mxu0 0
      %3608 = vmatpush1.bf16.xpose.msra.mxu0 0
      %3609 = vmatprep.subr.bf16.mxu0 0
      %3610 = vmatpush1.bf16.xpose.msra.mxu0 0
      %3611 = vmatprep.subr.bf16.mxu0 0
      %3612 = vmatpush1.bf16.xpose.msra.mxu0 0
      %3613 = vmatprep.subr.bf16.mxu0 0
      %3614 = vmatpush1.bf16.xpose.msra.mxu0 0
      %3615 = vmatprep.subr.bf16.mxu0 0
      %3616 = vmatpush1.bf16.xpose.msra.mxu0 0
      %3617 = vmatprep.subr.bf16.mxu0 0
      %3618 = vmatpush1.bf16.xpose.msra.mxu0 0
      %3619 = vmatprep.mubr.bf16.mxu0 0
      %3620 = vmatmul.mubr.bf16.gmra.mrb[0].mxu0 %v3582
      %v3621 = vpop.f32.mrb[0].mxu0
      %v3622 = vadd.f32 0.0, %v3621
      %v3623 = vpop.f32.mrb[0].mxu0
      %v3624 = vpop.f32.mrb[0].mxu0
      %v3625 = vpop.f32.mrb[0].mxu0
      %3626 = vdwg.mxu0
      %v3628 = vsel %vm2173, %v3464, 0
      %v3631 = vsel %vm2173, %v3480, 0
      %3633 = vmatprep.subr.bf16.mxu0 0
      %3634 = vmatpush1.bf16.xpose.msra.mxu0 %v3631
      %3635 = vmatprep.subr.bf16.mxu0 0
      %3636 = vmatpush1.bf16.xpose.msra.mxu0 0
      %3637 = vmatprep.subr.bf16.mxu0 0
      %3638 = vmatpush1.bf16.xpose.msra.mxu0 0
      %3639 = vmatprep.subr.bf16.mxu0 0
      %3640 = vmatpush1.bf16.xpose.msra.mxu0 0
      %3641 = vmatprep.subr.bf16.mxu0 0
      %3642 = vmatpush1.bf16.xpose.msra.mxu0 0
      %3643 = vmatprep.subr.bf16.mxu0 0
      %3644 = vmatpush1.bf16.xpose.msra.mxu0 0
      %3645 = vmatprep.subr.bf16.mxu0 0
      %3646 = vmatpush1.bf16.xpose.msra.mxu0 0
      %3647 = vmatprep.subr.bf16.mxu0 0
      %3648 = vmatpush1.bf16.xpose.msra.mxu0 0
      %3649 = vmatprep.subr.bf16.mxu0 0
      %3650 = vmatpush1.bf16.xpose.msra.mxu0 0
      %3651 = vmatprep.subr.bf16.mxu0 0
      %3652 = vmatpush1.bf16.xpose.msra.mxu0 0
      %3653 = vmatprep.subr.bf16.mxu0 0
      %3654 = vmatpush1.bf16.xpose.msra.mxu0 0
      %3655 = vmatprep.subr.bf16.mxu0 0
      %3656 = vmatpush1.bf16.xpose.msra.mxu0 0
      %3657 = vmatprep.subr.bf16.mxu0 0
      %3658 = vmatpush1.bf16.xpose.msra.mxu0 0
      %3659 = vmatprep.subr.bf16.mxu0 0
      %3660 = vmatpush1.bf16.xpose.msra.mxu0 0
      %3661 = vmatprep.subr.bf16.mxu0 0
      %3662 = vmatpush1.bf16.xpose.msra.mxu0 0
      %3663 = vmatprep.subr.bf16.mxu0 0
      %3664 = vmatpush1.bf16.xpose.msra.mxu0 0
      %3665 = vmatprep.mubr.bf16.mxu0 0
      %3666 = vmatmul.mubr.bf16.gmra.mrb[0].mxu0 %v3628
      %v3667 = vpop.f32.mrb[0].mxu0
      %v3668 = vadd.f32 0.0, %v3667
      %v3669 = vpop.f32.mrb[0].mxu0
      %v3670 = vpop.f32.mrb[0].mxu0
      %v3671 = vpop.f32.mrb[0].mxu0
      %3672 = vdwg.mxu0
      %v3674 = vsel %vm2173, %v3466, 0
      %v3677 = vsel %vm2173, %v3482, 0
      %3679 = vmatprep.subr.bf16.mxu0 0
      %3680 = vmatpush1.bf16.xpose.msra.mxu0 %v3677
      %3681 = vmatprep.subr.bf16.mxu0 0
      %3682 = vmatpush1.bf16.xpose.msra.mxu0 0
      %3683 = vmatprep.subr.bf16.mxu0 0
      %3684 = vmatpush1.bf16.xpose.msra.mxu0 0
      %3685 = vmatprep.subr.bf16.mxu0 0
      %3686 = vmatpush1.bf16.xpose.msra.mxu0 0
      %3687 = vmatprep.subr.bf16.mxu0 0
      %3688 = vmatpush1.bf16.xpose.msra.mxu0 0
      %3689 = vmatprep.subr.bf16.mxu0 0
      %3690 = vmatpush1.bf16.xpose.msra.mxu0 0
      %3691 = vmatprep.subr.bf16.mxu0 0
      %3692 = vmatpush1.bf16.xpose.msra.mxu0 0
      %3693 = vmatprep.subr.bf16.mxu0 0
      %3694 = vmatpush1.bf16.xpose.msra.mxu0 0
      %3695 = vmatprep.subr.bf16.mxu0 0
      %3696 = vmatpush1.bf16.xpose.msra.mxu0 0
      %3697 = vmatprep.subr.bf16.mxu0 0
      %3698 = vmatpush1.bf16.xpose.msra.mxu0 0
      %3699 = vmatprep.subr.bf16.mxu0 0
      %3700 = vmatpush1.bf16.xpose.msra.mxu0 0
      %3701 = vmatprep.subr.bf16.mxu0 0
      %3702 = vmatpush1.bf16.xpose.msra.mxu0 0
      %3703 = vmatprep.subr.bf16.mxu0 0
      %3704 = vmatpush1.bf16.xpose.msra.mxu0 0
      %3705 = vmatprep.subr.bf16.mxu0 0
      %3706 = vmatpush1.bf16.xpose.msra.mxu0 0
      %3707 = vmatprep.subr.bf16.mxu0 0
      %3708 = vmatpush1.bf16.xpose.msra.mxu0 0
      %3709 = vmatprep.subr.bf16.mxu0 0
      %3710 = vmatpush1.bf16.xpose.msra.mxu0 0
      %3711 = vmatprep.mubr.bf16.mxu0 0
      %3712 = vmatmul.mubr.bf16.gmra.mrb[0].mxu0 %v3674
      %v3713 = vpop.f32.mrb[0].mxu0
      %v3714 = vadd.f32 0.0, %v3713
      %v3715 = vpop.f32.mrb[0].mxu0
      %v3716 = vpop.f32.mrb[0].mxu0
      %v3717 = vpop.f32.mrb[0].mxu0
      %3718 = vdwg.mxu0
      %v3720 = vsel %vm2173, %v3468, 0
      %v3723 = vsel %vm2173, %v3484, 0
      %3725 = vmatprep.subr.bf16.mxu0 0
      %3726 = vmatpush1.bf16.xpose.msra.mxu0 %v3723
      %3727 = vmatprep.subr.bf16.mxu0 0
      %3728 = vmatpush1.bf16.xpose.msra.mxu0 0
      %3729 = vmatprep.subr.bf16.mxu0 0
      %3730 = vmatpush1.bf16.xpose.msra.mxu0 0
      %3731 = vmatprep.subr.bf16.mxu0 0
      %3732 = vmatpush1.bf16.xpose.msra.mxu0 0
      %3733 = vmatprep.subr.bf16.mxu0 0
      %3734 = vmatpush1.bf16.xpose.msra.mxu0 0
      %3735 = vmatprep.subr.bf16.mxu0 0
      %3736 = vmatpush1.bf16.xpose.msra.mxu0 0
      %3737 = vmatprep.subr.bf16.mxu0 0
      %3738 = vmatpush1.bf16.xpose.msra.mxu0 0
      %3739 = vmatprep.subr.bf16.mxu0 0
      %3740 = vmatpush1.bf16.xpose.msra.mxu0 0
      %3741 = vmatprep.subr.bf16.mxu0 0
      %3742 = vmatpush1.bf16.xpose.msra.mxu0 0
      %3743 = vmatprep.subr.bf16.mxu0 0
      %3744 = vmatpush1.bf16.xpose.msra.mxu0 0
      %3745 = vmatprep.subr.bf16.mxu0 0
      %3746 = vmatpush1.bf16.xpose.msra.mxu0 0
      %3747 = vmatprep.subr.bf16.mxu0 0
      %3748 = vmatpush1.bf16.xpose.msra.mxu0 0
      %3749 = vmatprep.subr.bf16.mxu0 0
      %3750 = vmatpush1.bf16.xpose.msra.mxu0 0
      %3751 = vmatprep.subr.bf16.mxu0 0
      %3752 = vmatpush1.bf16.xpose.msra.mxu0 0
      %3753 = vmatprep.subr.bf16.mxu0 0
      %3754 = vmatpush1.bf16.xpose.msra.mxu0 0
      %3755 = vmatprep.subr.bf16.mxu0 0
      %3756 = vmatpush1.bf16.xpose.msra.mxu0 0
      %3757 = vmatprep.mubr.bf16.mxu0 0
      %3758 = vmatmul.mubr.bf16.gmra.mrb[0].mxu0 %v3720
      %v3759 = vpop.f32.mrb[0].mxu0
      %v3760 = vadd.f32 0.0, %v3759
      %v3761 = vpop.f32.mrb[0].mxu0
      %v3762 = vpop.f32.mrb[0].mxu0
      %v3763 = vpop.f32.mrb[0].mxu0
      %3764 = vdwg.mxu0
      %v3766 = vsel %vm2173, %v3470, 0
      %v3769 = vsel %vm2173, %v3486, 0
      %3771 = vmatprep.subr.bf16.mxu0 0
      %3772 = vmatpush1.bf16.xpose.msra.mxu0 %v3769
      %3773 = vmatprep.subr.bf16.mxu0 0
      %3774 = vmatpush1.bf16.xpose.msra.mxu0 0
      %3775 = vmatprep.subr.bf16.mxu0 0
      %3776 = vmatpush1.bf16.xpose.msra.mxu0 0
      %3777 = vmatprep.subr.bf16.mxu0 0
      %3778 = vmatpush1.bf16.xpose.msra.mxu0 0
      %3779 = vmatprep.subr.bf16.mxu0 0
      %3780 = vmatpush1.bf16.xpose.msra.mxu0 0
      %3781 = vmatprep.subr.bf16.mxu0 0
      %3782 = vmatpush1.bf16.xpose.msra.mxu0 0
      %3783 = vmatprep.subr.bf16.mxu0 0
      %3784 = vmatpush1.bf16.xpose.msra.mxu0 0
      %3785 = vmatprep.subr.bf16.mxu0 0
      %3786 = vmatpush1.bf16.xpose.msra.mxu0 0
      %3787 = vmatprep.subr.bf16.mxu0 0
      %3788 = vmatpush1.bf16.xpose.msra.mxu0 0
      %3789 = vmatprep.subr.bf16.mxu0 0
      %3790 = vmatpush1.bf16.xpose.msra.mxu0 0
      %3791 = vmatprep.subr.bf16.mxu0 0
      %3792 = vmatpush1.bf16.xpose.msra.mxu0 0
      %3793 = vmatprep.subr.bf16.mxu0 0
      %3794 = vmatpush1.bf16.xpose.msra.mxu0 0
      %3795 = vmatprep.subr.bf16.mxu0 0
      %3796 = vmatpush1.bf16.xpose.msra.mxu0 0
      %3797 = vmatprep.subr.bf16.mxu0 0
      %3798 = vmatpush1.bf16.xpose.msra.mxu0 0
      %3799 = vmatprep.subr.bf16.mxu0 0
      %3800 = vmatpush1.bf16.xpose.msra.mxu0 0
      %3801 = vmatprep.subr.bf16.mxu0 0
      %3802 = vmatpush1.bf16.xpose.msra.mxu0 0
      %3803 = vmatprep.mubr.bf16.mxu0 0
      %3804 = vmatmul.mubr.bf16.gmra.mrb[0].mxu0 %v3766
      %v3805 = vpop.f32.mrb[0].mxu0
      %v3806 = vadd.f32 0.0, %v3805
      %v3807 = vpop.f32.mrb[0].mxu0
      %v3808 = vpop.f32.mrb[0].mxu0
      %v3809 = vpop.f32.mrb[0].mxu0
      %3810 = vdwg.mxu0
      %v3812 = vsel %vm2173, %v3472, 0
      %v3815 = vsel %vm2173, %v3488, 0
      %3817 = vmatprep.subr.bf16.mxu0 0
      %3818 = vmatpush1.bf16.xpose.msra.mxu0 %v3815
      %3819 = vmatprep.subr.bf16.mxu0 0
      %3820 = vmatpush1.bf16.xpose.msra.mxu0 0
      %3821 = vmatprep.subr.bf16.mxu0 0
      %3822 = vmatpush1.bf16.xpose.msra.mxu0 0
      %3823 = vmatprep.subr.bf16.mxu0 0
      %3824 = vmatpush1.bf16.xpose.msra.mxu0 0
      %3825 = vmatprep.subr.bf16.mxu0 0
      %3826 = vmatpush1.bf16.xpose.msra.mxu0 0
      %3827 = vmatprep.subr.bf16.mxu0 0
      %3828 = vmatpush1.bf16.xpose.msra.mxu0 0
      %3829 = vmatprep.subr.bf16.mxu0 0
      %3830 = vmatpush1.bf16.xpose.msra.mxu0 0
      %3831 = vmatprep.subr.bf16.mxu0 0
      %3832 = vmatpush1.bf16.xpose.msra.mxu0 0
      %3833 = vmatprep.subr.bf16.mxu0 0
      %3834 = vmatpush1.bf16.xpose.msra.mxu0 0
      %3835 = vmatprep.subr.bf16.mxu0 0
      %3836 = vmatpush1.bf16.xpose.msra.mxu0 0
      %3837 = vmatprep.subr.bf16.mxu0 0
      %3838 = vmatpush1.bf16.xpose.msra.mxu0 0
      %3839 = vmatprep.subr.bf16.mxu0 0
      %3840 = vmatpush1.bf16.xpose.msra.mxu0 0
      %3841 = vmatprep.subr.bf16.mxu0 0
      %3842 = vmatpush1.bf16.xpose.msra.mxu0 0
      %3843 = vmatprep.subr.bf16.mxu0 0
      %3844 = vmatpush1.bf16.xpose.msra.mxu0 0
      %3845 = vmatprep.subr.bf16.mxu0 0
      %3846 = vmatpush1.bf16.xpose.msra.mxu0 0
      %3847 = vmatprep.subr.bf16.mxu0 0
      %3848 = vmatpush1.bf16.xpose.msra.mxu0 0
      %3849 = vmatprep.mubr.bf16.mxu0 0
      %3850 = vmatmul.mubr.bf16.gmra.mrb[0].mxu0 %v3812
      %v3851 = vpop.f32.mrb[0].mxu0
      %v3852 = vadd.f32 0.0, %v3851
      %v3853 = vpop.f32.mrb[0].mxu0
      %v3854 = vpop.f32.mrb[0].mxu0
      %v3855 = vpop.f32.mrb[0].mxu0
      %3856 = vdwg.mxu0
      %vm3857 = vcmask 130048
      %v3858 = vsel %vm3857, %v3530, -inf
      %3859 = vmax.xlane.f32.xlu0 %v3858
      %v3860 = vpop.xlane.xlu0 %3859
      %v3861 = vsel %vm3857, %v3576, -inf
      %3862 = vmax.xlane.f32.xlu0 %v3861
      %v3863 = vpop.xlane.xlu0 %3862
      %v3864 = vsel %vm3857, %v3622, -inf
      %3865 = vmax.xlane.f32.xlu0 %v3864
      %v3866 = vpop.xlane.xlu0 %3865
      %v3867 = vsel %vm3857, %v3668, -inf
      %3868 = vmax.xlane.f32.xlu0 %v3867
      %v3869 = vpop.xlane.xlu0 %3868
      %v3870 = vsel %vm3857, %v3714, -inf
      %3871 = vmax.xlane.f32.xlu0 %v3870
      %v3872 = vpop.xlane.xlu0 %3871
      %v3873 = vsel %vm3857, %v3760, -inf
      %3874 = vmax.xlane.f32.xlu0 %v3873
      %v3875 = vpop.xlane.xlu0 %3874
      %v3876 = vsel %vm3857, %v3806, -inf
      %3877 = vmax.xlane.f32.xlu0 %v3876
      %v3878 = vpop.xlane.xlu0 %3877
      %v3879 = vsel %vm3857, %v3852, -inf
      %3880 = vmax.xlane.f32.xlu0 %v3879
      %v3881 = vpop.xlane.xlu0 %3880
      %v3882 = vsub.f32 %v3530, %v3860
      %v3883 = vsub.f32 %v3576, %v3863
      %v3884 = vsub.f32 %v3622, %v3866
      %v3885 = vsub.f32 %v3668, %v3869
      %v3886 = vsub.f32 %v3714, %v3872
      %v3887 = vsub.f32 %v3760, %v3875
      %v3888 = vsub.f32 %v3806, %v3878
      %v3889 = vsub.f32 %v3852, %v3881
      %v3890 = vmul.f32 %v3882, 1.442695
      %v3891 = vpow.pop %v3890
      %v3892 = vmul.f32 %v3883, 1.442695
      %v3893 = vpow.pop %v3892
      %v3894 = vmul.f32 %v3884, 1.442695
      %v3895 = vpow.pop %v3894
      %v3896 = vmul.f32 %v3885, 1.442695
      %v3897 = vpow.pop %v3896
      %v3898 = vmul.f32 %v3886, 1.442695
      %v3899 = vpow.pop %v3898
      %v3900 = vmul.f32 %v3887, 1.442695
      %v3901 = vpow.pop %v3900
      %v3902 = vmul.f32 %v3888, 1.442695
      %v3903 = vpow.pop %v3902
      %v3904 = vmul.f32 %v3889, 1.442695
      %v3905 = vpow.pop %v3904
      %v3906 = vsel %vm3857, %v3891, 0.0
      %3907 = vadd.xlane.f32.xlu0 %v3906
      %v3908 = vpop.xlane.xlu0 %3907
      %v3909 = vsel %vm3857, %v3893, 0.0
      %3910 = vadd.xlane.f32.xlu0 %v3909
      %v3911 = vpop.xlane.xlu0 %3910
      %v3912 = vsel %vm3857, %v3895, 0.0
      %3913 = vadd.xlane.f32.xlu0 %v3912
      %v3914 = vpop.xlane.xlu0 %3913
      %v3915 = vsel %vm3857, %v3897, 0.0
      %3916 = vadd.xlane.f32.xlu0 %v3915
      %v3917 = vpop.xlane.xlu0 %3916
      %v3918 = vsel %vm3857, %v3899, 0.0
      %3919 = vadd.xlane.f32.xlu0 %v3918
      %v3920 = vpop.xlane.xlu0 %3919
      %v3921 = vsel %vm3857, %v3901, 0.0
      %3922 = vadd.xlane.f32.xlu0 %v3921
      %v3923 = vpop.xlane.xlu0 %3922
      %v3924 = vsel %vm3857, %v3903, 0.0
      %3925 = vadd.xlane.f32.xlu0 %v3924
      %v3926 = vpop.xlane.xlu0 %3925
      %v3927 = vsel %vm3857, %v3905, 0.0
      %3928 = vadd.xlane.f32.xlu0 %v3927
      %v3929 = vpop.xlane.xlu0 %3928
      %v3930 = vrcp.pop %v3908
      %v3931 = vrcp.pop %v3911
      %v3932 = vrcp.pop %v3914
      %v3933 = vrcp.pop %v3917
      %v3934 = vrcp.pop %v3920
      %v3935 = vrcp.pop %v3923
      %v3936 = vrcp.pop %v3926
      %v3937 = vrcp.pop %v3929
      %v3938 = vmul.f32 %v3891, %v3930
      %v3939 = vmul.f32 %v3893, %v3931
      %v3940 = vmul.f32 %v3895, %v3932
      %v3941 = vmul.f32 %v3897, %v3933
      %v3942 = vmul.f32 %v3899, %v3934
      %v3943 = vmul.f32 %v3901, %v3935
      %v3944 = vmul.f32 %v3903, %v3936
      %v3945 = vmul.f32 %v3905, %v3937
      %v3946 = vpack.c.bf16 %v3938, %v3938
      %v3947 = vpack.c.bf16 %v3939, %v3939
      %v3948 = vpack.c.bf16 %v3940, %v3940
      %v3949 = vpack.c.bf16 %v3941, %v3941
      %v3950 = vpack.c.bf16 %v3942, %v3942
      %v3951 = vpack.c.bf16 %v3943, %v3943
      %v3952 = vpack.c.bf16 %v3944, %v3944
      %v3953 = vpack.c.bf16 %v3945, %v3945
      %3954 = vrot.lane.b32.xlu0 %v3473, 96
      %v3955 = vpop.permute.xlu0 %3954
      %v3958 = vsel %vm3857, %v3946, 0
      %3960 = vmatprep.subr.bf16.mxu0 0
      %3961 = vmatpush1.bf16.msra.mxu0 %v3955
      %3962 = vmatprep.subr.bf16.mxu0 0
      %3963 = vmatpush1.bf16.msra.mxu0 0
      %3964 = vmatprep.subr.bf16.mxu0 0
      %3965 = vmatpush1.bf16.msra.mxu0 0
      %3966 = vmatprep.subr.bf16.mxu0 0
      %3967 = vmatpush1.bf16.msra.mxu0 0
      %3968 = vmatprep.subr.bf16.mxu0 0
      %3969 = vmatpush1.bf16.msra.mxu0 0
      %3970 = vmatprep.subr.bf16.mxu0 0
      %3971 = vmatpush1.bf16.msra.mxu0 0
      %3972 = vmatprep.subr.bf16.mxu0 0
      %3973 = vmatpush1.bf16.msra.mxu0 0
      %3974 = vmatprep.subr.bf16.mxu0 0
      %3975 = vmatpush1.bf16.msra.mxu0 0
      %3976 = vmatprep.subr.bf16.mxu0 0
      %3977 = vmatpush1.bf16.msra.mxu0 0
      %3978 = vmatprep.subr.bf16.mxu0 0
      %3979 = vmatpush1.bf16.msra.mxu0 0
      %3980 = vmatprep.subr.bf16.mxu0 0
      %3981 = vmatpush1.bf16.msra.mxu0 0
      %3982 = vmatprep.subr.bf16.mxu0 0
      %3983 = vmatpush1.bf16.msra.mxu0 0
      %3984 = vmatprep.subr.bf16.mxu0 0
      %3985 = vmatpush1.bf16.msra.mxu0 0
      %3986 = vmatprep.subr.bf16.mxu0 0
      %3987 = vmatpush1.bf16.msra.mxu0 0
      %3988 = vmatprep.subr.bf16.mxu0 0
      %3989 = vmatpush1.bf16.msra.mxu0 0
      %3990 = vmatprep.subr.bf16.mxu0 0
      %3991 = vmatpush1.bf16.msra.mxu0 0
      %3992 = vmatprep.mubr.bf16.mxu0 0
      %3993 = vmatmul.mubr.bf16.gmra.mrb[0].mxu0 %v3958
      %v3994 = vpop.f32.mrb[0].mxu0
      %v3995 = vadd.f32 0.0, %v3994
      %v3996 = vpop.f32.mrb[0].mxu0
      %v3997 = vpop.f32.mrb[0].mxu0
      %v3998 = vpop.f32.mrb[0].mxu0
      %3999 = vdwg.mxu0
      %4000 = vrot.lane.b32.xlu0 %v3474, 96
      %v4001 = vpop.permute.xlu0 %4000
      %v4004 = vsel %vm3857, %v3947, 0
      %4006 = vmatprep.subr.bf16.mxu0 0
      %4007 = vmatpush1.bf16.msra.mxu0 %v4001
      %4008 = vmatprep.subr.bf16.mxu0 0
      %4009 = vmatpush1.bf16.msra.mxu0 0
      %4010 = vmatprep.subr.bf16.mxu0 0
      %4011 = vmatpush1.bf16.msra.mxu0 0
      %4012 = vmatprep.subr.bf16.mxu0 0
      %4013 = vmatpush1.bf16.msra.mxu0 0
      %4014 = vmatprep.subr.bf16.mxu0 0
      %4015 = vmatpush1.bf16.msra.mxu0 0
      %4016 = vmatprep.subr.bf16.mxu0 0
      %4017 = vmatpush1.bf16.msra.mxu0 0
      %4018 = vmatprep.subr.bf16.mxu0 0
      %4019 = vmatpush1.bf16.msra.mxu0 0
      %4020 = vmatprep.subr.bf16.mxu0 0
      %4021 = vmatpush1.bf16.msra.mxu0 0
      %4022 = vmatprep.subr.bf16.mxu0 0
      %4023 = vmatpush1.bf16.msra.mxu0 0
      %4024 = vmatprep.subr.bf16.mxu0 0
      %4025 = vmatpush1.bf16.msra.mxu0 0
      %4026 = vmatprep.subr.bf16.mxu0 0
      %4027 = vmatpush1.bf16.msra.mxu0 0
      %4028 = vmatprep.subr.bf16.mxu0 0
      %4029 = vmatpush1.bf16.msra.mxu0 0
      %4030 = vmatprep.subr.bf16.mxu0 0
      %4031 = vmatpush1.bf16.msra.mxu0 0
      %4032 = vmatprep.subr.bf16.mxu0 0
      %4033 = vmatpush1.bf16.msra.mxu0 0
      %4034 = vmatprep.subr.bf16.mxu0 0
      %4035 = vmatpush1.bf16.msra.mxu0 0
      %4036 = vmatprep.subr.bf16.mxu0 0
      %4037 = vmatpush1.bf16.msra.mxu0 0
      %4038 = vmatprep.mubr.bf16.mxu0 0
      %4039 = vmatmul.mubr.bf16.gmra.mrb[0].mxu0 %v4004
      %v4040 = vpop.f32.mrb[0].mxu0
      %v4041 = vadd.f32 0.0, %v4040
      %v4042 = vpop.f32.mrb[0].mxu0
      %v4043 = vpop.f32.mrb[0].mxu0
      %v4044 = vpop.f32.mrb[0].mxu0
      %4045 = vdwg.mxu0
      %4046 = vrot.lane.b32.xlu0 %v3478, 96
      %v4047 = vpop.permute.xlu0 %4046
      %v4050 = vsel %vm3857, %v3948, 0
      %4052 = vmatprep.subr.bf16.mxu0 0
      %4053 = vmatpush1.bf16.msra.mxu0 %v4047
      %4054 = vmatprep.subr.bf16.mxu0 0
      %4055 = vmatpush1.bf16.msra.mxu0 0
      %4056 = vmatprep.subr.bf16.mxu0 0
      %4057 = vmatpush1.bf16.msra.mxu0 0
      %4058 = vmatprep.subr.bf16.mxu0 0
      %4059 = vmatpush1.bf16.msra.mxu0 0
      %4060 = vmatprep.subr.bf16.mxu0 0
      %4061 = vmatpush1.bf16.msra.mxu0 0
      %4062 = vmatprep.subr.bf16.mxu0 0
      %4063 = vmatpush1.bf16.msra.mxu0 0
      %4064 = vmatprep.subr.bf16.mxu0 0
      %4065 = vmatpush1.bf16.msra.mxu0 0
      %4066 = vmatprep.subr.bf16.mxu0 0
      %4067 = vmatpush1.bf16.msra.mxu0 0
      %4068 = vmatprep.subr.bf16.mxu0 0
      %4069 = vmatpush1.bf16.msra.mxu0 0
      %4070 = vmatprep.subr.bf16.mxu0 0
      %4071 = vmatpush1.bf16.msra.mxu0 0
      %4072 = vmatprep.subr.bf16.mxu0 0
      %4073 = vmatpush1.bf16.msra.mxu0 0
      %4074 = vmatprep.subr.bf16.mxu0 0
      %4075 = vmatpush1.bf16.msra.mxu0 0
      %4076 = vmatprep.subr.bf16.mxu0 0
      %4077 = vmatpush1.bf16.msra.mxu0 0
      %4078 = vmatprep.subr.bf16.mxu0 0
      %4079 = vmatpush1.bf16.msra.mxu0 0
      %4080 = vmatprep.subr.bf16.mxu0 0
      %4081 = vmatpush1.bf16.msra.mxu0 0
      %4082 = vmatprep.subr.bf16.mxu0 0
      %4083 = vmatpush1.bf16.msra.mxu0 0
      %4084 = vmatprep.mubr.bf16.mxu0 0
      %4085 = vmatmul.mubr.bf16.gmra.mrb[0].mxu0 %v4050
      %v4086 = vpop.f32.mrb[0].mxu0
      %v4087 = vadd.f32 0.0, %v4086
      %v4088 = vpop.f32.mrb[0].mxu0
      %v4089 = vpop.f32.mrb[0].mxu0
      %v4090 = vpop.f32.mrb[0].mxu0
      %4091 = vdwg.mxu0
      %4092 = vrot.lane.b32.xlu0 %v3480, 96
      %v4093 = vpop.permute.xlu0 %4092
      %v4096 = vsel %vm3857, %v3949, 0
      %4098 = vmatprep.subr.bf16.mxu0 0
      %4099 = vmatpush1.bf16.msra.mxu0 %v4093
      %4100 = vmatprep.subr.bf16.mxu0 0
      %4101 = vmatpush1.bf16.msra.mxu0 0
      %4102 = vmatprep.subr.bf16.mxu0 0
      %4103 = vmatpush1.bf16.msra.mxu0 0
      %4104 = vmatprep.subr.bf16.mxu0 0
      %4105 = vmatpush1.bf16.msra.mxu0 0
      %4106 = vmatprep.subr.bf16.mxu0 0
      %4107 = vmatpush1.bf16.msra.mxu0 0
      %4108 = vmatprep.subr.bf16.mxu0 0
      %4109 = vmatpush1.bf16.msra.mxu0 0
      %4110 = vmatprep.subr.bf16.mxu0 0
      %4111 = vmatpush1.bf16.msra.mxu0 0
      %4112 = vmatprep.subr.bf16.mxu0 0
      %4113 = vmatpush1.bf16.msra.mxu0 0
      %4114 = vmatprep.subr.bf16.mxu0 0
      %4115 = vmatpush1.bf16.msra.mxu0 0
      %4116 = vmatprep.subr.bf16.mxu0 0
      %4117 = vmatpush1.bf16.msra.mxu0 0
      %4118 = vmatprep.subr.bf16.mxu0 0
      %4119 = vmatpush1.bf16.msra.mxu0 0
      %4120 = vmatprep.subr.bf16.mxu0 0
      %4121 = vmatpush1.bf16.msra.mxu0 0
      %4122 = vmatprep.subr.bf16.mxu0 0
      %4123 = vmatpush1.bf16.msra.mxu0 0
      %4124 = vmatprep.subr.bf16.mxu0 0
      %4125 = vmatpush1.bf16.msra.mxu0 0
      %4126 = vmatprep.subr.bf16.mxu0 0
      %4127 = vmatpush1.bf16.msra.mxu0 0
      %4128 = vmatprep.subr.bf16.mxu0 0
      %4129 = vmatpush1.bf16.msra.mxu0 0
      %4130 = vmatprep.mubr.bf16.mxu0 0
      %4131 = vmatmul.mubr.bf16.gmra.mrb[0].mxu0 %v4096
      %v4132 = vpop.f32.mrb[0].mxu0
      %v4133 = vadd.f32 0.0, %v4132
      %v4134 = vpop.f32.mrb[0].mxu0
      %v4135 = vpop.f32.mrb[0].mxu0
      %v4136 = vpop.f32.mrb[0].mxu0
      %4137 = vdwg.mxu0
      %4138 = vrot.lane.b32.xlu0 %v3482, 96
      %v4139 = vpop.permute.xlu0 %4138
      %v4142 = vsel %vm3857, %v3950, 0
      %4144 = vmatprep.subr.bf16.mxu0 0
      %4145 = vmatpush1.bf16.msra.mxu0 %v4139
      %4146 = vmatprep.subr.bf16.mxu0 0
      %4147 = vmatpush1.bf16.msra.mxu0 0
      %4148 = vmatprep.subr.bf16.mxu0 0
      %4149 = vmatpush1.bf16.msra.mxu0 0
      %4150 = vmatprep.subr.bf16.mxu0 0
      %4151 = vmatpush1.bf16.msra.mxu0 0
      %4152 = vmatprep.subr.bf16.mxu0 0
      %4153 = vmatpush1.bf16.msra.mxu0 0
      %4154 = vmatprep.subr.bf16.mxu0 0
      %4155 = vmatpush1.bf16.msra.mxu0 0
      %4156 = vmatprep.subr.bf16.mxu0 0
      %4157 = vmatpush1.bf16.msra.mxu0 0
      %4158 = vmatprep.subr.bf16.mxu0 0
      %4159 = vmatpush1.bf16.msra.mxu0 0
      %4160 = vmatprep.subr.bf16.mxu0 0
      %4161 = vmatpush1.bf16.msra.mxu0 0
      %4162 = vmatprep.subr.bf16.mxu0 0
      %4163 = vmatpush1.bf16.msra.mxu0 0
      %4164 = vmatprep.subr.bf16.mxu0 0
      %4165 = vmatpush1.bf16.msra.mxu0 0
      %4166 = vmatprep.subr.bf16.mxu0 0
      %4167 = vmatpush1.bf16.msra.mxu0 0
      %4168 = vmatprep.subr.bf16.mxu0 0
      %4169 = vmatpush1.bf16.msra.mxu0 0
      %4170 = vmatprep.subr.bf16.mxu0 0
      %4171 = vmatpush1.bf16.msra.mxu0 0
      %4172 = vmatprep.subr.bf16.mxu0 0
      %4173 = vmatpush1.bf16.msra.mxu0 0
      %4174 = vmatprep.subr.bf16.mxu0 0
      %4175 = vmatpush1.bf16.msra.mxu0 0
      %4176 = vmatprep.mubr.bf16.mxu0 0
      %4177 = vmatmul.mubr.bf16.gmra.mrb[0].mxu0 %v4142
      %v4178 = vpop.f32.mrb[0].mxu0
      %v4179 = vadd.f32 0.0, %v4178
      %v4180 = vpop.f32.mrb[0].mxu0
      %v4181 = vpop.f32.mrb[0].mxu0
      %v4182 = vpop.f32.mrb[0].mxu0
      %4183 = vdwg.mxu0
      %4184 = vrot.lane.b32.xlu0 %v3484, 96
      %v4185 = vpop.permute.xlu0 %4184
      %v4188 = vsel %vm3857, %v3951, 0
      %4190 = vmatprep.subr.bf16.mxu0 0
      %4191 = vmatpush1.bf16.msra.mxu0 %v4185
      %4192 = vmatprep.subr.bf16.mxu0 0
      %4193 = vmatpush1.bf16.msra.mxu0 0
      %4194 = vmatprep.subr.bf16.mxu0 0
      %4195 = vmatpush1.bf16.msra.mxu0 0
      %4196 = vmatprep.subr.bf16.mxu0 0
      %4197 = vmatpush1.bf16.msra.mxu0 0
      %4198 = vmatprep.subr.bf16.mxu0 0
      %4199 = vmatpush1.bf16.msra.mxu0 0
      %4200 = vmatprep.subr.bf16.mxu0 0
      %4201 = vmatpush1.bf16.msra.mxu0 0
      %4202 = vmatprep.subr.bf16.mxu0 0
      %4203 = vmatpush1.bf16.msra.mxu0 0
      %4204 = vmatprep.subr.bf16.mxu0 0
      %4205 = vmatpush1.bf16.msra.mxu0 0
      %4206 = vmatprep.subr.bf16.mxu0 0
      %4207 = vmatpush1.bf16.msra.mxu0 0
      %4208 = vmatprep.subr.bf16.mxu0 0
      %4209 = vmatpush1.bf16.msra.mxu0 0
      %4210 = vmatprep.subr.bf16.mxu0 0
      %4211 = vmatpush1.bf16.msra.mxu0 0
      %4212 = vmatprep.subr.bf16.mxu0 0
      %4213 = vmatpush1.bf16.msra.mxu0 0
      %4214 = vmatprep.subr.bf16.mxu0 0
      %4215 = vmatpush1.bf16.msra.mxu0 0
      %4216 = vmatprep.subr.bf16.mxu0 0
      %4217 = vmatpush1.bf16.msra.mxu0 0
      %4218 = vmatprep.subr.bf16.mxu0 0
      %4219 = vmatpush1.bf16.msra.mxu0 0
      %4220 = vmatprep.subr.bf16.mxu0 0
      %4221 = vmatpush1.bf16.msra.mxu0 0
      %4222 = vmatprep.mubr.bf16.mxu0 0
      %4223 = vmatmul.mubr.bf16.gmra.mrb[0].mxu0 %v4188
      %v4224 = vpop.f32.mrb[0].mxu0
      %v4225 = vadd.f32 0.0, %v4224
      %v4226 = vpop.f32.mrb[0].mxu0
      %v4227 = vpop.f32.mrb[0].mxu0
      %v4228 = vpop.f32.mrb[0].mxu0
      %4229 = vdwg.mxu0
      %4230 = vrot.lane.b32.xlu0 %v3486, 96
      %v4231 = vpop.permute.xlu0 %4230
      %v4234 = vsel %vm3857, %v3952, 0
      %4236 = vmatprep.subr.bf16.mxu0 0
      %4237 = vmatpush1.bf16.msra.mxu0 %v4231
      %4238 = vmatprep.subr.bf16.mxu0 0
      %4239 = vmatpush1.bf16.msra.mxu0 0
      %4240 = vmatprep.subr.bf16.mxu0 0
      %4241 = vmatpush1.bf16.msra.mxu0 0
      %4242 = vmatprep.subr.bf16.mxu0 0
      %4243 = vmatpush1.bf16.msra.mxu0 0
      %4244 = vmatprep.subr.bf16.mxu0 0
      %4245 = vmatpush1.bf16.msra.mxu0 0
      %4246 = vmatprep.subr.bf16.mxu0 0
      %4247 = vmatpush1.bf16.msra.mxu0 0
      %4248 = vmatprep.subr.bf16.mxu0 0
      %4249 = vmatpush1.bf16.msra.mxu0 0
      %4250 = vmatprep.subr.bf16.mxu0 0
      %4251 = vmatpush1.bf16.msra.mxu0 0
      %4252 = vmatprep.subr.bf16.mxu0 0
      %4253 = vmatpush1.bf16.msra.mxu0 0
      %4254 = vmatprep.subr.bf16.mxu0 0
      %4255 = vmatpush1.bf16.msra.mxu0 0
      %4256 = vmatprep.subr.bf16.mxu0 0
      %4257 = vmatpush1.bf16.msra.mxu0 0
      %4258 = vmatprep.subr.bf16.mxu0 0
      %4259 = vmatpush1.bf16.msra.mxu0 0
      %4260 = vmatprep.subr.bf16.mxu0 0
      %4261 = vmatpush1.bf16.msra.mxu0 0
      %4262 = vmatprep.subr.bf16.mxu0 0
      %4263 = vmatpush1.bf16.msra.mxu0 0
      %4264 = vmatprep.subr.bf16.mxu0 0
      %4265 = vmatpush1.bf16.msra.mxu0 0
      %4266 = vmatprep.subr.bf16.mxu0 0
      %4267 = vmatpush1.bf16.msra.mxu0 0
      %4268 = vmatprep.mubr.bf16.mxu0 0
      %4269 = vmatmul.mubr.bf16.gmra.mrb[0].mxu0 %v4234
      %v4270 = vpop.f32.mrb[0].mxu0
      %v4271 = vadd.f32 0.0, %v4270
      %v4272 = vpop.f32.mrb[0].mxu0
      %v4273 = vpop.f32.mrb[0].mxu0
      %v4274 = vpop.f32.mrb[0].mxu0
      %4275 = vdwg.mxu0
      %4276 = vrot.lane.b32.xlu0 %v3488, 96
      %v4277 = vpop.permute.xlu0 %4276
      %v4280 = vsel %vm3857, %v3953, 0
      %4282 = vmatprep.subr.bf16.mxu0 0
      %4283 = vmatpush1.bf16.msra.mxu0 %v4277
      %4284 = vmatprep.subr.bf16.mxu0 0
      %4285 = vmatpush1.bf16.msra.mxu0 0
      %4286 = vmatprep.subr.bf16.mxu0 0
      %4287 = vmatpush1.bf16.msra.mxu0 0
      %4288 = vmatprep.subr.bf16.mxu0 0
      %4289 = vmatpush1.bf16.msra.mxu0 0
      %4290 = vmatprep.subr.bf16.mxu0 0
      %4291 = vmatpush1.bf16.msra.mxu0 0
      %4292 = vmatprep.subr.bf16.mxu0 0
      %4293 = vmatpush1.bf16.msra.mxu0 0
      %4294 = vmatprep.subr.bf16.mxu0 0
      %4295 = vmatpush1.bf16.msra.mxu0 0
      %4296 = vmatprep.subr.bf16.mxu0 0
      %4297 = vmatpush1.bf16.msra.mxu0 0
      %4298 = vmatprep.subr.bf16.mxu0 0
      %4299 = vmatpush1.bf16.msra.mxu0 0
      %4300 = vmatprep.subr.bf16.mxu0 0
      %4301 = vmatpush1.bf16.msra.mxu0 0
      %4302 = vmatprep.subr.bf16.mxu0 0
      %4303 = vmatpush1.bf16.msra.mxu0 0
      %4304 = vmatprep.subr.bf16.mxu0 0
      %4305 = vmatpush1.bf16.msra.mxu0 0
      %4306 = vmatprep.subr.bf16.mxu0 0
      %4307 = vmatpush1.bf16.msra.mxu0 0
      %4308 = vmatprep.subr.bf16.mxu0 0
      %4309 = vmatpush1.bf16.msra.mxu0 0
      %4310 = vmatprep.subr.bf16.mxu0 0
      %4311 = vmatpush1.bf16.msra.mxu0 0
      %4312 = vmatprep.subr.bf16.mxu0 0
      %4313 = vmatpush1.bf16.msra.mxu0 0
      %4314 = vmatprep.mubr.bf16.mxu0 0
      %4315 = vmatmul.mubr.bf16.gmra.mrb[0].mxu0 %v4280
      %v4316 = vpop.f32.mrb[0].mxu0
      %v4317 = vadd.f32 0.0, %v4316
      %v4318 = vpop.f32.mrb[0].mxu0
      %v4319 = vpop.f32.mrb[0].mxu0
      %v4320 = vpop.f32.mrb[0].mxu0
      %4321 = vdwg.mxu0
      %v4322 = vpack.c.bf16 %v4041, %v3995
      %v4323 = vpack.c.bf16 %v4133, %v4087
      %v4324 = vpack.c.bf16 %v4225, %v4179
      %v4325 = vpack.c.bf16 %v4317, %v4271
      %v4327 = vsel %vm2173, %v4322, 0
      %v4330 = vsel %vm2669, %v3449, 0
      %4332 = vmatprep.subr.bf16.mxu0 0
      %4333 = vmatpush1.bf16.msra.mxu0 %v4330
      %4334 = vmatprep.subr.bf16.mxu0 0
      %4335 = vmatpush1.bf16.msra.mxu0 0
      %4336 = vmatprep.subr.bf16.mxu0 0
      %4337 = vmatpush1.bf16.msra.mxu0 0
      %4338 = vmatprep.subr.bf16.mxu0 0
      %4339 = vmatpush1.bf16.msra.mxu0 0
      %4340 = vmatprep.subr.bf16.mxu0 0
      %4341 = vmatpush1.bf16.msra.mxu0 0
      %4342 = vmatprep.subr.bf16.mxu0 0
      %4343 = vmatpush1.bf16.msra.mxu0 0
      %4344 = vmatprep.subr.bf16.mxu0 0
      %4345 = vmatpush1.bf16.msra.mxu0 0
      %4346 = vmatprep.subr.bf16.mxu0 0
      %4347 = vmatpush1.bf16.msra.mxu0 0
      %4348 = vmatprep.subr.bf16.mxu0 0
      %4349 = vmatpush1.bf16.msra.mxu0 0
      %4350 = vmatprep.subr.bf16.mxu0 0
      %4351 = vmatpush1.bf16.msra.mxu0 0
      %4352 = vmatprep.subr.bf16.mxu0 0
      %4353 = vmatpush1.bf16.msra.mxu0 0
      %4354 = vmatprep.subr.bf16.mxu0 0
      %4355 = vmatpush1.bf16.msra.mxu0 0
      %4356 = vmatprep.subr.bf16.mxu0 0
      %4357 = vmatpush1.bf16.msra.mxu0 0
      %4358 = vmatprep.subr.bf16.mxu0 0
      %4359 = vmatpush1.bf16.msra.mxu0 0
      %4360 = vmatprep.subr.bf16.mxu0 0
      %4361 = vmatpush1.bf16.msra.mxu0 0
      %4362 = vmatprep.subr.bf16.mxu0 0
      %4363 = vmatpush1.bf16.msra.mxu0 0
      %4364 = vmatprep.mubr.bf16.mxu0 0
      %4365 = vmatmul.mubr.bf16.gmra.mrb[0].mxu0 %v4327
      %v4366 = vpop.f32.mrb[0].mxu0
      %v4367 = vadd.f32 0.0, %v4366
      %v4368 = vpop.f32.mrb[0].mxu0
      %v4369 = vpop.f32.mrb[0].mxu0
      %v4370 = vadd.f32 0.0, %v4369
      %v4371 = vpop.f32.mrb[0].mxu0
      %4372 = vdwg.mxu0
      %v4374 = vsel %vm2173, %v4323, 0
      %v4377 = vsel %vm2669, %v3450, 0
      %4379 = vmatprep.subr.bf16.mxu0 0
      %4380 = vmatpush1.bf16.msra.mxu0 %v4377
      %4381 = vmatprep.subr.bf16.mxu0 0
      %4382 = vmatpush1.bf16.msra.mxu0 0
      %4383 = vmatprep.subr.bf16.mxu0 0
      %4384 = vmatpush1.bf16.msra.mxu0 0
      %4385 = vmatprep.subr.bf16.mxu0 0
      %4386 = vmatpush1.bf16.msra.mxu0 0
      %4387 = vmatprep.subr.bf16.mxu0 0
      %4388 = vmatpush1.bf16.msra.mxu0 0
      %4389 = vmatprep.subr.bf16.mxu0 0
      %4390 = vmatpush1.bf16.msra.mxu0 0
      %4391 = vmatprep.subr.bf16.mxu0 0
      %4392 = vmatpush1.bf16.msra.mxu0 0
      %4393 = vmatprep.subr.bf16.mxu0 0
      %4394 = vmatpush1.bf16.msra.mxu0 0
      %4395 = vmatprep.subr.bf16.mxu0 0
      %4396 = vmatpush1.bf16.msra.mxu0 0
      %4397 = vmatprep.subr.bf16.mxu0 0
      %4398 = vmatpush1.bf16.msra.mxu0 0
      %4399 = vmatprep.subr.bf16.mxu0 0
      %4400 = vmatpush1.bf16.msra.mxu0 0
      %4401 = vmatprep.subr.bf16.mxu0 0
      %4402 = vmatpush1.bf16.msra.mxu0 0
      %4403 = vmatprep.subr.bf16.mxu0 0
      %4404 = vmatpush1.bf16.msra.mxu0 0
      %4405 = vmatprep.subr.bf16.mxu0 0
      %4406 = vmatpush1.bf16.msra.mxu0 0
      %4407 = vmatprep.subr.bf16.mxu0 0
      %4408 = vmatpush1.bf16.msra.mxu0 0
      %4409 = vmatprep.subr.bf16.mxu0 0
      %4410 = vmatpush1.bf16.msra.mxu0 0
      %4411 = vmatprep.mubr.bf16.mxu0 0
      %4412 = vmatmul.mubr.bf16.gmra.mrb[0].mxu0 %v4374
      %v4413 = vpop.f32.mrb[0].mxu0
      %v4414 = vadd.f32 0.0, %v4413
      %v4415 = vpop.f32.mrb[0].mxu0
      %v4416 = vpop.f32.mrb[0].mxu0
      %v4417 = vadd.f32 0.0, %v4416
      %v4418 = vpop.f32.mrb[0].mxu0
      %4419 = vdwg.mxu0
      %v4421 = vsel %vm2173, %v4324, 0
      %v4424 = vsel %vm2669, %v3451, 0
      %4426 = vmatprep.subr.bf16.mxu0 0
      %4427 = vmatpush1.bf16.msra.mxu0 %v4424
      %4428 = vmatprep.subr.bf16.mxu0 0
      %4429 = vmatpush1.bf16.msra.mxu0 0
      %4430 = vmatprep.subr.bf16.mxu0 0
      %4431 = vmatpush1.bf16.msra.mxu0 0
      %4432 = vmatprep.subr.bf16.mxu0 0
      %4433 = vmatpush1.bf16.msra.mxu0 0
      %4434 = vmatprep.subr.bf16.mxu0 0
      %4435 = vmatpush1.bf16.msra.mxu0 0
      %4436 = vmatprep.subr.bf16.mxu0 0
      %4437 = vmatpush1.bf16.msra.mxu0 0
      %4438 = vmatprep.subr.bf16.mxu0 0
      %4439 = vmatpush1.bf16.msra.mxu0 0
      %4440 = vmatprep.subr.bf16.mxu0 0
      %4441 = vmatpush1.bf16.msra.mxu0 0
      %4442 = vmatprep.subr.bf16.mxu0 0
      %4443 = vmatpush1.bf16.msra.mxu0 0
      %4444 = vmatprep.subr.bf16.mxu0 0
      %4445 = vmatpush1.bf16.msra.mxu0 0
      %4446 = vmatprep.subr.bf16.mxu0 0
      %4447 = vmatpush1.bf16.msra.mxu0 0
      %4448 = vmatprep.subr.bf16.mxu0 0
      %4449 = vmatpush1.bf16.msra.mxu0 0
      %4450 = vmatprep.subr.bf16.mxu0 0
      %4451 = vmatpush1.bf16.msra.mxu0 0
      %4452 = vmatprep.subr.bf16.mxu0 0
      %4453 = vmatpush1.bf16.msra.mxu0 0
      %4454 = vmatprep.subr.bf16.mxu0 0
      %4455 = vmatpush1.bf16.msra.mxu0 0
      %4456 = vmatprep.subr.bf16.mxu0 0
      %4457 = vmatpush1.bf16.msra.mxu0 0
      %4458 = vmatprep.mubr.bf16.mxu0 0
      %4459 = vmatmul.mubr.bf16.gmra.mrb[0].mxu0 %v4421
      %v4460 = vpop.f32.mrb[0].mxu0
      %v4461 = vadd.f32 0.0, %v4460
      %v4462 = vpop.f32.mrb[0].mxu0
      %v4463 = vpop.f32.mrb[0].mxu0
      %v4464 = vadd.f32 0.0, %v4463
      %v4465 = vpop.f32.mrb[0].mxu0
      %4466 = vdwg.mxu0
      %v4468 = vsel %vm2173, %v4325, 0
      %v4471 = vsel %vm2669, %v3452, 0
      %4473 = vmatprep.subr.bf16.mxu0 0
      %4474 = vmatpush1.bf16.msra.mxu0 %v4471
      %4475 = vmatprep.subr.bf16.mxu0 0
      %4476 = vmatpush1.bf16.msra.mxu0 0
      %4477 = vmatprep.subr.bf16.mxu0 0
      %4478 = vmatpush1.bf16.msra.mxu0 0
      %4479 = vmatprep.subr.bf16.mxu0 0
      %4480 = vmatpush1.bf16.msra.mxu0 0
      %4481 = vmatprep.subr.bf16.mxu0 0
      %4482 = vmatpush1.bf16.msra.mxu0 0
      %4483 = vmatprep.subr.bf16.mxu0 0
      %4484 = vmatpush1.bf16.msra.mxu0 0
      %4485 = vmatprep.subr.bf16.mxu0 0
      %4486 = vmatpush1.bf16.msra.mxu0 0
      %4487 = vmatprep.subr.bf16.mxu0 0
      %4488 = vmatpush1.bf16.msra.mxu0 0
      %4489 = vmatprep.subr.bf16.mxu0 0
      %4490 = vmatpush1.bf16.msra.mxu0 0
      %4491 = vmatprep.subr.bf16.mxu0 0
      %4492 = vmatpush1.bf16.msra.mxu0 0
      %4493 = vmatprep.subr.bf16.mxu0 0
      %4494 = vmatpush1.bf16.msra.mxu0 0
      %4495 = vmatprep.subr.bf16.mxu0 0
      %4496 = vmatpush1.bf16.msra.mxu0 0
      %4497 = vmatprep.subr.bf16.mxu0 0
      %4498 = vmatpush1.bf16.msra.mxu0 0
      %4499 = vmatprep.subr.bf16.mxu0 0
      %4500 = vmatpush1.bf16.msra.mxu0 0
      %4501 = vmatprep.subr.bf16.mxu0 0
      %4502 = vmatpush1.bf16.msra.mxu0 0
      %4503 = vmatprep.subr.bf16.mxu0 0
      %4504 = vmatpush1.bf16.msra.mxu0 0
      %4505 = vmatprep.mubr.bf16.mxu0 0
      %4506 = vmatmul.mubr.bf16.gmra.mrb[0].mxu0 %v4468
      %v4507 = vpop.f32.mrb[0].mxu0
      %v4508 = vadd.f32 0.0, %v4507
      %v4509 = vpop.f32.mrb[0].mxu0
      %v4510 = vpop.f32.mrb[0].mxu0
      %v4511 = vadd.f32 0.0, %v4510
      %v4512 = vpop.f32.mrb[0].mxu0
      %4513 = vdwg.mxu0
      %v4514 = vsel %vm2100, %v4367, 0.0
      %v4515 = vsel %vm2100, %v4414, 0.0
      %v4516 = vadd.f32 %v4514, %v4515
      %v4517 = vsel %vm2100, %v4461, 0.0
      %v4518 = vadd.f32 %v4516, %v4517
      %v4519 = vsel %vm2100, %v4508, 0.0
      %v4520 = vadd.f32 %v4518, %v4519
      %v4521 = vsel %vm2100, %v4370, 0.0
      %v4522 = vsel %vm2100, %v4417, 0.0
      %v4523 = vadd.f32 %v4521, %v4522
      %v4524 = vsel %vm2100, %v4464, 0.0
      %v4525 = vadd.f32 %v4523, %v4524
      %v4526 = vsel %vm2100, %v4511, 0.0
      %v4527 = vadd.f32 %v4525, %v4526
      %v4529 = vlaneseq
      %v4530 = vshrl.u32 %v4529, 7
      %v4531 = vsub.s32 0, %v4530
      %v4532 = vrot.slane %v3454, %v4531
      %v4534 = vadd.f32 %v4520, %v4532
      %v4535 = vadd.f32 %v4527, %v4532
      %v4536 = vadd.f32 %v3310, %v4534
      %v4537 = vadd.f32 %v3311, %v4535
      %s4538 = scalar_lea.vmem [#allocation19], %s2065
      %v4539 = vld [vmem:[%s4538] sm:$0x1]
      %s4540 = scalar_lea.vmem [#allocation21], %s2065
      %v4541 = vld [vmem:[%s4540] sm:$0x1]
      %v4542 = vsel %vm2100, %v4536, 0.0
      %4543 = vadd.xlane.f32.xlu0 %v4542
      %v4544 = vpop.xlane.xlu0 %4543
      %v4545 = vsel %vm2100, %v4537, 0.0
      %4546 = vadd.xlane.f32.xlu0 %v4545
      %v4547 = vpop.xlane.xlu0 %4546
      %v4548 = vmul.f32 %v4544, %v3275
      %v4549 = vmul.f32 %v4547, %v3275
      %v4550 = vsub.f32 %v4536, %v4548
      %v4551 = vsub.f32 %v4537, %v4549
      %v4552 = vmul.f32 %v4550, %v4550
      %v4553 = vmul.f32 %v4551, %v4551
      %v4554 = vsel %vm2100, %v4552, 0.0
      %4555 = vadd.xlane.f32.xlu0 %v4554
      %v4556 = vpop.xlane.xlu0 %4555
      %v4557 = vsel %vm2100, %v4553, 0.0
      %4558 = vadd.xlane.f32.xlu0 %v4557
      %v4559 = vpop.xlane.xlu0 %4558
      %v4560 = vmul.f32 %v4556, %v3275
      %v4561 = vmul.f32 %v4559, %v3275
      %v4562 = vadd.f32 %v4560, 1e-05
      %v4563 = vadd.f32 %v4561, 1e-05
      %v4564 = vrsqrt.pop %v4562
      %v4565 = vrsqrt.pop %v4563
      %v4566 = vmul.f32 %v4550, %v4564
      %v4567 = vmul.f32 %v4551, %v4565
      %v4569 = vlaneseq
      %v4570 = vshrl.u32 %v4569, 7
      %v4571 = vsub.s32 0, %v4570
      %v4572 = vrot.slane %v4539, %v4571
      %v4574 = vmul.f32 %v4566, %v4572
      %v4575 = vmul.f32 %v4567, %v4572
      %v4577 = vlaneseq
      %v4578 = vshrl.u32 %v4577, 7
      %v4579 = vsub.s32 0, %v4578
      %v4580 = vrot.slane %v4541, %v4579
      %v4582 = vadd.f32 %v4574, %v4580
      %v4583 = vadd.f32 %v4575, %v4580
      %s4584 = smul.addr %s2072, 4
      %s4585 = scalar_lea.vmem [#allocation12], %s4584
      %v4586 = vld [vmem:[%s4585] sm:$0xf]
      %v4587 = vld [vmem:[%s4585 + $0x4] sm:$0xf]
      %v4588 = vld [vmem:[%s4585 + $0x8] sm:$0xf]
      %v4589 = vld [vmem:[%s4585 + $0xc] sm:$0xf]
      %s4590 = scalar_lea.vmem [#allocation13], %s2065
      %v4591 = vld [vmem:[%s4590] sm:$0x1]
      %v4592 = vpack.c.bf16 %v4583, %v4582
      %v4594 = vlaneseq
      %v4595 = vshrl.u32 %v4594, 7
      %v4596 = vsub.s32 0, %v4595
      %v4597 = vrot.slane %v4591, %v4596
      %v4603 = vunpack.c.l.b16 %v4586
      %v4604 = vunpack.c.l.b16 %v4587
      %v4605 = vunpack.c.l.b16 %v4588
      %v4606 = vunpack.c.l.b16 %v4589
      %v4607 = vpack.c.b16 %v4604, %v4603
      %v4608 = vpack.c.b16 %v4606, %v4605
      %v4612 = vsel %vm2100, %v4592, 0
      %4614 = vmatprep.subr.bf16.mxu0 0
      %4615 = vmatpush1.bf16.msra.mxu0 %v4607
      %4616 = vmatprep.subr.bf16.mxu0 0
      %4617 = vmatpush1.bf16.msra.mxu0 %v4608
      %4618 = vmatprep.subr.bf16.mxu0 0
      %4619 = vmatpush1.bf16.msra.mxu0 0
      %4620 = vmatprep.subr.bf16.mxu0 0
      %4621 = vmatpush1.bf16.msra.mxu0 0
      %4622 = vmatprep.subr.bf16.mxu0 0
      %4623 = vmatpush1.bf16.msra.mxu0 0
      %4624 = vmatprep.subr.bf16.mxu0 0
      %4625 = vmatpush1.bf16.msra.mxu0 0
      %4626 = vmatprep.subr.bf16.mxu0 0
      %4627 = vmatpush1.bf16.msra.mxu0 0
      %4628 = vmatprep.subr.bf16.mxu0 0
      %4629 = vmatpush1.bf16.msra.mxu0 0
      %4630 = vmatprep.subr.bf16.mxu0 0
      %4631 = vmatpush1.bf16.msra.mxu0 0
      %4632 = vmatprep.subr.bf16.mxu0 0
      %4633 = vmatpush1.bf16.msra.mxu0 0
      %4634 = vmatprep.subr.bf16.mxu0 0
      %4635 = vmatpush1.bf16.msra.mxu0 0
      %4636 = vmatprep.subr.bf16.mxu0 0
      %4637 = vmatpush1.bf16.msra.mxu0 0
      %4638 = vmatprep.subr.bf16.mxu0 0
      %4639 = vmatpush1.bf16.msra.mxu0 0
      %4640 = vmatprep.subr.bf16.mxu0 0
      %4641 = vmatpush1.bf16.msra.mxu0 0
      %4642 = vmatprep.subr.bf16.mxu0 0
      %4643 = vmatpush1.bf16.msra.mxu0 0
      %4644 = vmatprep.subr.bf16.mxu0 0
      %4645 = vmatpush1.bf16.msra.mxu0 0
      %4646 = vmatprep.mubr.bf16.mxu0 0
      %4647 = vmatmul.mubr.bf16.gmra.mrb[0].mxu0 %v4612
      %v4648 = vpop.f32.mrb[0].mxu0
      %v4649 = vadd.f32 %v4597, %v4648
      %v4650 = vpop.f32.mrb[0].mxu0
      %v4651 = vpop.f32.mrb[0].mxu0
      %v4652 = vadd.f32 %v4597, %v4651
      %v4653 = vpop.f32.mrb[0].mxu0
      %4654 = vdwg.mxu0
      %v4655 = vmax.f32 %v4649, 0.0
      %v4656 = vmax.f32 %v4652, 0.0
      %s4657 = smul.u32 %s2065, 8
      %s4658 = smul.addr %s4657, 4
      %s4659 = scalar_lea.vmem %s53, %s4658
      %v4660 = vld [vmem:[%s4659] sm:$0xf]
      %v4661 = vld [vmem:[%s4659 + $0x4] sm:$0xf]
      %v4662 = vld [vmem:[%s4659 + $0x8] sm:$0xf]
      %v4663 = vld [vmem:[%s4659 + $0xc] sm:$0xf]
      %v4664 = vld [vmem:[%s4659 + $0x10] sm:$0xf]
      %v4665 = vld [vmem:[%s4659 + $0x14] sm:$0xf]
      %v4666 = vld [vmem:[%s4659 + $0x18] sm:$0xf]
      %v4667 = vld [vmem:[%s4659 + $0x1c] sm:$0xf]
      %s4668 = scalar_lea.vmem [#allocation15], %s2065
      %v4669 = vld [vmem:[%s4668] sm:$0x1]
      %v4670 = vpack.c.bf16 %v4656, %v4655
      %v4672 = vlaneseq
      %v4673 = vshrl.u32 %v4672, 7
      %v4674 = vsub.s32 0, %v4673
      %v4675 = vrot.slane %v4669, %v4674
      %v4685 = vunpack.c.l.b16 %v4660
      %v4686 = vunpack.c.l.b16 %v4661
      %v4687 = vunpack.c.l.b16 %v4662
      %v4688 = vunpack.c.l.b16 %v4663
      %v4689 = vunpack.c.l.b16 %v4664
      %v4690 = vunpack.c.l.b16 %v4665
      %v4691 = vunpack.c.l.b16 %v4666
      %v4692 = vunpack.c.l.b16 %v4667
      %v4693 = vpack.c.b16 %v4686, %v4685
      %v4694 = vpack.c.b16 %v4688, %v4687
      %v4695 = vpack.c.b16 %v4690, %v4689
      %v4696 = vpack.c.b16 %v4692, %v4691
      %vm4701 = vcmask 523264
      %v4703 = vsel %vm4701, %v4670, 0
      %4705 = vmatprep.subr.bf16.mxu0 0
      %4706 = vmatpush1.bf16.msra.mxu0 %v4693
      %4707 = vmatprep.subr.bf16.mxu0 0
      %4708 = vmatpush1.bf16.msra.mxu0 %v4694
      %4709 = vmatprep.subr.bf16.mxu0 0
      %4710 = vmatpush1.bf16.msra.mxu0 %v4695
      %4711 = vmatprep.subr.bf16.mxu0 0
      %4712 = vmatpush1.bf16.msra.mxu0 %v4696
      %4713 = vmatprep.subr.bf16.mxu0 0
      %4714 = vmatpush1.bf16.msra.mxu0 0
      %4715 = vmatprep.subr.bf16.mxu0 0
      %4716 = vmatpush1.bf16.msra.mxu0 0
      %4717 = vmatprep.subr.bf16.mxu0 0
      %4718 = vmatpush1.bf16.msra.mxu0 0
      %4719 = vmatprep.subr.bf16.mxu0 0
      %4720 = vmatpush1.bf16.msra.mxu0 0
      %4721 = vmatprep.subr.bf16.mxu0 0
      %4722 = vmatpush1.bf16.msra.mxu0 0
      %4723 = vmatprep.subr.bf16.mxu0 0
      %4724 = vmatpush1.bf16.msra.mxu0 0
      %4725 = vmatprep.subr.bf16.mxu0 0
      %4726 = vmatpush1.bf16.msra.mxu0 0
      %4727 = vmatprep.subr.bf16.mxu0 0
      %4728 = vmatpush1.bf16.msra.mxu0 0
      %4729 = vmatprep.subr.bf16.mxu0 0
      %4730 = vmatpush1.bf16.msra.mxu0 0
      %4731 = vmatprep.subr.bf16.mxu0 0
      %4732 = vmatpush1.bf16.msra.mxu0 0
      %4733 = vmatprep.subr.bf16.mxu0 0
      %4734 = vmatpush1.bf16.msra.mxu0 0
      %4735 = vmatprep.subr.bf16.mxu0 0
      %4736 = vmatpush1.bf16.msra.mxu0 0
      %4737 = vmatprep.mubr.bf16.mxu0 0
      %4738 = vmatmul.mubr.bf16.gmra.mrb[0].mxu0 %v4703
      %v4739 = vpop.f32.mrb[0].mxu0
      %v4740 = vadd.f32 %v4675, %v4739
      %v4741 = vpop.f32.mrb[0].mxu0
      %v4742 = vpop.f32.mrb[0].mxu0
      %v4743 = vadd.f32 %v4675, %v4742
      %v4744 = vpop.f32.mrb[0].mxu0
      %4745 = vdwg.mxu0
      %v4746 = vadd.f32 %v4582, %v4740
      %v4747 = vadd.f32 %v4583, %v4743
      %s4748 = scalar_lea.vmem [#allocation22], %s2065
      %v4749 = vld [vmem:[%s4748] sm:$0x1]
      %s4750 = scalar_lea.vmem [#allocation24], %s2065
      %v4751 = vld [vmem:[%s4750] sm:$0x1]
      %v4752 = vsel %vm2100, %v4746, 0.0
      %4753 = vadd.xlane.f32.xlu0 %v4752
      %v4754 = vpop.xlane.xlu0 %4753
      %v4755 = vsel %vm2100, %v4747, 0.0
      %4756 = vadd.xlane.f32.xlu0 %v4755
      %v4757 = vpop.xlane.xlu0 %4756
      %v4758 = vmul.f32 %v4754, %v3275
      %v4759 = vmul.f32 %v4757, %v3275
      %v4760 = vsub.f32 %v4746, %v4758
      %v4761 = vsub.f32 %v4747, %v4759
      %v4762 = vmul.f32 %v4760, %v4760
      %v4763 = vmul.f32 %v4761, %v4761
      %v4764 = vsel %vm2100, %v4762, 0.0
      %4765 = vadd.xlane.f32.xlu0 %v4764
      %v4766 = vpop.xlane.xlu0 %4765
      %v4767 = vsel %vm2100, %v4763, 0.0
      %4768 = vadd.xlane.f32.xlu0 %v4767
      %v4769 = vpop.xlane.xlu0 %4768
      %v4770 = vmul.f32 %v4766, %v3275
      %v4771 = vmul.f32 %v4769, %v3275
      %v4772 = vadd.f32 %v4770, 1e-05
      %v4773 = vadd.f32 %v4771, 1e-05
      %v4774 = vrsqrt.pop %v4772
      %v4775 = vrsqrt.pop %v4773
      %v4776 = vmul.f32 %v4760, %v4774
      %v4777 = vmul.f32 %v4761, %v4775
      %v4779 = vlaneseq
      %v4780 = vshrl.u32 %v4779, 7
      %v4781 = vsub.s32 0, %v4780
      %v4782 = vrot.slane %v4749, %v4781
      %v4784 = vmul.f32 %v4776, %v4782
      %v4785 = vmul.f32 %v4777, %v4782
      %v4787 = vlaneseq
      %v4788 = vshrl.u32 %v4787, 7
      %v4789 = vsub.s32 0, %v4788
      %v4790 = vrot.slane %v4751, %v4789
      %v4792 = vadd.f32 %v4784, %v4790
      %v4793 = vadd.f32 %v4785, %v4790
    $region209: #{transformer_model_forward.1} parent=1 // loop_footer
      %s2069 = sadd.s32 1, %s2065
    $region210: #{transformer_model_forward.1} parent=1 // loop_footer_branch
      %2064 = sbr.rel target = $region206
    $region211: #{transformer_model_forward.1} parent=1 // loop_exit
      _
    %vm4794 = vcmask 261120
    %4795 = vst.msk [vmem:[%s69] sm:$0xff] %vm4794, %v2070
    %4796 = vst.msk [vmem:[%s69 + $0x8] sm:$0xff] %vm4794, %v2071
    // Predicated region
    $region212: #{transformer_model_forward.1} parent=1 // pred_check
      _
    $region213: #{transformer_model_forward.1} parent=1 // pred_check_branch
      %4798 = sbr.rel (0) target = $region215
    $region214: #{transformer_model_forward.1} parent=1 // pred_region
      _
    $region215: #{transformer_model_forward.1} parent=1 // pred_fallthru
      _
    // Predicated region
    $region216: #{transformer_model_forward.1} parent=1 // pred_check
      _
    $region217: #{transformer_model_forward.1} parent=1 // pred_check_branch
      %4800 = sbr.rel (0) target = $region219
    $region218: #{transformer_model_forward.1} parent=1 // pred_region
      _
    $region219: #{transformer_model_forward.1} parent=1 // pred_fallthru
      _
    %4801 = vsyncpa [#allocation3], 1
    %4802 = vsyncpa [#allocation5], 1
    %4803 = vsyncpa [#allocation8], 1
    %4804 = vsyncpa [#allocation11], 1
    %4805 = vsyncpa [#allocation14], 1
    %4806 = vsyncpa [#allocation17], 1
    %4807 = vsyncpa [#allocation20], 1
    %4808 = vsyncpa [#allocation23], 1

</llo_original>
